<compile_context>
chip_gen: v6e
topology: v6e:2x2x1
jax: 0.10.0
libtpu: 0.0.40
codegen_flags: <defaults>
</compile_context>

<pallas_src>
import functools
import numpy as np
import jax
import jax.numpy as jnp
from jax.experimental import pallas as pl
from jax.experimental.pallas import tpu as pltpu

EPS = 1e-5  # nn.LayerNorm default eps
_INV_SQRT2 = np.float32(0.7071067811865476)


def _largest_divisor_leq(n, cap):
    for d in range(min(n, cap), 0, -1):
        if n % d == 0:
            return d
    return 1


def _pick_window_batch(nWw, ws, N, cap_tokens=4096):
    """Largest divisor wb of nWw whose image block (ws, wb*ws, C) has an
    8-aligned second-minor dim (or wb == nWw, i.e. the full row), keeping
    wb*N tokens per grid step under cap_tokens."""
    for wb in range(nWw, 0, -1):
        if nWw % wb:
            continue
        if (wb * ws) % 8 != 0 and wb != nWw:
            continue
        if wb * N <= cap_tokens:
            return wb
    return nWw


# ------------------- fully fused Swin block kernel (no-pad path) -------------------

def _swin_block_kernel(*refs, num_heads, scale, ws, wb, has_mask):
    # ref layout: x, [mask], bias, ln1_g, ln1_b, wqkv, bqkv, wproj, bproj,
    #             ln2_g, ln2_b, fc1_w, fc1_b, fc2_w, fc2_b, out, xw_scratch
    i = 0
    x_ref = refs[i]; i += 1
    mask_ref = None
    if has_mask:
        mask_ref = refs[i]; i += 1
    bias_ref = refs[i]; i += 1
    (g1_ref, b1_ref, wqkv_ref, bqkv_ref, wproj_ref, bproj_ref,
     g2_ref, b2_ref, w1_ref, fb1_ref, w2_ref, fb2_ref,
     o_ref, xw_ref) = refs[i:i + 14]

    C = x_ref.shape[-1]
    N = ws * ws
    T = wb * N
    hd = C // num_heads

    # ---- gather the image-layout block into window-major token order (VMEM) ----
    # image block (1, ws, wb*ws, C): window w occupies columns [w*ws, (w+1)*ws).
    for w in range(wb):
        for r in range(ws):
            xw_ref[w * N + r * ws:w * N + (r + 1) * ws, :] = (
                x_ref[0, r, w * ws:(w + 1) * ws, :].astype(jnp.float32))
    x = xw_ref[...]                                       # (T, C) f32, window-major

    # ---- norm1 ----
    mu = jnp.mean(x, axis=-1, keepdims=True)
    var = jnp.mean((x - mu) ** 2, axis=-1, keepdims=True)
    y = (x - mu) * jax.lax.rsqrt(var + EPS) * g1_ref[...] + b1_ref[...]

    # ---- window attention (bf16 MXU operands, f32 accumulation) ----
    qkv = jnp.dot(y.astype(jnp.bfloat16), wqkv_ref[...],
                  preferred_element_type=jnp.float32) + bqkv_ref[...]   # (T, 3C)

    def split_heads(t):                                   # (T, hd*H) -> (H*wb, N, hd)
        parts = [t[:, h * hd:(h + 1) * hd].reshape(wb, N, hd)
                 for h in range(num_heads)]
        return jnp.stack(parts, axis=0).reshape(num_heads * wb, N, hd)

    q = split_heads(qkv[:, 0:C] * scale).astype(jnp.bfloat16)
    k = split_heads(qkv[:, C:2 * C]).astype(jnp.bfloat16)
    v = split_heads(qkv[:, 2 * C:3 * C]).astype(jnp.bfloat16)

    attn = jnp.einsum("bnd,bmd->bnm", q, k,
                      preferred_element_type=jnp.float32)        # (H*wb, N, N)
    attn = attn.reshape(num_heads, wb, N, N) + bias_ref[...][:, None, :, :]
    if has_mask:
        attn = attn + mask_ref[0][None, :, :, :]
    attn = attn.reshape(num_heads * wb, N, N)

    attn = attn - jnp.max(attn, axis=-1, keepdims=True)
    p = jnp.exp(attn)
    p = p * pl.reciprocal(jnp.sum(p, axis=-1, keepdims=True), approx=True)

    o = jnp.einsum("bnm,bmd->bnd", p.astype(jnp.bfloat16), v,
                   preferred_element_type=jnp.float32)           # (H*wb, N, hd)
    o = o.reshape(num_heads, T, hd)
    o_cat = jnp.concatenate([o[h] for h in range(num_heads)], axis=-1)   # (T, C)
    a_out = jnp.dot(o_cat.astype(jnp.bfloat16), wproj_ref[...],
                    preferred_element_type=jnp.float32) + bproj_ref[...]

    x2 = x + a_out                                        # residual 1 (pre-LN shortcut)

    # ---- norm2 + MLP + residual 2 ----
    mu2 = jnp.mean(x2, axis=-1, keepdims=True)
    var2 = jnp.mean((x2 - mu2) ** 2, axis=-1, keepdims=True)
    z = (x2 - mu2) * jax.lax.rsqrt(var2 + EPS) * g2_ref[...] + b2_ref[...]
    h = jnp.dot(z.astype(jnp.bfloat16), w1_ref[...],
                preferred_element_type=jnp.float32) + fb1_ref[...]
    h = 0.5 * h * (1.0 + jax.lax.erf(h * _INV_SQRT2))            # exact GELU
    m = jnp.dot(h.astype(jnp.bfloat16), w2_ref[...],
                preferred_element_type=jnp.float32) + fb2_ref[...]
    out = x2 + m                                          # (T, C) window-major

    # ---- scatter window-major tokens back to the image-layout output block ----
    for w in range(wb):
        for r in range(ws):
            o_ref[0, r, w * ws:(w + 1) * ws, :] = (
                out[w * N + r * ws:w * N + (r + 1) * ws, :].astype(o_ref.dtype))


def swin_block_fused(img, mask4d, p, *, window_size, num_heads):
    """img: (B, Hp, Wp, C), already cyclically shifted if needed, Hp/Wp multiples
    of window_size.  mask4d: (nWh, nWw, N, N) or None.  Returns (B, Hp, Wp, C)."""
    B, Hp, Wp, C = img.shape
    ws = window_size
    N = ws * ws
    nWh, nWw = Hp // ws, Wp // ws
    wb = _pick_window_batch(nWw, ws, N)
    has_mask = mask4d is not None
    scale = float((C // num_heads) ** -0.5)
    Hd = p["fc1_w"].shape[1]

    kern = functools.partial(_swin_block_kernel, num_heads=num_heads, scale=scale,
                             ws=ws, wb=wb, has_mask=has_mask)

    inputs = [img]
    in_specs = [pl.BlockSpec((1, ws, wb * ws, C), lambda b, i, j: (b, i, j, 0))]
    if has_mask:
        inputs.append(mask4d)
        in_specs.append(pl.BlockSpec((1, wb, N, N), lambda b, i, j: (i, j, 0, 0)))
    inputs.append(p["rel_bias"])
    in_specs.append(pl.BlockSpec((num_heads, N, N), lambda b, i, j: (0, 0, 0)))
    inputs += [p["norm1_g"], p["norm1_b"], p["qkv_w"], p["qkv_b"],
               p["proj_w"], p["proj_b"], p["norm2_g"], p["norm2_b"],
               p["fc1_w"], p["fc1_b"], p["fc2_w"], p["fc2_b"]]
    in_specs += [
        pl.BlockSpec((1, C), lambda b, i, j: (0, 0)),          # norm1_g
        pl.BlockSpec((1, C), lambda b, i, j: (0, 0)),          # norm1_b
        pl.BlockSpec((C, 3 * C), lambda b, i, j: (0, 0)),      # qkv_w
        pl.BlockSpec((1, 3 * C), lambda b, i, j: (0, 0)),      # qkv_b
        pl.BlockSpec((C, C), lambda b, i, j: (0, 0)),          # proj_w
        pl.BlockSpec((1, C), lambda b, i, j: (0, 0)),          # proj_b
        pl.BlockSpec((1, C), lambda b, i, j: (0, 0)),          # norm2_g
        pl.BlockSpec((1, C), lambda b, i, j: (0, 0)),          # norm2_b
        pl.BlockSpec((C, Hd), lambda b, i, j: (0, 0)),         # fc1_w
        pl.BlockSpec((1, Hd), lambda b, i, j: (0, 0)),         # fc1_b
        pl.BlockSpec((Hd, C), lambda b, i, j: (0, 0)),         # fc2_w
        pl.BlockSpec((1, C), lambda b, i, j: (0, 0)),          # fc2_b
    ]

    return pl.pallas_call(
        kern,
        out_shape=jax.ShapeDtypeStruct((B, Hp, Wp, C), img.dtype),
        grid=(B, nWh, nWw // wb),
        in_specs=in_specs,
        out_specs=pl.BlockSpec((1, ws, wb * ws, C), lambda b, i, j: (b, i, j, 0)),
        scratch_shapes=[pltpu.VMEM((wb * N, C), jnp.float32)],
        compiler_params=pltpu.CompilerParams(
            dimension_semantics=("parallel", "parallel", "parallel"),
            vmem_limit_bytes=64 * 1024 * 1024),
    )(*inputs)


# ------------------- fallback kernels (padded H/W path, exact PyTorch order) -------

def _ln_kernel(x_ref, g_ref, b_ref, o_ref):
    x = x_ref[...].astype(jnp.float32)
    mu = jnp.mean(x, axis=-1, keepdims=True)
    var = jnp.mean((x - mu) ** 2, axis=-1, keepdims=True)
    o_ref[...] = ((x - mu) * jax.lax.rsqrt(var + EPS) * g_ref[...]
                  + b_ref[...]).astype(o_ref.dtype)


def layernorm(x2d, gamma, beta, *, row_tile=256):
    M, C = x2d.shape
    rt = min(row_tile, M)
    Mp = -(-M // rt) * rt
    xp = jnp.pad(x2d, ((0, Mp - M), (0, 0))) if Mp != M else x2d
    out = pl.pallas_call(
        _ln_kernel,
        out_shape=jax.ShapeDtypeStruct((Mp, C), x2d.dtype),
        grid=(Mp // rt,),
        in_specs=[
            pl.BlockSpec((rt, C), lambda i: (i, 0)),
            pl.BlockSpec((1, C), lambda i: (0, 0)),
            pl.BlockSpec((1, C), lambda i: (0, 0)),
        ],
        out_specs=pl.BlockSpec((rt, C), lambda i: (i, 0)),
        compiler_params=pltpu.CompilerParams(
            dimension_semantics=("parallel",),
            vmem_limit_bytes=64 * 1024 * 1024),
    )(xp, gamma, beta)
    return out[:M] if Mp != M else out


def _win_attn_kernel(*refs, num_heads, scale, has_mask):
    # ref layout: x, [mask], bias, wqkv, bqkv, wproj, bproj, out
    i = 0
    x_ref = refs[i]; i += 1
    mask_ref = None
    if has_mask:
        mask_ref = refs[i]; i += 1
    bias_ref = refs[i]; i += 1
    wqkv_ref, bqkv_ref, wproj_ref, bproj_ref, o_ref = refs[i:i + 5]

    x = x_ref[0].astype(jnp.float32)                     # (Wb, N, C)
    Wb, N, C = x.shape
    hd = C // num_heads

    y2 = x.reshape(Wb * N, C).astype(jnp.bfloat16)
    qkv = jnp.dot(y2, wqkv_ref[...],
                  preferred_element_type=jnp.float32) + bqkv_ref[...]  # (Wb*N, 3C)

    def split_heads(t):
        parts = [t[:, h * hd:(h + 1) * hd].reshape(Wb, N, hd)
                 for h in range(num_heads)]
        return jnp.stack(parts, axis=0).reshape(num_heads * Wb, N, hd)

    q = split_heads(qkv[:, 0:C] * scale).astype(jnp.bfloat16)
    k = split_heads(qkv[:, C:2 * C]).astype(jnp.bfloat16)
    v = split_heads(qkv[:, 2 * C:3 * C]).astype(jnp.bfloat16)

    attn = jnp.einsum("bnd,bmd->bnm", q, k,
                      preferred_element_type=jnp.float32)
    attn = attn.reshape(num_heads, Wb, N, N) + bias_ref[...][:, None, :, :]
    if has_mask:
        attn = attn + mask_ref[...][None, :, :, :]
    attn = attn.reshape(num_heads * Wb, N, N)

    attn = attn - jnp.max(attn, axis=-1, keepdims=True)
    p = jnp.exp(attn)
    p = p * pl.reciprocal(jnp.sum(p, axis=-1, keepdims=True), approx=True)

    o = jnp.einsum("bnm,bmd->bnd", p.astype(jnp.bfloat16), v,
                   preferred_element_type=jnp.float32)
    o = o.reshape(num_heads, Wb * N, hd)
    o_cat = jnp.concatenate([o[h] for h in range(num_heads)], axis=-1)

    out = jnp.dot(o_cat.astype(jnp.bfloat16), wproj_ref[...],
                  preferred_element_type=jnp.float32) + bproj_ref[...]
    o_ref[0] = out.reshape(Wb, N, C).astype(o_ref.dtype)


def window_attention(x_win, mask, rel_bias, wqkv, bqkv, wproj, bproj,
                     *, num_heads, win_tile=16):
    """x_win: (B, nW, N, C) already normed.  mask: (nW, N, N) or None."""
    B, nW, N, C = x_win.shape
    Wb = _largest_divisor_leq(nW, win_tile)
    scale = float((C // num_heads) ** -0.5)
    has_mask = mask is not None
    kern = functools.partial(_win_attn_kernel, num_heads=num_heads, scale=scale,
                             has_mask=has_mask)

    inputs = [x_win]
    in_specs = [pl.BlockSpec((1, Wb, N, C), lambda b, j: (b, j, 0, 0))]
    if has_mask:
        inputs.append(mask)
        in_specs.append(pl.BlockSpec((Wb, N, N), lambda b, j: (j, 0, 0)))
    inputs.append(rel_bias)
    in_specs.append(pl.BlockSpec((num_heads, N, N), lambda b, j: (0, 0, 0)))
    inputs += [wqkv, bqkv, wproj, bproj]
    in_specs += [
        pl.BlockSpec((C, 3 * C), lambda b, j: (0, 0)),
        pl.BlockSpec((1, 3 * C), lambda b, j: (0, 0)),
        pl.BlockSpec((C, C), lambda b, j: (0, 0)),
        pl.BlockSpec((1, C), lambda b, j: (0, 0)),
    ]

    return pl.pallas_call(
        kern,
        out_shape=jax.ShapeDtypeStruct((B, nW, N, C), x_win.dtype),
        grid=(B, nW // Wb),
        in_specs=in_specs,
        out_specs=pl.BlockSpec((1, Wb, N, C), lambda b, j: (b, j, 0, 0)),
        compiler_params=pltpu.CompilerParams(
            dimension_semantics=("parallel", "parallel"),
            vmem_limit_bytes=64 * 1024 * 1024),
    )(*inputs)


def _mlp_kernel(x_ref, g_ref, b_ref, w1_ref, b1_ref, w2_ref, b2_ref, o_ref):
    x = x_ref[...].astype(jnp.float32)
    mu = jnp.mean(x, axis=-1, keepdims=True)
    var = jnp.mean((x - mu) ** 2, axis=-1, keepdims=True)
    y = (x - mu) * jax.lax.rsqrt(var + EPS) * g_ref[...] + b_ref[...]
    h = jnp.dot(y.astype(jnp.bfloat16), w1_ref[...],
                preferred_element_type=jnp.float32) + b1_ref[...]
    h = 0.5 * h * (1.0 + jax.lax.erf(h * _INV_SQRT2))
    z = jnp.dot(h.astype(jnp.bfloat16), w2_ref[...],
                preferred_element_type=jnp.float32) + b2_ref[...]
    o_ref[...] = (x + z).astype(o_ref.dtype)


def mlp_block(x2d, gamma, beta, w1, b1, w2, b2, *, row_tile=256):
    M, C = x2d.shape
    Hd = w1.shape[1]
    rt = min(row_tile, M)
    Mp = -(-M // rt) * rt
    xp = jnp.pad(x2d, ((0, Mp - M), (0, 0))) if Mp != M else x2d
    out = pl.pallas_call(
        _mlp_kernel,
        out_shape=jax.ShapeDtypeStruct((Mp, C), x2d.dtype),
        grid=(Mp // rt,),
        in_specs=[
            pl.BlockSpec((rt, C), lambda i: (i, 0)),
            pl.BlockSpec((1, C), lambda i: (0, 0)),
            pl.BlockSpec((1, C), lambda i: (0, 0)),
            pl.BlockSpec((C, Hd), lambda i: (0, 0)),
            pl.BlockSpec((1, Hd), lambda i: (0, 0)),
            pl.BlockSpec((Hd, C), lambda i: (0, 0)),
            pl.BlockSpec((1, C), lambda i: (0, 0)),
        ],
        out_specs=pl.BlockSpec((rt, C), lambda i: (i, 0)),
        compiler_params=pltpu.CompilerParams(
            dimension_semantics=("parallel",),
            vmem_limit_bytes=64 * 1024 * 1024),
    )(xp, gamma, beta, w1, b1, w2, b2)
    return out[:M] if Mp != M else out


# ----------------------------- JAX / numpy glue -----------------------------

def window_partition(x, ws):
    B, H, W, C = x.shape
    x = x.reshape(B, H // ws, ws, W // ws, ws, C)
    return x.transpose(0, 1, 3, 2, 4, 5).reshape(-1, ws, ws, C)


def window_reverse(windows, ws, H, W):
    B = windows.shape[0] // (H * W // ws // ws)
    x = windows.reshape(B, H // ws, W // ws, ws, ws, -1)
    return x.transpose(0, 1, 3, 2, 4, 5).reshape(B, H, W, -1)


def window_partition_np(x, ws):
    B, H, W, C = x.shape
    x = x.reshape(B, H // ws, ws, W // ws, ws, C)
    return np.ascontiguousarray(x.transpose(0, 1, 3, 2, 4, 5)).reshape(-1, ws, ws, C)


def create_mask_np(H, W, window_size, shift_size):
    Hp = int(np.ceil(H / window_size)) * window_size
    Wp = int(np.ceil(W / window_size)) * window_size
    img_mask = np.zeros((1, Hp, Wp, 1), dtype=np.float32)
    h_slices = (slice(0, -window_size), slice(-window_size, -shift_size), slice(-shift_size, None))
    w_slices = (slice(0, -window_size), slice(-window_size, -shift_size), slice(-shift_size, None))
    cnt = 0
    for h in h_slices:
        for w in w_slices:
            img_mask[:, h, w, :] = cnt
            cnt += 1
    mask_windows = window_partition_np(img_mask, window_size).reshape(-1, window_size * window_size)
    attn_mask = mask_windows[:, None, :] - mask_windows[:, :, None]
    return np.where(attn_mask != 0, np.float32(-100.0), np.float32(0.0))   # (nW, N, N)


def relative_position_index_np(ws):
    coords = np.stack(np.meshgrid(np.arange(ws), np.arange(ws), indexing="ij"))
    coords_flatten = coords.reshape(2, -1)
    rel = coords_flatten[:, :, None] - coords_flatten[:, None, :]
    rel = rel.transpose(1, 2, 0).copy()
    rel[:, :, 0] += ws - 1
    rel[:, :, 1] += ws - 1
    rel[:, :, 0] *= 2 * ws - 1
    return rel.sum(-1).astype(np.int32)                                    # (N, N)


def init_params(key, dim, depth, num_heads, window_size, mlp_ratio=4.0):
    hidden = int(dim * mlp_ratio)
    N = window_size * window_size
    rel_index = relative_position_index_np(window_size)
    blocks = []
    for _ in range(depth):
        key, k0, k1, k2, k3, k4 = jax.random.split(key, 6)
        rel_table = 0.02 * jax.random.normal(k1, ((2 * window_size - 1) ** 2, num_heads), jnp.float32)
        rel_bias = jnp.transpose(
            rel_table[rel_index.reshape(-1)].reshape(N, N, num_heads), (2, 0, 1))
        blocks.append(dict(
            norm1_g=jnp.ones((1, dim), jnp.float32),
            norm1_b=jnp.zeros((1, dim), jnp.float32),
            qkv_w=(0.02 * jax.random.normal(k0, (dim, 3 * dim), jnp.float32)).astype(jnp.bfloat16),
            qkv_b=jnp.zeros((1, 3 * dim), jnp.float32),
            rel_bias=rel_bias,
            proj_w=(0.02 * jax.random.normal(k2, (dim, dim), jnp.float32)).astype(jnp.bfloat16),
            proj_b=jnp.zeros((1, dim), jnp.float32),
            norm2_g=jnp.ones((1, dim), jnp.float32),
            norm2_b=jnp.zeros((1, dim), jnp.float32),
            fc1_w=(0.02 * jax.random.normal(k3, (dim, hidden), jnp.float32)).astype(jnp.bfloat16),
            fc1_b=jnp.zeros((1, hidden), jnp.float32),
            fc2_w=(0.02 * jax.random.normal(k4, (hidden, dim), jnp.float32)).astype(jnp.bfloat16),
            fc2_b=jnp.zeros((1, dim), jnp.float32),
        ))
    return dict(blocks=blocks)


def swin_block_forward(x, H, W, p, window_size, num_heads, shift_size,
                       attn_mask4d, attn_mask):
    B, L, C = x.shape
    ws = window_size
    pad_r = (ws - W % ws) % ws
    pad_b = (ws - H % ws) % ws
    needs_pad = (pad_r > 0) or (pad_b > 0)

    if not needs_pad:
        # Fully fused path: one Pallas kernel per Swin block; window partition /
        # reverse are expressed through the BlockSpec index_map.
        img = x.reshape(B, H, W, C)
        if shift_size > 0:
            img = jnp.roll(img, shift=(-shift_size, -shift_size), axis=(1, 2))
            mask = attn_mask4d
        else:
            mask = None
        # TODO(synk): the cyclic shift wraps around the feature map, which a single
        #             rectangular BlockSpec DMA cannot express, so jnp.roll stays in XLA.
        img = swin_block_fused(img, mask, p, window_size=ws, num_heads=num_heads)
        if shift_size > 0:
            img = jnp.roll(img, shift=(shift_size, shift_size), axis=(1, 2))
        return img.reshape(B, L, C)

    # ---- padded fallback: keep norm1 / residual outside so zero-padded tokens
    #      behave exactly like the PyTorch reference ----
    Hp, Wp = H + pad_b, W + pad_r
    N = ws * ws
    shortcut = x
    img = layernorm(x.reshape(B * L, C), p["norm1_g"], p["norm1_b"]).reshape(B, H, W, C)
    img = jnp.pad(img, ((0, 0), (0, pad_b), (0, pad_r), (0, 0)))
    if shift_size > 0:
        img = jnp.roll(img, shift=(-shift_size, -shift_size), axis=(1, 2))
        mask = attn_mask
    else:
        mask = None
    nW = (Hp // ws) * (Wp // ws)
    x_windows = window_partition(img, ws).reshape(B, nW, N, C)
    attn_windows = window_attention(
        x_windows, mask, p["rel_bias"],
        p["qkv_w"], p["qkv_b"], p["proj_w"], p["proj_b"], num_heads=num_heads)
    img_out = window_reverse(attn_windows.reshape(-1, ws, ws, C), ws, Hp, Wp)
    if shift_size > 0:
        img_out = jnp.roll(img_out, shift=(shift_size, shift_size), axis=(1, 2))
    img_out = img_out[:, :H, :W, :]
    x_attn = shortcut + img_out.reshape(B, H * W, C)
    out = mlp_block(x_attn.reshape(B * L, C), p["norm2_g"], p["norm2_b"],
                    p["fc1_w"], p["fc1_b"], p["fc2_w"], p["fc2_b"]).reshape(B, L, C)
    return out


@functools.partial(jax.jit, static_argnames=("H", "W", "window_size", "num_heads"))
def _basic_layer_jit(x, params, H, W, window_size, num_heads):
    ws = window_size
    shift_size = ws // 2
    mask_np = create_mask_np(H, W, ws, shift_size)          # (nW, N, N)
    attn_mask = jnp.asarray(mask_np)
    Hp = int(np.ceil(H / ws)) * ws
    Wp = int(np.ceil(W / ws)) * ws
    nWh, nWw = Hp // ws, Wp // ws
    attn_mask4d = attn_mask.reshape(nWh, nWw, ws * ws, ws * ws)
    for i, blk in enumerate(params["blocks"]):
        s = 0 if i % 2 == 0 else shift_size
        x = swin_block_forward(x, H, W, blk, ws, num_heads, s, attn_mask4d, attn_mask)
    return x


def basic_layer_forward(x, params, H, W, window_size, num_heads):
    out = _basic_layer_jit(x, params, H, W, window_size, num_heads)
    # downsample=None in this instantiation, so H, W unchanged
    return out, H, W


# ----------------------------- demo -----------------------------

if __name__ == "__main__":
    B, H, W = 2, 8, 8
    dim, depth, num_heads, window_size = 32, 2, 4, 4

    key = jax.random.PRNGKey(0)
    kx, kp = jax.random.split(key)
    x = jax.random.normal(kx, (B, H * W, dim), jnp.float32)

    params = init_params(kp, dim, depth, num_heads, window_size)

    out, Ho, Wo = basic_layer_forward(x, params, H, W, window_size, num_heads)
    out = jax.block_until_ready(out)
    assert out.shape == (B, H * W, dim) and (Ho, Wo) == (H, W)
    print("KERNEL_OK")
</pallas_src>

<mosaic_0001>
module attributes {stable_mosaic.version = 11 : i64} {
  func.func @_swin_block_kernel(%arg0: i32, %arg1: i32, %arg2: i32, %arg3: memref<1x4x8x32xf32, #tpu.memory_space<vmem>>, %arg4: memref<4x16x16xf32, #tpu.memory_space<vmem>>, %arg5: memref<1x32xf32, #tpu.memory_space<vmem>>, %arg6: memref<1x32xf32, #tpu.memory_space<vmem>>, %arg7: memref<32x96xbf16, #tpu.memory_space<vmem>>, %arg8: memref<1x96xf32, #tpu.memory_space<vmem>>, %arg9: memref<32x32xbf16, #tpu.memory_space<vmem>>, %arg10: memref<1x32xf32, #tpu.memory_space<vmem>>, %arg11: memref<1x32xf32, #tpu.memory_space<vmem>>, %arg12: memref<1x32xf32, #tpu.memory_space<vmem>>, %arg13: memref<32x128xbf16, #tpu.memory_space<vmem>>, %arg14: memref<1x128xf32, #tpu.memory_space<vmem>>, %arg15: memref<128x32xbf16, #tpu.memory_space<vmem>>, %arg16: memref<1x32xf32, #tpu.memory_space<vmem>>, %arg17: memref<1x4x8x32xf32, #tpu.memory_space<vmem>>, %arg18: memref<32x32xf32, #tpu.memory_space<vmem>>) attributes {dimension_semantics = [#tpu.dimension_semantics<parallel>, #tpu.dimension_semantics<parallel>, #tpu.dimension_semantics<parallel>], iteration_bounds = array<i64: 2, 2, 1>, scalar_prefetch = 0 : i64, scratch_operands = 1 : i64, tpu.core_type = #tpu.core_type<tc>, window_params = [{transform_indices = @transform_0, window_bounds = array<i64: 1, 4, 8, 32>}, {pipeline_mode = #tpu.pipeline_mode<synchronous>, transform_indices = @transform_1, window_bounds = array<i64: 4, 16, 16>}, {pipeline_mode = #tpu.pipeline_mode<synchronous>, transform_indices = @transform_2, window_bounds = array<i64: 1, 32>}, {pipeline_mode = #tpu.pipeline_mode<synchronous>, transform_indices = @transform_3, window_bounds = array<i64: 1, 32>}, {pipeline_mode = #tpu.pipeline_mode<synchronous>, transform_indices = @transform_4, window_bounds = array<i64: 32, 96>}, {pipeline_mode = #tpu.pipeline_mode<synchronous>, transform_indices = @transform_5, window_bounds = array<i64: 1, 96>}, {pipeline_mode = #tpu.pipeline_mode<synchronous>, transform_indices = @transform_6, window_bounds = array<i64: 32, 32>}, {pipeline_mode = #tpu.pipeline_mode<synchronous>, transform_indices = @transform_7, window_bounds = array<i64: 1, 32>}, {pipeline_mode = #tpu.pipeline_mode<synchronous>, transform_indices = @transform_8, window_bounds = array<i64: 1, 32>}, {pipeline_mode = #tpu.pipeline_mode<synchronous>, transform_indices = @transform_9, window_bounds = array<i64: 1, 32>}, {pipeline_mode = #tpu.pipeline_mode<synchronous>, transform_indices = @transform_10, window_bounds = array<i64: 32, 128>}, {pipeline_mode = #tpu.pipeline_mode<synchronous>, transform_indices = @transform_11, window_bounds = array<i64: 1, 128>}, {pipeline_mode = #tpu.pipeline_mode<synchronous>, transform_indices = @transform_12, window_bounds = array<i64: 128, 32>}, {pipeline_mode = #tpu.pipeline_mode<synchronous>, transform_indices = @transform_13, window_bounds = array<i64: 1, 32>}, {transform_indices = @transform_14, window_bounds = array<i64: 1, 4, 8, 32>}]} {
    %c0 = arith.constant 0 : index
    %c0_0 = arith.constant 0 : index
    %c0_1 = arith.constant 0 : index
    %c0_2 = arith.constant 0 : index
    %0 = vector.load %arg3[%c0, %c0_0, %c0_1, %c0_2] : memref<1x4x8x32xf32, #tpu.memory_space<vmem>>, vector<1x1x4x32xf32>
    %1 = vector.shape_cast %0 : vector<1x1x4x32xf32> to vector<4x32xf32>
    %c0_3 = arith.constant 0 : index
    %c0_4 = arith.constant 0 : index
    %2 = vector.load %arg18[%c0_3, %c0_4] : memref<32x32xf32, #tpu.memory_space<vmem>>, vector<4x32xf32>
    tpu.vector_store %arg18[%c0_3, %c0_4], %1 {strides = array<i32>} : memref<32x32xf32, #tpu.memory_space<vmem>>, vector<4x32xf32>,
    %c0_5 = arith.constant 0 : index
    %c1 = arith.constant 1 : index
    %c0_6 = arith.constant 0 : index
    %c0_7 = arith.constant 0 : index
    %3 = vector.load %arg3[%c0_5, %c1, %c0_6, %c0_7] : memref<1x4x8x32xf32, #tpu.memory_space<vmem>>, vector<1x1x4x32xf32>
    %4 = vector.shape_cast %3 : vector<1x1x4x32xf32> to vector<4x32xf32>
    %c4 = arith.constant 4 : index
    %c0_8 = arith.constant 0 : index
    %5 = vector.load %arg18[%c4, %c0_8] : memref<32x32xf32, #tpu.memory_space<vmem>>, vector<4x32xf32>
    tpu.vector_store %arg18[%c4, %c0_8], %4 {strides = array<i32>} : memref<32x32xf32, #tpu.memory_space<vmem>>, vector<4x32xf32>,
    %c0_9 = arith.constant 0 : index
    %c2 = arith.constant 2 : index
    %c0_10 = arith.constant 0 : index
    %c0_11 = arith.constant 0 : index
    %6 = vector.load %arg3[%c0_9, %c2, %c0_10, %c0_11] : memref<1x4x8x32xf32, #tpu.memory_space<vmem>>, vector<1x1x4x32xf32>
    %7 = vector.shape_cast %6 : vector<1x1x4x32xf32> to vector<4x32xf32>
    %c8 = arith.constant 8 : index
    %c0_12 = arith.constant 0 : index
    %8 = vector.load %arg18[%c8, %c0_12] : memref<32x32xf32, #tpu.memory_space<vmem>>, vector<4x32xf32>
    tpu.vector_store %arg18[%c8, %c0_12], %7 {strides = array<i32>} : memref<32x32xf32, #tpu.memory_space<vmem>>, vector<4x32xf32>,
    %c0_13 = arith.constant 0 : index
    %c3 = arith.constant 3 : index
    %c0_14 = arith.constant 0 : index
    %c0_15 = arith.constant 0 : index
    %9 = vector.load %arg3[%c0_13, %c3, %c0_14, %c0_15] : memref<1x4x8x32xf32, #tpu.memory_space<vmem>>, vector<1x1x4x32xf32>
    %10 = vector.shape_cast %9 : vector<1x1x4x32xf32> to vector<4x32xf32>
    %c12 = arith.constant 12 : index
    %c0_16 = arith.constant 0 : index
    %11 = vector.load %arg18[%c12, %c0_16] : memref<32x32xf32, #tpu.memory_space<vmem>>, vector<4x32xf32>
    tpu.vector_store %arg18[%c12, %c0_16], %10 {strides = array<i32>} : memref<32x32xf32, #tpu.memory_space<vmem>>, vector<4x32xf32>,
    %c0_17 = arith.constant 0 : index
    %c0_18 = arith.constant 0 : index
    %c4_19 = arith.constant 4 : index
    %c0_20 = arith.constant 0 : index
    %12 = vector.load %arg3[%c0_17, %c0_18, %c4_19, %c0_20] : memref<1x4x8x32xf32, #tpu.memory_space<vmem>>, vector<1x1x4x32xf32>
    %13 = vector.shape_cast %12 : vector<1x1x4x32xf32> to vector<4x32xf32>
    %c16 = arith.constant 16 : index
    %c0_21 = arith.constant 0 : index
    %14 = vector.load %arg18[%c16, %c0_21] : memref<32x32xf32, #tpu.memory_space<vmem>>, vector<4x32xf32>
    tpu.vector_store %arg18[%c16, %c0_21], %13 {strides = array<i32>} : memref<32x32xf32, #tpu.memory_space<vmem>>, vector<4x32xf32>,
    %c0_22 = arith.constant 0 : index
    %c1_23 = arith.constant 1 : index
    %c4_24 = arith.constant 4 : index
    %c0_25 = arith.constant 0 : index
    %15 = vector.load %arg3[%c0_22, %c1_23, %c4_24, %c0_25] : memref<1x4x8x32xf32, #tpu.memory_space<vmem>>, vector<1x1x4x32xf32>
    %16 = vector.shape_cast %15 : vector<1x1x4x32xf32> to vector<4x32xf32>
    %c20 = arith.constant 20 : index
    %c0_26 = arith.constant 0 : index
    %17 = vector.load %arg18[%c20, %c0_26] : memref<32x32xf32, #tpu.memory_space<vmem>>, vector<4x32xf32>
    tpu.vector_store %arg18[%c20, %c0_26], %16 {strides = array<i32>} : memref<32x32xf32, #tpu.memory_space<vmem>>, vector<4x32xf32>,
    %c0_27 = arith.constant 0 : index
    %c2_28 = arith.constant 2 : index
    %c4_29 = arith.constant 4 : index
    %c0_30 = arith.constant 0 : index
    %18 = vector.load %arg3[%c0_27, %c2_28, %c4_29, %c0_30] : memref<1x4x8x32xf32, #tpu.memory_space<vmem>>, vector<1x1x4x32xf32>
    %19 = vector.shape_cast %18 : vector<1x1x4x32xf32> to vector<4x32xf32>
    %c24 = arith.constant 24 : index
    %c0_31 = arith.constant 0 : index
    %20 = vector.load %arg18[%c24, %c0_31] : memref<32x32xf32, #tpu.memory_space<vmem>>, vector<4x32xf32>
    tpu.vector_store %arg18[%c24, %c0_31], %19 {strides = array<i32>} : memref<32x32xf32, #tpu.memory_space<vmem>>, vector<4x32xf32>,
    %c0_32 = arith.constant 0 : index
    %c3_33 = arith.constant 3 : index
    %c4_34 = arith.constant 4 : index
    %c0_35 = arith.constant 0 : index
    %21 = vector.load %arg3[%c0_32, %c3_33, %c4_34, %c0_35] : memref<1x4x8x32xf32, #tpu.memory_space<vmem>>, vector<1x1x4x32xf32>
    %22 = vector.shape_cast %21 : vector<1x1x4x32xf32> to vector<4x32xf32>
    %c28 = arith.constant 28 : index
    %c0_36 = arith.constant 0 : index
    %23 = vector.load %arg18[%c28, %c0_36] : memref<32x32xf32, #tpu.memory_space<vmem>>, vector<4x32xf32>
    tpu.vector_store %arg18[%c28, %c0_36], %22 {strides = array<i32>} : memref<32x32xf32, #tpu.memory_space<vmem>>, vector<4x32xf32>,
    %c0_37 = arith.constant 0 : index
    %c0_38 = arith.constant 0 : index
    %24 = vector.load %arg18[%c0_37, %c0_38] : memref<32x32xf32, #tpu.memory_space<vmem>>, vector<32x32xf32>
    %cst = arith.constant dense<0.000000e+00> : vector<32xf32>
    %25 = vector.multi_reduction <add>, %24, %cst [1] : vector<32x32xf32> to vector<32xf32>
    %26 = vector.shape_cast %25 : vector<32xf32> to vector<32x1xf32>
    %cst_39 = arith.constant 3.200000e+01 : f32
    %27 = vector.broadcast %cst_39 : f32 to vector<32x1xf32>
    %28 = arith.divf %26, %27 : vector<32x1xf32>
    %29 = vector.broadcast %28 : vector<32x1xf32> to vector<32x32xf32>
    %30 = arith.subf %24, %29 : vector<32x32xf32>
    %31 = arith.mulf %30, %30 : vector<32x32xf32>
    %cst_40 = arith.constant dense<0.000000e+00> : vector<32xf32>
    %32 = vector.multi_reduction <add>, %31, %cst_40 [1] : vector<32x32xf32> to vector<32xf32>
    %33 = vector.shape_cast %32 : vector<32xf32> to vector<32x1xf32>
    %cst_41 = arith.constant 3.200000e+01 : f32
    %34 = vector.broadcast %cst_41 : f32 to vector<32x1xf32>
    %35 = arith.divf %33, %34 : vector<32x1xf32>
    %36 = vector.broadcast %28 : vector<32x1xf32> to vector<32x32xf32>
    %37 = arith.subf %24, %36 : vector<32x32xf32>
    %cst_42 = arith.constant 9.99999974E-6 : f32
    %38 = vector.broadcast %cst_42 : f32 to vector<32x1xf32>
    %39 = arith.addf %35, %38 : vector<32x1xf32>
    %40 = math.rsqrt %39 : vector<32x1xf32>
    %41 = vector.broadcast %40 : vector<32x1xf32> to vector<32x32xf32>
    %42 = arith.mulf %37, %41 : vector<32x32xf32>
    %c0_43 = arith.constant 0 : index
    %c0_44 = arith.constant 0 : index
    %43 = vector.load %arg5[%c0_43, %c0_44] : memref<1x32xf32, #tpu.memory_space<vmem>>, vector<1x32xf32>
    %44 = vector.broadcast %43 : vector<1x32xf32> to vector<32x32xf32>
    %45 = arith.mulf %42, %44 : vector<32x32xf32>
    %c0_45 = arith.constant 0 : index
    %c0_46 = arith.constant 0 : index
    %46 = vector.load %arg6[%c0_45, %c0_46] : memref<1x32xf32, #tpu.memory_space<vmem>>, vector<1x32xf32>
    %47 = vector.broadcast %46 : vector<1x32xf32> to vector<32x32xf32>
    %48 = arith.addf %45, %47 : vector<32x32xf32>
    %49 = arith.truncf %48 : vector<32x32xf32> to vector<32x32xbf16>
    %c0_47 = arith.constant 0 : index
    %c0_48 = arith.constant 0 : index
    %50 = vector.load %arg7[%c0_47, %c0_48] : memref<32x96xbf16, #tpu.memory_space<vmem>>, vector<32x96xbf16>
    %cst_49 = arith.constant dense<0.000000e+00> : vector<32x96xf32>
    %51 = tpu.matmul %49, %50, %cst_49 {dimension_numbers = #tpu.dot_dimension_numbers<[1], [0], [0], [1], [0, 0, 1, 1], [], []>} : vector<32x32xbf16>, vector<32x96xbf16>, vector<32x96xf32> -> vector<32x96xf32>
    %c0_50 = arith.constant 0 : index
    %c0_51 = arith.constant 0 : index
    %52 = vector.load %arg8[%c0_50, %c0_51] : memref<1x96xf32, #tpu.memory_space<vmem>>, vector<1x96xf32>
    %53 = vector.broadcast %52 : vector<1x96xf32> to vector<32x96xf32>
    %54 = arith.addf %51, %53 : vector<32x96xf32>
    %55 = vector.extract_strided_slice %54 {offsets = [0, 0], sizes = [32, 32], strides = [1, 1]} : vector<32x96xf32> to vector<32x32xf32>
    %cst_52 = arith.constant 0.353553385 : f32
    %56 = vector.broadcast %cst_52 : f32 to vector<32x32xf32>
    %57 = arith.mulf %55, %56 : vector<32x32xf32>
    %58 = vector.extract_strided_slice %57 {offsets = [0, 0], sizes = [32, 8], strides = [1, 1]} : vector<32x32xf32> to vector<32x8xf32>
    %59 = vector.shape_cast %58 : vector<32x8xf32> to vector<2x16x8xf32>
    %60 = vector.extract_strided_slice %57 {offsets = [0, 8], sizes = [32, 8], strides = [1, 1]} : vector<32x32xf32> to vector<32x8xf32>
    %61 = vector.shape_cast %60 : vector<32x8xf32> to vector<2x16x8xf32>
    %62 = vector.extract_strided_slice %57 {offsets = [0, 16], sizes = [32, 8], strides = [1, 1]} : vector<32x32xf32> to vector<32x8xf32>
    %63 = vector.shape_cast %62 : vector<32x8xf32> to vector<2x16x8xf32>
    %64 = vector.extract_strided_slice %57 {offsets = [0, 24], sizes = [32, 8], strides = [1, 1]} : vector<32x32xf32> to vector<32x8xf32>
    %65 = vector.shape_cast %64 : vector<32x8xf32> to vector<2x16x8xf32>
    %66 = vector.shape_cast %59 : vector<2x16x8xf32> to vector<1x2x16x8xf32>
    %67 = vector.shape_cast %61 : vector<2x16x8xf32> to vector<1x2x16x8xf32>
    %68 = vector.shape_cast %63 : vector<2x16x8xf32> to vector<1x2x16x8xf32>
    %69 = vector.shape_cast %65 : vector<2x16x8xf32> to vector<1x2x16x8xf32>
    %70 = tpu.concatenate %66, %67, %68, %69 in 0 : vector<1x2x16x8xf32>, vector<1x2x16x8xf32>, vector<1x2x16x8xf32>, vector<1x2x16x8xf32> -> vector<4x2x16x8xf32>
    %71 = vector.shape_cast %70 : vector<4x2x16x8xf32> to vector<8x16x8xf32>
    %72 = arith.truncf %71 : vector<8x16x8xf32> to vector<8x16x8xbf16>
    %73 = vector.extract_strided_slice %54 {offsets = [0, 32], sizes = [32, 32], strides = [1, 1]} : vector<32x96xf32> to vector<32x32xf32>
    %74 = vector.extract_strided_slice %73 {offsets = [0, 0], sizes = [32, 8], strides = [1, 1]} : vector<32x32xf32> to vector<32x8xf32>
    %75 = vector.shape_cast %74 : vector<32x8xf32> to vector<2x16x8xf32>
    %76 = vector.extract_strided_slice %73 {offsets = [0, 8], sizes = [32, 8], strides = [1, 1]} : vector<32x32xf32> to vector<32x8xf32>
    %77 = vector.shape_cast %76 : vector<32x8xf32> to vector<2x16x8xf32>
    %78 = vector.extract_strided_slice %73 {offsets = [0, 16], sizes = [32, 8], strides = [1, 1]} : vector<32x32xf32> to vector<32x8xf32>
    %79 = vector.shape_cast %78 : vector<32x8xf32> to vector<2x16x8xf32>
    %80 = vector.extract_strided_slice %73 {offsets = [0, 24], sizes = [32, 8], strides = [1, 1]} : vector<32x32xf32> to vector<32x8xf32>
    %81 = vector.shape_cast %80 : vector<32x8xf32> to vector<2x16x8xf32>
    %82 = vector.shape_cast %75 : vector<2x16x8xf32> to vector<1x2x16x8xf32>
    %83 = vector.shape_cast %77 : vector<2x16x8xf32> to vector<1x2x16x8xf32>
    %84 = vector.shape_cast %79 : vector<2x16x8xf32> to vector<1x2x16x8xf32>
    %85 = vector.shape_cast %81 : vector<2x16x8xf32> to vector<1x2x16x8xf32>
    %86 = tpu.concatenate %82, %83, %84, %85 in 0 : vector<1x2x16x8xf32>, vector<1x2x16x8xf32>, vector<1x2x16x8xf32>, vector<1x2x16x8xf32> -> vector<4x2x16x8xf32>
    %87 = vector.shape_cast %86 : vector<4x2x16x8xf32> to vector<8x16x8xf32>
    %88 = arith.truncf %87 : vector<8x16x8xf32> to vector<8x16x8xbf16>
    %89 = vector.extract_strided_slice %54 {offsets = [0, 64], sizes = [32, 32], strides = [1, 1]} : vector<32x96xf32> to vector<32x32xf32>
    %90 = vector.extract_strided_slice %89 {offsets = [0, 0], sizes = [32, 8], strides = [1, 1]} : vector<32x32xf32> to vector<32x8xf32>
    %91 = vector.shape_cast %90 : vector<32x8xf32> to vector<2x16x8xf32>
    %92 = vector.extract_strided_slice %89 {offsets = [0, 8], sizes = [32, 8], strides = [1, 1]} : vector<32x32xf32> to vector<32x8xf32>
    %93 = vector.shape_cast %92 : vector<32x8xf32> to vector<2x16x8xf32>
    %94 = vector.extract_strided_slice %89 {offsets = [0, 16], sizes = [32, 8], strides = [1, 1]} : vector<32x32xf32> to vector<32x8xf32>
    %95 = vector.shape_cast %94 : vector<32x8xf32> to vector<2x16x8xf32>
    %96 = vector.extract_strided_slice %89 {offsets = [0, 24], sizes = [32, 8], strides = [1, 1]} : vector<32x32xf32> to vector<32x8xf32>
    %97 = vector.shape_cast %96 : vector<32x8xf32> to vector<2x16x8xf32>
    %98 = vector.shape_cast %91 : vector<2x16x8xf32> to vector<1x2x16x8xf32>
    %99 = vector.shape_cast %93 : vector<2x16x8xf32> to vector<1x2x16x8xf32>
    %100 = vector.shape_cast %95 : vector<2x16x8xf32> to vector<1x2x16x8xf32>
    %101 = vector.shape_cast %97 : vector<2x16x8xf32> to vector<1x2x16x8xf32>
    %102 = tpu.concatenate %98, %99, %100, %101 in 0 : vector<1x2x16x8xf32>, vector<1x2x16x8xf32>, vector<1x2x16x8xf32>, vector<1x2x16x8xf32> -> vector<4x2x16x8xf32>
    %103 = vector.shape_cast %102 : vector<4x2x16x8xf32> to vector<8x16x8xf32>
    %104 = arith.truncf %103 : vector<8x16x8xf32> to vector<8x16x8xbf16>
    "tpu.trace_start"() <{level = 10 : i32, message = "bnd,bmd->bnm"}> : () -> ()
    %cst_53 = arith.constant dense<0.000000e+00> : vector<8x16x16xf32>
    %105 = tpu.matmul %72, %88, %cst_53 {dimension_numbers = #tpu.dot_dimension_numbers<[2], [2], [1], [1], [0, 0, 0, 1, 1, 1], [0], [0]>} : vector<8x16x8xbf16>, vector<8x16x8xbf16>, vector<8x16x16xf32> -> vector<8x16x16xf32>
    "tpu.trace_stop"() : () -> ()
    %106 = vector.shape_cast %105 : vector<8x16x16xf32> to vector<4x2x16x16xf32>
    %c0_54 = arith.constant 0 : index
    %c0_55 = arith.constant 0 : index
    %c0_56 = arith.constant 0 : index
    %107 = vector.load %arg4[%c0_54, %c0_55, %c0_56] : memref<4x16x16xf32, #tpu.memory_space<vmem>>, vector<4x16x16xf32>
    %108 = vector.shape_cast %107 : vector<4x16x16xf32> to vector<4x1x16x16xf32>
    %109 = vector.broadcast %108 : vector<4x1x16x16xf32> to vector<4x2x16x16xf32>
    %110 = arith.addf %106, %109 : vector<4x2x16x16xf32>
    %111 = vector.shape_cast %110 : vector<4x2x16x16xf32> to vector<8x16x16xf32>
    %cst_57 = arith.constant dense<0xFF800000> : vector<8x16xf32>
    %112 = vector.multi_reduction <maximumf>, %111, %cst_57 [2] : vector<8x16x16xf32> to vector<8x16xf32>
    %113 = vector.shape_cast %112 : vector<8x16xf32> to vector<8x16x1xf32>
    %114 = vector.broadcast %113 : vector<8x16x1xf32> to vector<8x16x16xf32>
    %115 = arith.subf %111, %114 : vector<8x16x16xf32>
    %116 = math.exp %115 : vector<8x16x16xf32>
    %cst_58 = arith.constant dense<0.000000e+00> : vector<8x16xf32>
    %117 = vector.multi_reduction <add>, %116, %cst_58 [2] : vector<8x16x16xf32> to vector<8x16xf32>
    %118 = vector.shape_cast %117 : vector<8x16xf32> to vector<8x16x1xf32>
    %119 = tpu.reciprocal %118 {approx = true} : vector<8x16x1xf32> -> vector<8x16x1xf32>
    %120 = vector.broadcast %119 : vector<8x16x1xf32> to vector<8x16x16xf32>
    %121 = arith.mulf %116, %120 : vector<8x16x16xf32>
    %122 = arith.truncf %121 : vector<8x16x16xf32> to vector<8x16x16xbf16>
    "tpu.trace_start"() <{level = 10 : i32, message = "bnm,bmd->bnd"}> : () -> ()
    %cst_59 = arith.constant dense<0.000000e+00> : vector<8x16x8xf32>
    %123 = tpu.matmul %122, %104, %cst_59 {dimension_numbers = #tpu.dot_dimension_numbers<[2], [1], [1], [2], [0, 0, 0, 1, 1, 2], [0], [0]>} : vector<8x16x16xbf16>, vector<8x16x8xbf16>, vector<8x16x8xf32> -> vector<8x16x8xf32>
    "tpu.trace_stop"() : () -> ()
    %124 = vector.shape_cast %123 : vector<8x16x8xf32> to vector<4x32x8xf32>
    %125 = vector.extract_strided_slice %124 {offsets = [0, 0, 0], sizes = [1, 32, 8], strides = [1, 1, 1]} : vector<4x32x8xf32> to vector<1x32x8xf32>
    %126 = vector.shape_cast %125 : vector<1x32x8xf32> to vector<32x8xf32>
    %127 = vector.extract_strided_slice %124 {offsets = [1, 0, 0], sizes = [1, 32, 8], strides = [1, 1, 1]} : vector<4x32x8xf32> to vector<1x32x8xf32>
    %128 = vector.shape_cast %127 : vector<1x32x8xf32> to vector<32x8xf32>
    %129 = vector.extract_strided_slice %124 {offsets = [2, 0, 0], sizes = [1, 32, 8], strides = [1, 1, 1]} : vector<4x32x8xf32> to vector<1x32x8xf32>
    %130 = vector.shape_cast %129 : vector<1x32x8xf32> to vector<32x8xf32>
    %131 = vector.extract_strided_slice %124 {offsets = [3, 0, 0], sizes = [1, 32, 8], strides = [1, 1, 1]} : vector<4x32x8xf32> to vector<1x32x8xf32>
    %132 = vector.shape_cast %131 : vector<1x32x8xf32> to vector<32x8xf32>
    %133 = tpu.concatenate %126, %128, %130, %132 in 1 : vector<32x8xf32>, vector<32x8xf32>, vector<32x8xf32>, vector<32x8xf32> -> vector<32x32xf32>
    %134 = arith.truncf %133 : vector<32x32xf32> to vector<32x32xbf16>
    %c0_60 = arith.constant 0 : index
    %c0_61 = arith.constant 0 : index
    %135 = vector.load %arg9[%c0_60, %c0_61] : memref<32x32xbf16, #tpu.memory_space<vmem>>, vector<32x32xbf16>
    %cst_62 = arith.constant dense<0.000000e+00> : vector<32x32xf32>
    %136 = tpu.matmul %134, %135, %cst_62 {dimension_numbers = #tpu.dot_dimension_numbers<[1], [0], [0], [1], [0, 0, 1, 1], [], []>} : vector<32x32xbf16>, vector<32x32xbf16>, vector<32x32xf32> -> vector<32x32xf32>
    %c0_63 = arith.constant 0 : index
    %c0_64 = arith.constant 0 : index
    %137 = vector.load %arg10[%c0_63, %c0_64] : memref<1x32xf32, #tpu.memory_space<vmem>>, vector<1x32xf32>
    %138 = vector.broadcast %137 : vector<1x32xf32> to vector<32x32xf32>
    %139 = arith.addf %136, %138 : vector<32x32xf32>
    %140 = arith.addf %24, %139 : vector<32x32xf32>
    %cst_65 = arith.constant dense<0.000000e+00> : vector<32xf32>
    %141 = vector.multi_reduction <add>, %140, %cst_65 [1] : vector<32x32xf32> to vector<32xf32>
    %142 = vector.shape_cast %141 : vector<32xf32> to vector<32x1xf32>
    %cst_66 = arith.constant 3.200000e+01 : f32
    %143 = vector.broadcast %cst_66 : f32 to vector<32x1xf32>
    %144 = arith.divf %142, %143 : vector<32x1xf32>
    %145 = vector.broadcast %144 : vector<32x1xf32> to vector<32x32xf32>
    %146 = arith.subf %140, %145 : vector<32x32xf32>
    %147 = arith.mulf %146, %146 : vector<32x32xf32>
    %cst_67 = arith.constant dense<0.000000e+00> : vector<32xf32>
    %148 = vector.multi_reduction <add>, %147, %cst_67 [1] : vector<32x32xf32> to vector<32xf32>
    %149 = vector.shape_cast %148 : vector<32xf32> to vector<32x1xf32>
    %cst_68 = arith.constant 3.200000e+01 : f32
    %150 = vector.broadcast %cst_68 : f32 to vector<32x1xf32>
    %151 = arith.divf %149, %150 : vector<32x1xf32>
    %152 = vector.broadcast %144 : vector<32x1xf32> to vector<32x32xf32>
    %153 = arith.subf %140, %152 : vector<32x32xf32>
    %cst_69 = arith.constant 9.99999974E-6 : f32
    %154 = vector.broadcast %cst_69 : f32 to vector<32x1xf32>
    %155 = arith.addf %151, %154 : vector<32x1xf32>
    %156 = math.rsqrt %155 : vector<32x1xf32>
    %157 = vector.broadcast %156 : vector<32x1xf32> to vector<32x32xf32>
    %158 = arith.mulf %153, %157 : vector<32x32xf32>
    %c0_70 = arith.constant 0 : index
    %c0_71 = arith.constant 0 : index
    %159 = vector.load %arg11[%c0_70, %c0_71] : memref<1x32xf32, #tpu.memory_space<vmem>>, vector<1x32xf32>
    %160 = vector.broadcast %159 : vector<1x32xf32> to vector<32x32xf32>
    %161 = arith.mulf %158, %160 : vector<32x32xf32>
    %c0_72 = arith.constant 0 : index
    %c0_73 = arith.constant 0 : index
    %162 = vector.load %arg12[%c0_72, %c0_73] : memref<1x32xf32, #tpu.memory_space<vmem>>, vector<1x32xf32>
    %163 = vector.broadcast %162 : vector<1x32xf32> to vector<32x32xf32>
    %164 = arith.addf %161, %163 : vector<32x32xf32>
    %165 = arith.truncf %164 : vector<32x32xf32> to vector<32x32xbf16>
    %c0_74 = arith.constant 0 : index
    %c0_75 = arith.constant 0 : index
    %166 = vector.load %arg13[%c0_74, %c0_75] : memref<32x128xbf16, #tpu.memory_space<vmem>>, vector<32x128xbf16>
    %cst_76 = arith.constant dense<0.000000e+00> : vector<32x128xf32>
    %167 = tpu.matmul %165, %166, %cst_76 {dimension_numbers = #tpu.dot_dimension_numbers<[1], [0], [0], [1], [0, 0, 1, 1], [], []>} : vector<32x32xbf16>, vector<32x128xbf16>, vector<32x128xf32> -> vector<32x128xf32>
    %c0_77 = arith.constant 0 : index
    %c0_78 = arith.constant 0 : index
    %168 = vector.load %arg14[%c0_77, %c0_78] : memref<1x128xf32, #tpu.memory_space<vmem>>, vector<1x128xf32>
    %169 = vector.broadcast %168 : vector<1x128xf32> to vector<32x128xf32>
    %170 = arith.addf %167, %169 : vector<32x128xf32>
    %cst_79 = arith.constant 5.000000e-01 : f32
    %171 = vector.broadcast %cst_79 : f32 to vector<32x128xf32>
    %172 = arith.mulf %171, %170 : vector<32x128xf32>
    %cst_80 = arith.constant 0.707106769 : f32
    %173 = vector.broadcast %cst_80 : f32 to vector<32x128xf32>
    %174 = arith.mulf %170, %173 : vector<32x128xf32>
    %175 = math.erf %174 : vector<32x128xf32>
    %cst_81 = arith.constant 1.000000e+00 : f32
    %176 = vector.broadcast %cst_81 : f32 to vector<32x128xf32>
    %177 = arith.addf %176, %175 : vector<32x128xf32>
    %178 = arith.mulf %172, %177 : vector<32x128xf32>
    %179 = arith.truncf %178 : vector<32x128xf32> to vector<32x128xbf16>
    %c0_82 = arith.constant 0 : index
    %c0_83 = arith.constant 0 : index
    %180 = vector.load %arg15[%c0_82, %c0_83] : memref<128x32xbf16, #tpu.memory_space<vmem>>, vector<128x32xbf16>
    %cst_84 = arith.constant dense<0.000000e+00> : vector<32x32xf32>
    %181 = tpu.matmul %179, %180, %cst_84 {dimension_numbers = #tpu.dot_dimension_numbers<[1], [0], [0], [1], [0, 0, 1, 1], [], []>} : vector<32x128xbf16>, vector<128x32xbf16>, vector<32x32xf32> -> vector<32x32xf32>
    %c0_85 = arith.constant 0 : index
    %c0_86 = arith.constant 0 : index
    %182 = vector.load %arg16[%c0_85, %c0_86] : memref<1x32xf32, #tpu.memory_space<vmem>>, vector<1x32xf32>
    %183 = vector.broadcast %182 : vector<1x32xf32> to vector<32x32xf32>
    %184 = arith.addf %181, %183 : vector<32x32xf32>
    %185 = arith.addf %140, %184 : vector<32x32xf32>
    %186 = vector.extract_strided_slice %185 {offsets = [0, 0], sizes = [4, 32], strides = [1, 1]} : vector<32x32xf32> to vector<4x32xf32>
    %c0_87 = arith.constant 0 : index
    %c0_88 = arith.constant 0 : index
    %c0_89 = arith.constant 0 : index
    %c0_90 = arith.constant 0 : index
    %187 = vector.load %arg17[%c0_87, %c0_88, %c0_89, %c0_90] : memref<1x4x8x32xf32, #tpu.memory_space<vmem>>, vector<1x1x4x32xf32>
    %188 = vector.shape_cast %187 : vector<1x1x4x32xf32> to vector<4x32xf32>
    %189 = vector.shape_cast %186 : vector<4x32xf32> to vector<1x1x4x32xf32>
    tpu.vector_store %arg17[%c0_87, %c0_88, %c0_89, %c0_90], %189 {strides = array<i32>} : memref<1x4x8x32xf32, #tpu.memory_space<vmem>>, vector<1x1x4x32xf32>,
    %190 = vector.extract_strided_slice %185 {offsets = [4, 0], sizes = [4, 32], strides = [1, 1]} : vector<32x32xf32> to vector<4x32xf32>
    %c0_91 = arith.constant 0 : index
    %c1_92 = arith.constant 1 : index
    %c0_93 = arith.constant 0 : index
    %c0_94 = arith.constant 0 : index
    %191 = vector.load %arg17[%c0_91, %c1_92, %c0_93, %c0_94] : memref<1x4x8x32xf32, #tpu.memory_space<vmem>>, vector<1x1x4x32xf32>
    %192 = vector.shape_cast %191 : vector<1x1x4x32xf32> to vector<4x32xf32>
    %193 = vector.shape_cast %190 : vector<4x32xf32> to vector<1x1x4x32xf32>
    tpu.vector_store %arg17[%c0_91, %c1_92, %c0_93, %c0_94], %193 {strides = array<i32>} : memref<1x4x8x32xf32, #tpu.memory_space<vmem>>, vector<1x1x4x32xf32>,
    %194 = vector.extract_strided_slice %185 {offsets = [8, 0], sizes = [4, 32], strides = [1, 1]} : vector<32x32xf32> to vector<4x32xf32>
    %c0_95 = arith.constant 0 : index
    %c2_96 = arith.constant 2 : index
    %c0_97 = arith.constant 0 : index
    %c0_98 = arith.constant 0 : index
    %195 = vector.load %arg17[%c0_95, %c2_96, %c0_97, %c0_98] : memref<1x4x8x32xf32, #tpu.memory_space<vmem>>, vector<1x1x4x32xf32>
    %196 = vector.shape_cast %195 : vector<1x1x4x32xf32> to vector<4x32xf32>
    %197 = vector.shape_cast %194 : vector<4x32xf32> to vector<1x1x4x32xf32>
    tpu.vector_store %arg17[%c0_95, %c2_96, %c0_97, %c0_98], %197 {strides = array<i32>} : memref<1x4x8x32xf32, #tpu.memory_space<vmem>>, vector<1x1x4x32xf32>,
    %198 = vector.extract_strided_slice %185 {offsets = [12, 0], sizes = [4, 32], strides = [1, 1]} : vector<32x32xf32> to vector<4x32xf32>
    %c0_99 = arith.constant 0 : index
    %c3_100 = arith.constant 3 : index
    %c0_101 = arith.constant 0 : index
    %c0_102 = arith.constant 0 : index
    %199 = vector.load %arg17[%c0_99, %c3_100, %c0_101, %c0_102] : memref<1x4x8x32xf32, #tpu.memory_space<vmem>>, vector<1x1x4x32xf32>
    %200 = vector.shape_cast %199 : vector<1x1x4x32xf32> to vector<4x32xf32>
    %201 = vector.shape_cast %198 : vector<4x32xf32> to vector<1x1x4x32xf32>
    tpu.vector_store %arg17[%c0_99, %c3_100, %c0_101, %c0_102], %201 {strides = array<i32>} : memref<1x4x8x32xf32, #tpu.memory_space<vmem>>, vector<1x1x4x32xf32>,
    %202 = vector.extract_strided_slice %185 {offsets = [16, 0], sizes = [4, 32], strides = [1, 1]} : vector<32x32xf32> to vector<4x32xf32>
    %c0_103 = arith.constant 0 : index
    %c0_104 = arith.constant 0 : index
    %c4_105 = arith.constant 4 : index
    %c0_106 = arith.constant 0 : index
    %203 = vector.load %arg17[%c0_103, %c0_104, %c4_105, %c0_106] : memref<1x4x8x32xf32, #tpu.memory_space<vmem>>, vector<1x1x4x32xf32>
    %204 = vector.shape_cast %203 : vector<1x1x4x32xf32> to vector<4x32xf32>
    %205 = vector.shape_cast %202 : vector<4x32xf32> to vector<1x1x4x32xf32>
    tpu.vector_store %arg17[%c0_103, %c0_104, %c4_105, %c0_106], %205 {strides = array<i32>} : memref<1x4x8x32xf32, #tpu.memory_space<vmem>>, vector<1x1x4x32xf32>,
    %206 = vector.extract_strided_slice %185 {offsets = [20, 0], sizes = [4, 32], strides = [1, 1]} : vector<32x32xf32> to vector<4x32xf32>
    %c0_107 = arith.constant 0 : index
    %c1_108 = arith.constant 1 : index
    %c4_109 = arith.constant 4 : index
    %c0_110 = arith.constant 0 : index
    %207 = vector.load %arg17[%c0_107, %c1_108, %c4_109, %c0_110] : memref<1x4x8x32xf32, #tpu.memory_space<vmem>>, vector<1x1x4x32xf32>
    %208 = vector.shape_cast %207 : vector<1x1x4x32xf32> to vector<4x32xf32>
    %209 = vector.shape_cast %206 : vector<4x32xf32> to vector<1x1x4x32xf32>
    tpu.vector_store %arg17[%c0_107, %c1_108, %c4_109, %c0_110], %209 {strides = array<i32>} : memref<1x4x8x32xf32, #tpu.memory_space<vmem>>, vector<1x1x4x32xf32>,
    %210 = vector.extract_strided_slice %185 {offsets = [24, 0], sizes = [4, 32], strides = [1, 1]} : vector<32x32xf32> to vector<4x32xf32>
    %c0_111 = arith.constant 0 : index
    %c2_112 = arith.constant 2 : index
    %c4_113 = arith.constant 4 : index
    %c0_114 = arith.constant 0 : index
    %211 = vector.load %arg17[%c0_111, %c2_112, %c4_113, %c0_114] : memref<1x4x8x32xf32, #tpu.memory_space<vmem>>, vector<1x1x4x32xf32>
    %212 = vector.shape_cast %211 : vector<1x1x4x32xf32> to vector<4x32xf32>
    %213 = vector.shape_cast %210 : vector<4x32xf32> to vector<1x1x4x32xf32>
    tpu.vector_store %arg17[%c0_111, %c2_112, %c4_113, %c0_114], %213 {strides = array<i32>} : memref<1x4x8x32xf32, #tpu.memory_space<vmem>>, vector<1x1x4x32xf32>,
    %214 = vector.extract_strided_slice %185 {offsets = [28, 0], sizes = [4, 32], strides = [1, 1]} : vector<32x32xf32> to vector<4x32xf32>
    %c0_115 = arith.constant 0 : index
    %c3_116 = arith.constant 3 : index
    %c4_117 = arith.constant 4 : index
    %c0_118 = arith.constant 0 : index
    %215 = vector.load %arg17[%c0_115, %c3_116, %c4_117, %c0_118] : memref<1x4x8x32xf32, #tpu.memory_space<vmem>>, vector<1x1x4x32xf32>
    %216 = vector.shape_cast %215 : vector<1x1x4x32xf32> to vector<4x32xf32>
    %217 = vector.shape_cast %214 : vector<4x32xf32> to vector<1x1x4x32xf32>
    tpu.vector_store %arg17[%c0_115, %c3_116, %c4_117, %c0_118], %217 {strides = array<i32>} : memref<1x4x8x32xf32, #tpu.memory_space<vmem>>, vector<1x1x4x32xf32>,
    return
  }
  func.func @transform_0(%arg0: i32, %arg1: i32, %arg2: i32) -> (i32, i32, i32, i32) {
    %c0_i32 = arith.constant 0 : i32
    %c0_i32_0 = arith.constant 0 : i32
    return %arg0, %arg1, %arg2, %c0_i32 : i32, i32, i32, i32
  }
  func.func @transform_1(%arg0: i32, %arg1: i32, %arg2: i32) -> (i32, i32, i32) {
    %c0_i32 = arith.constant 0 : i32
    %c0_i32_0 = arith.constant 0 : i32
    %c0_i32_1 = arith.constant 0 : i32
    %c0_i32_2 = arith.constant 0 : i32
    return %c0_i32, %c0_i32_0, %c0_i32_1 : i32, i32, i32
  }
  func.func @transform_2(%arg0: i32, %arg1: i32, %arg2: i32) -> (i32, i32) {
    %c0_i32 = arith.constant 0 : i32
    %c0_i32_0 = arith.constant 0 : i32
    %c0_i32_1 = arith.constant 0 : i32
    return %c0_i32, %c0_i32_0 : i32, i32
  }
  func.func @transform_3(%arg0: i32, %arg1: i32, %arg2: i32) -> (i32, i32) {
    %c0_i32 = arith.constant 0 : i32
    %c0_i32_0 = arith.constant 0 : i32
    %c0_i32_1 = arith.constant 0 : i32
    return %c0_i32, %c0_i32_0 : i32, i32
  }
  func.func @transform_4(%arg0: i32, %arg1: i32, %arg2: i32) -> (i32, i32) {
    %c0_i32 = arith.constant 0 : i32
    %c0_i32_0 = arith.constant 0 : i32
    %c0_i32_1 = arith.constant 0 : i32
    return %c0_i32, %c0_i32_0 : i32, i32
  }
  func.func @transform_5(%arg0: i32, %arg1: i32, %arg2: i32) -> (i32, i32) {
    %c0_i32 = arith.constant 0 : i32
    %c0_i32_0 = arith.constant 0 : i32
    %c0_i32_1 = arith.constant 0 : i32
    return %c0_i32, %c0_i32_0 : i32, i32
  }
  func.func @transform_6(%arg0: i32, %arg1: i32, %arg2: i32) -> (i32, i32) {
    %c0_i32 = arith.constant 0 : i32
    %c0_i32_0 = arith.constant 0 : i32
    %c0_i32_1 = arith.constant 0 : i32
    return %c0_i32, %c0_i32_0 : i32, i32
  }
  func.func @transform_7(%arg0: i32, %arg1: i32, %arg2: i32) -> (i32, i32) {
    %c0_i32 = arith.constant 0 : i32
    %c0_i32_0 = arith.constant 0 : i32
    %c0_i32_1 = arith.constant 0 : i32
    return %c0_i32, %c0_i32_0 : i32, i32
  }
  func.func @transform_8(%arg0: i32, %arg1: i32, %arg2: i32) -> (i32, i32) {
    %c0_i32 = arith.constant 0 : i32
    %c0_i32_0 = arith.constant 0 : i32
    %c0_i32_1 = arith.constant 0 : i32
    return %c0_i32, %c0_i32_0 : i32, i32
  }
  func.func @transform_9(%arg0: i32, %arg1: i32, %arg2: i32) -> (i32, i32) {
    %c0_i32 = arith.constant 0 : i32
    %c0_i32_0 = arith.constant 0 : i32
    %c0_i32_1 = arith.constant 0 : i32
    return %c0_i32, %c0_i32_0 : i32, i32
  }
  func.func @transform_10(%arg0: i32, %arg1: i32, %arg2: i32) -> (i32, i32) {
    %c0_i32 = arith.constant 0 : i32
    %c0_i32_0 = arith.constant 0 : i32
    %c0_i32_1 = arith.constant 0 : i32
    return %c0_i32, %c0_i32_0 : i32, i32
  }
  func.func @transform_11(%arg0: i32, %arg1: i32, %arg2: i32) -> (i32, i32) {
    %c0_i32 = arith.constant 0 : i32
    %c0_i32_0 = arith.constant 0 : i32
    %c0_i32_1 = arith.constant 0 : i32
    return %c0_i32, %c0_i32_0 : i32, i32
  }
  func.func @transform_12(%arg0: i32, %arg1: i32, %arg2: i32) -> (i32, i32) {
    %c0_i32 = arith.constant 0 : i32
    %c0_i32_0 = arith.constant 0 : i32
    %c0_i32_1 = arith.constant 0 : i32
    return %c0_i32, %c0_i32_0 : i32, i32
  }
  func.func @transform_13(%arg0: i32, %arg1: i32, %arg2: i32) -> (i32, i32) {
    %c0_i32 = arith.constant 0 : i32
    %c0_i32_0 = arith.constant 0 : i32
    %c0_i32_1 = arith.constant 0 : i32
    return %c0_i32, %c0_i32_0 : i32, i32
  }
  func.func @transform_14(%arg0: i32, %arg1: i32, %arg2: i32) -> (i32, i32, i32, i32) {
    %c0_i32 = arith.constant 0 : i32
    %c0_i32_0 = arith.constant 0 : i32
    return %arg0, %arg1, %arg2, %c0_i32 : i32, i32, i32, i32
  }
}

module attributes {stable_mosaic.version = 11 : i64} {
  func.func @_swin_block_kernel(%arg0: i32, %arg1: i32, %arg2: i32, %arg3: memref<1x4x8x32xf32, #tpu.memory_space<vmem>>, %arg4: memref<1x2x16x16xf32, #tpu.memory_space<vmem>>, %arg5: memref<4x16x16xf32, #tpu.memory_space<vmem>>, %arg6: memref<1x32xf32, #tpu.memory_space<vmem>>, %arg7: memref<1x32xf32, #tpu.memory_space<vmem>>, %arg8: memref<32x96xbf16, #tpu.memory_space<vmem>>, %arg9: memref<1x96xf32, #tpu.memory_space<vmem>>, %arg10: memref<32x32xbf16, #tpu.memory_space<vmem>>, %arg11: memref<1x32xf32, #tpu.memory_space<vmem>>, %arg12: memref<1x32xf32, #tpu.memory_space<vmem>>, %arg13: memref<1x32xf32, #tpu.memory_space<vmem>>, %arg14: memref<32x128xbf16, #tpu.memory_space<vmem>>, %arg15: memref<1x128xf32, #tpu.memory_space<vmem>>, %arg16: memref<128x32xbf16, #tpu.memory_space<vmem>>, %arg17: memref<1x32xf32, #tpu.memory_space<vmem>>, %arg18: memref<1x4x8x32xf32, #tpu.memory_space<vmem>>, %arg19: memref<32x32xf32, #tpu.memory_space<vmem>>) attributes {dimension_semantics = [#tpu.dimension_semantics<parallel>, #tpu.dimension_semantics<parallel>, #tpu.dimension_semantics<parallel>], iteration_bounds = array<i64: 2, 2, 1>, scalar_prefetch = 0 : i64, scratch_operands = 1 : i64, tpu.core_type = #tpu.core_type<tc>, window_params = [{transform_indices = @transform_0, window_bounds = array<i64: 1, 4, 8, 32>}, {transform_indices = @transform_1, window_bounds = array<i64: 1, 2, 16, 16>}, {pipeline_mode = #tpu.pipeline_mode<synchronous>, transform_indices = @transform_2, window_bounds = array<i64: 4, 16, 16>}, {pipeline_mode = #tpu.pipeline_mode<synchronous>, transform_indices = @transform_3, window_bounds = array<i64: 1, 32>}, {pipeline_mode = #tpu.pipeline_mode<synchronous>, transform_indices = @transform_4, window_bounds = array<i64: 1, 32>}, {pipeline_mode = #tpu.pipeline_mode<synchronous>, transform_indices = @transform_5, window_bounds = array<i64: 32, 96>}, {pipeline_mode = #tpu.pipeline_mode<synchronous>, transform_indices = @transform_6, window_bounds = array<i64: 1, 96>}, {pipeline_mode = #tpu.pipeline_mode<synchronous>, transform_indices = @transform_7, window_bounds = array<i64: 32, 32>}, {pipeline_mode = #tpu.pipeline_mode<synchronous>, transform_indices = @transform_8, window_bounds = array<i64: 1, 32>}, {pipeline_mode = #tpu.pipeline_mode<synchronous>, transform_indices = @transform_9, window_bounds = array<i64: 1, 32>}, {pipeline_mode = #tpu.pipeline_mode<synchronous>, transform_indices = @transform_10, window_bounds = array<i64: 1, 32>}, {pipeline_mode = #tpu.pipeline_mode<synchronous>, transform_indices = @transform_11, window_bounds = array<i64: 32, 128>}, {pipeline_mode = #tpu.pipeline_mode<synchronous>, transform_indices = @transform_12, window_bounds = array<i64: 1, 128>}, {pipeline_mode = #tpu.pipeline_mode<synchronous>, transform_indices = @transform_13, window_bounds = array<i64: 128, 32>}, {pipeline_mode = #tpu.pipeline_mode<synchronous>, transform_indices = @transform_14, window_bounds = array<i64: 1, 32>}, {transform_indices = @transform_15, window_bounds = array<i64: 1, 4, 8, 32>}]} {
    %c0 = arith.constant 0 : index
    %c0_0 = arith.constant 0 : index
    %c0_1 = arith.constant 0 : index
    %c0_2 = arith.constant 0 : index
    %0 = vector.load %arg3[%c0, %c0_0, %c0_1, %c0_2] : memref<1x4x8x32xf32, #tpu.memory_space<vmem>>, vector<1x1x4x32xf32>
    %1 = vector.shape_cast %0 : vector<1x1x4x32xf32> to vector<4x32xf32>
    %c0_3 = arith.constant 0 : index
    %c0_4 = arith.constant 0 : index
    %2 = vector.load %arg19[%c0_3, %c0_4] : memref<32x32xf32, #tpu.memory_space<vmem>>, vector<4x32xf32>
    tpu.vector_store %arg19[%c0_3, %c0_4], %1 {strides = array<i32>} : memref<32x32xf32, #tpu.memory_space<vmem>>, vector<4x32xf32>,
    %c0_5 = arith.constant 0 : index
    %c1 = arith.constant 1 : index
    %c0_6 = arith.constant 0 : index
    %c0_7 = arith.constant 0 : index
    %3 = vector.load %arg3[%c0_5, %c1, %c0_6, %c0_7] : memref<1x4x8x32xf32, #tpu.memory_space<vmem>>, vector<1x1x4x32xf32>
    %4 = vector.shape_cast %3 : vector<1x1x4x32xf32> to vector<4x32xf32>
    %c4 = arith.constant 4 : index
    %c0_8 = arith.constant 0 : index
    %5 = vector.load %arg19[%c4, %c0_8] : memref<32x32xf32, #tpu.memory_space<vmem>>, vector<4x32xf32>
    tpu.vector_store %arg19[%c4, %c0_8], %4 {strides = array<i32>} : memref<32x32xf32, #tpu.memory_space<vmem>>, vector<4x32xf32>,
    %c0_9 = arith.constant 0 : index
    %c2 = arith.constant 2 : index
    %c0_10 = arith.constant 0 : index
    %c0_11 = arith.constant 0 : index
    %6 = vector.load %arg3[%c0_9, %c2, %c0_10, %c0_11] : memref<1x4x8x32xf32, #tpu.memory_space<vmem>>, vector<1x1x4x32xf32>
    %7 = vector.shape_cast %6 : vector<1x1x4x32xf32> to vector<4x32xf32>
    %c8 = arith.constant 8 : index
    %c0_12 = arith.constant 0 : index
    %8 = vector.load %arg19[%c8, %c0_12] : memref<32x32xf32, #tpu.memory_space<vmem>>, vector<4x32xf32>
    tpu.vector_store %arg19[%c8, %c0_12], %7 {strides = array<i32>} : memref<32x32xf32, #tpu.memory_space<vmem>>, vector<4x32xf32>,
    %c0_13 = arith.constant 0 : index
    %c3 = arith.constant 3 : index
    %c0_14 = arith.constant 0 : index
    %c0_15 = arith.constant 0 : index
    %9 = vector.load %arg3[%c0_13, %c3, %c0_14, %c0_15] : memref<1x4x8x32xf32, #tpu.memory_space<vmem>>, vector<1x1x4x32xf32>
    %10 = vector.shape_cast %9 : vector<1x1x4x32xf32> to vector<4x32xf32>
    %c12 = arith.constant 12 : index
    %c0_16 = arith.constant 0 : index
    %11 = vector.load %arg19[%c12, %c0_16] : memref<32x32xf32, #tpu.memory_space<vmem>>, vector<4x32xf32>
    tpu.vector_store %arg19[%c12, %c0_16], %10 {strides = array<i32>} : memref<32x32xf32, #tpu.memory_space<vmem>>, vector<4x32xf32>,
    %c0_17 = arith.constant 0 : index
    %c0_18 = arith.constant 0 : index
    %c4_19 = arith.constant 4 : index
    %c0_20 = arith.constant 0 : index
    %12 = vector.load %arg3[%c0_17, %c0_18, %c4_19, %c0_20] : memref<1x4x8x32xf32, #tpu.memory_space<vmem>>, vector<1x1x4x32xf32>
    %13 = vector.shape_cast %12 : vector<1x1x4x32xf32> to vector<4x32xf32>
    %c16 = arith.constant 16 : index
    %c0_21 = arith.constant 0 : index
    %14 = vector.load %arg19[%c16, %c0_21] : memref<32x32xf32, #tpu.memory_space<vmem>>, vector<4x32xf32>
    tpu.vector_store %arg19[%c16, %c0_21], %13 {strides = array<i32>} : memref<32x32xf32, #tpu.memory_space<vmem>>, vector<4x32xf32>,
    %c0_22 = arith.constant 0 : index
    %c1_23 = arith.constant 1 : index
    %c4_24 = arith.constant 4 : index
    %c0_25 = arith.constant 0 : index
    %15 = vector.load %arg3[%c0_22, %c1_23, %c4_24, %c0_25] : memref<1x4x8x32xf32, #tpu.memory_space<vmem>>, vector<1x1x4x32xf32>
    %16 = vector.shape_cast %15 : vector<1x1x4x32xf32> to vector<4x32xf32>
    %c20 = arith.constant 20 : index
    %c0_26 = arith.constant 0 : index
    %17 = vector.load %arg19[%c20, %c0_26] : memref<32x32xf32, #tpu.memory_space<vmem>>, vector<4x32xf32>
    tpu.vector_store %arg19[%c20, %c0_26], %16 {strides = array<i32>} : memref<32x32xf32, #tpu.memory_space<vmem>>, vector<4x32xf32>,
    %c0_27 = arith.constant 0 : index
    %c2_28 = arith.constant 2 : index
    %c4_29 = arith.constant 4 : index
    %c0_30 = arith.constant 0 : index
    %18 = vector.load %arg3[%c0_27, %c2_28, %c4_29, %c0_30] : memref<1x4x8x32xf32, #tpu.memory_space<vmem>>, vector<1x1x4x32xf32>
    %19 = vector.shape_cast %18 : vector<1x1x4x32xf32> to vector<4x32xf32>
    %c24 = arith.constant 24 : index
    %c0_31 = arith.constant 0 : index
    %20 = vector.load %arg19[%c24, %c0_31] : memref<32x32xf32, #tpu.memory_space<vmem>>, vector<4x32xf32>
    tpu.vector_store %arg19[%c24, %c0_31], %19 {strides = array<i32>} : memref<32x32xf32, #tpu.memory_space<vmem>>, vector<4x32xf32>,
    %c0_32 = arith.constant 0 : index
    %c3_33 = arith.constant 3 : index
    %c4_34 = arith.constant 4 : index
    %c0_35 = arith.constant 0 : index
    %21 = vector.load %arg3[%c0_32, %c3_33, %c4_34, %c0_35] : memref<1x4x8x32xf32, #tpu.memory_space<vmem>>, vector<1x1x4x32xf32>
    %22 = vector.shape_cast %21 : vector<1x1x4x32xf32> to vector<4x32xf32>
    %c28 = arith.constant 28 : index
    %c0_36 = arith.constant 0 : index
    %23 = vector.load %arg19[%c28, %c0_36] : memref<32x32xf32, #tpu.memory_space<vmem>>, vector<4x32xf32>
    tpu.vector_store %arg19[%c28, %c0_36], %22 {strides = array<i32>} : memref<32x32xf32, #tpu.memory_space<vmem>>, vector<4x32xf32>,
    %c0_37 = arith.constant 0 : index
    %c0_38 = arith.constant 0 : index
    %24 = vector.load %arg19[%c0_37, %c0_38] : memref<32x32xf32, #tpu.memory_space<vmem>>, vector<32x32xf32>
    %cst = arith.constant dense<0.000000e+00> : vector<32xf32>
    %25 = vector.multi_reduction <add>, %24, %cst [1] : vector<32x32xf32> to vector<32xf32>
    %26 = vector.shape_cast %25 : vector<32xf32> to vector<32x1xf32>
    %cst_39 = arith.constant 3.200000e+01 : f32
    %27 = vector.broadcast %cst_39 : f32 to vector<32x1xf32>
    %28 = arith.divf %26, %27 : vector<32x1xf32>
    %29 = vector.broadcast %28 : vector<32x1xf32> to vector<32x32xf32>
    %30 = arith.subf %24, %29 : vector<32x32xf32>
    %31 = arith.mulf %30, %30 : vector<32x32xf32>
    %cst_40 = arith.constant dense<0.000000e+00> : vector<32xf32>
    %32 = vector.multi_reduction <add>, %31, %cst_40 [1] : vector<32x32xf32> to vector<32xf32>
    %33 = vector.shape_cast %32 : vector<32xf32> to vector<32x1xf32>
    %cst_41 = arith.constant 3.200000e+01 : f32
    %34 = vector.broadcast %cst_41 : f32 to vector<32x1xf32>
    %35 = arith.divf %33, %34 : vector<32x1xf32>
    %36 = vector.broadcast %28 : vector<32x1xf32> to vector<32x32xf32>
    %37 = arith.subf %24, %36 : vector<32x32xf32>
    %cst_42 = arith.constant 9.99999974E-6 : f32
    %38 = vector.broadcast %cst_42 : f32 to vector<32x1xf32>
    %39 = arith.addf %35, %38 : vector<32x1xf32>
    %40 = math.rsqrt %39 : vector<32x1xf32>
    %41 = vector.broadcast %40 : vector<32x1xf32> to vector<32x32xf32>
    %42 = arith.mulf %37, %41 : vector<32x32xf32>
    %c0_43 = arith.constant 0 : index
    %c0_44 = arith.constant 0 : index
    %43 = vector.load %arg6[%c0_43, %c0_44] : memref<1x32xf32, #tpu.memory_space<vmem>>, vector<1x32xf32>
    %44 = vector.broadcast %43 : vector<1x32xf32> to vector<32x32xf32>
    %45 = arith.mulf %42, %44 : vector<32x32xf32>
    %c0_45 = arith.constant 0 : index
    %c0_46 = arith.constant 0 : index
    %46 = vector.load %arg7[%c0_45, %c0_46] : memref<1x32xf32, #tpu.memory_space<vmem>>, vector<1x32xf32>
    %47 = vector.broadcast %46 : vector<1x32xf32> to vector<32x32xf32>
    %48 = arith.addf %45, %47 : vector<32x32xf32>
    %49 = arith.truncf %48 : vector<32x32xf32> to vector<32x32xbf16>
    %c0_47 = arith.constant 0 : index
    %c0_48 = arith.constant 0 : index
    %50 = vector.load %arg8[%c0_47, %c0_48] : memref<32x96xbf16, #tpu.memory_space<vmem>>, vector<32x96xbf16>
    %cst_49 = arith.constant dense<0.000000e+00> : vector<32x96xf32>
    %51 = tpu.matmul %49, %50, %cst_49 {dimension_numbers = #tpu.dot_dimension_numbers<[1], [0], [0], [1], [0, 0, 1, 1], [], []>} : vector<32x32xbf16>, vector<32x96xbf16>, vector<32x96xf32> -> vector<32x96xf32>
    %c0_50 = arith.constant 0 : index
    %c0_51 = arith.constant 0 : index
    %52 = vector.load %arg9[%c0_50, %c0_51] : memref<1x96xf32, #tpu.memory_space<vmem>>, vector<1x96xf32>
    %53 = vector.broadcast %52 : vector<1x96xf32> to vector<32x96xf32>
    %54 = arith.addf %51, %53 : vector<32x96xf32>
    %55 = vector.extract_strided_slice %54 {offsets = [0, 0], sizes = [32, 32], strides = [1, 1]} : vector<32x96xf32> to vector<32x32xf32>
    %cst_52 = arith.constant 0.353553385 : f32
    %56 = vector.broadcast %cst_52 : f32 to vector<32x32xf32>
    %57 = arith.mulf %55, %56 : vector<32x32xf32>
    %58 = vector.extract_strided_slice %57 {offsets = [0, 0], sizes = [32, 8], strides = [1, 1]} : vector<32x32xf32> to vector<32x8xf32>
    %59 = vector.shape_cast %58 : vector<32x8xf32> to vector<2x16x8xf32>
    %60 = vector.extract_strided_slice %57 {offsets = [0, 8], sizes = [32, 8], strides = [1, 1]} : vector<32x32xf32> to vector<32x8xf32>
    %61 = vector.shape_cast %60 : vector<32x8xf32> to vector<2x16x8xf32>
    %62 = vector.extract_strided_slice %57 {offsets = [0, 16], sizes = [32, 8], strides = [1, 1]} : vector<32x32xf32> to vector<32x8xf32>
    %63 = vector.shape_cast %62 : vector<32x8xf32> to vector<2x16x8xf32>
    %64 = vector.extract_strided_slice %57 {offsets = [0, 24], sizes = [32, 8], strides = [1, 1]} : vector<32x32xf32> to vector<32x8xf32>
    %65 = vector.shape_cast %64 : vector<32x8xf32> to vector<2x16x8xf32>
    %66 = vector.shape_cast %59 : vector<2x16x8xf32> to vector<1x2x16x8xf32>
    %67 = vector.shape_cast %61 : vector<2x16x8xf32> to vector<1x2x16x8xf32>
    %68 = vector.shape_cast %63 : vector<2x16x8xf32> to vector<1x2x16x8xf32>
    %69 = vector.shape_cast %65 : vector<2x16x8xf32> to vector<1x2x16x8xf32>
    %70 = tpu.concatenate %66, %67, %68, %69 in 0 : vector<1x2x16x8xf32>, vector<1x2x16x8xf32>, vector<1x2x16x8xf32>, vector<1x2x16x8xf32> -> vector<4x2x16x8xf32>
    %71 = vector.shape_cast %70 : vector<4x2x16x8xf32> to vector<8x16x8xf32>
    %72 = arith.truncf %71 : vector<8x16x8xf32> to vector<8x16x8xbf16>
    %73 = vector.extract_strided_slice %54 {offsets = [0, 32], sizes = [32, 32], strides = [1, 1]} : vector<32x96xf32> to vector<32x32xf32>
    %74 = vector.extract_strided_slice %73 {offsets = [0, 0], sizes = [32, 8], strides = [1, 1]} : vector<32x32xf32> to vector<32x8xf32>
    %75 = vector.shape_cast %74 : vector<32x8xf32> to vector<2x16x8xf32>
    %76 = vector.extract_strided_slice %73 {offsets = [0, 8], sizes = [32, 8], strides = [1, 1]} : vector<32x32xf32> to vector<32x8xf32>
    %77 = vector.shape_cast %76 : vector<32x8xf32> to vector<2x16x8xf32>
    %78 = vector.extract_strided_slice %73 {offsets = [0, 16], sizes = [32, 8], strides = [1, 1]} : vector<32x32xf32> to vector<32x8xf32>
    %79 = vector.shape_cast %78 : vector<32x8xf32> to vector<2x16x8xf32>
    %80 = vector.extract_strided_slice %73 {offsets = [0, 24], sizes = [32, 8], strides = [1, 1]} : vector<32x32xf32> to vector<32x8xf32>
    %81 = vector.shape_cast %80 : vector<32x8xf32> to vector<2x16x8xf32>
    %82 = vector.shape_cast %75 : vector<2x16x8xf32> to vector<1x2x16x8xf32>
    %83 = vector.shape_cast %77 : vector<2x16x8xf32> to vector<1x2x16x8xf32>
    %84 = vector.shape_cast %79 : vector<2x16x8xf32> to vector<1x2x16x8xf32>
    %85 = vector.shape_cast %81 : vector<2x16x8xf32> to vector<1x2x16x8xf32>
    %86 = tpu.concatenate %82, %83, %84, %85 in 0 : vector<1x2x16x8xf32>, vector<1x2x16x8xf32>, vector<1x2x16x8xf32>, vector<1x2x16x8xf32> -> vector<4x2x16x8xf32>
    %87 = vector.shape_cast %86 : vector<4x2x16x8xf32> to vector<8x16x8xf32>
    %88 = arith.truncf %87 : vector<8x16x8xf32> to vector<8x16x8xbf16>
    %89 = vector.extract_strided_slice %54 {offsets = [0, 64], sizes = [32, 32], strides = [1, 1]} : vector<32x96xf32> to vector<32x32xf32>
    %90 = vector.extract_strided_slice %89 {offsets = [0, 0], sizes = [32, 8], strides = [1, 1]} : vector<32x32xf32> to vector<32x8xf32>
    %91 = vector.shape_cast %90 : vector<32x8xf32> to vector<2x16x8xf32>
    %92 = vector.extract_strided_slice %89 {offsets = [0, 8], sizes = [32, 8], strides = [1, 1]} : vector<32x32xf32> to vector<32x8xf32>
    %93 = vector.shape_cast %92 : vector<32x8xf32> to vector<2x16x8xf32>
    %94 = vector.extract_strided_slice %89 {offsets = [0, 16], sizes = [32, 8], strides = [1, 1]} : vector<32x32xf32> to vector<32x8xf32>
    %95 = vector.shape_cast %94 : vector<32x8xf32> to vector<2x16x8xf32>
    %96 = vector.extract_strided_slice %89 {offsets = [0, 24], sizes = [32, 8], strides = [1, 1]} : vector<32x32xf32> to vector<32x8xf32>
    %97 = vector.shape_cast %96 : vector<32x8xf32> to vector<2x16x8xf32>
    %98 = vector.shape_cast %91 : vector<2x16x8xf32> to vector<1x2x16x8xf32>
    %99 = vector.shape_cast %93 : vector<2x16x8xf32> to vector<1x2x16x8xf32>
    %100 = vector.shape_cast %95 : vector<2x16x8xf32> to vector<1x2x16x8xf32>
    %101 = vector.shape_cast %97 : vector<2x16x8xf32> to vector<1x2x16x8xf32>
    %102 = tpu.concatenate %98, %99, %100, %101 in 0 : vector<1x2x16x8xf32>, vector<1x2x16x8xf32>, vector<1x2x16x8xf32>, vector<1x2x16x8xf32> -> vector<4x2x16x8xf32>
    %103 = vector.shape_cast %102 : vector<4x2x16x8xf32> to vector<8x16x8xf32>
    %104 = arith.truncf %103 : vector<8x16x8xf32> to vector<8x16x8xbf16>
    "tpu.trace_start"() <{level = 10 : i32, message = "bnd,bmd->bnm"}> : () -> ()
    %cst_53 = arith.constant dense<0.000000e+00> : vector<8x16x16xf32>
    %105 = tpu.matmul %72, %88, %cst_53 {dimension_numbers = #tpu.dot_dimension_numbers<[2], [2], [1], [1], [0, 0, 0, 1, 1, 1], [0], [0]>} : vector<8x16x8xbf16>, vector<8x16x8xbf16>, vector<8x16x16xf32> -> vector<8x16x16xf32>
    "tpu.trace_stop"() : () -> ()
    %106 = vector.shape_cast %105 : vector<8x16x16xf32> to vector<4x2x16x16xf32>
    %c0_54 = arith.constant 0 : index
    %c0_55 = arith.constant 0 : index
    %c0_56 = arith.constant 0 : index
    %107 = vector.load %arg5[%c0_54, %c0_55, %c0_56] : memref<4x16x16xf32, #tpu.memory_space<vmem>>, vector<4x16x16xf32>
    %108 = vector.shape_cast %107 : vector<4x16x16xf32> to vector<4x1x16x16xf32>
    %109 = vector.broadcast %108 : vector<4x1x16x16xf32> to vector<4x2x16x16xf32>
    %110 = arith.addf %106, %109 : vector<4x2x16x16xf32>
    %c0_57 = arith.constant 0 : index
    %c0_58 = arith.constant 0 : index
    %c0_59 = arith.constant 0 : index
    %c0_60 = arith.constant 0 : index
    %111 = vector.load %arg4[%c0_57, %c0_58, %c0_59, %c0_60] : memref<1x2x16x16xf32, #tpu.memory_space<vmem>>, vector<1x2x16x16xf32>
    %112 = vector.shape_cast %111 : vector<1x2x16x16xf32> to vector<2x16x16xf32>
    %113 = vector.shape_cast %112 : vector<2x16x16xf32> to vector<1x2x16x16xf32>
    %114 = vector.broadcast %113 : vector<1x2x16x16xf32> to vector<4x2x16x16xf32>
    %115 = arith.addf %110, %114 : vector<4x2x16x16xf32>
    %116 = vector.shape_cast %115 : vector<4x2x16x16xf32> to vector<8x16x16xf32>
    %cst_61 = arith.constant dense<0xFF800000> : vector<8x16xf32>
    %117 = vector.multi_reduction <maximumf>, %116, %cst_61 [2] : vector<8x16x16xf32> to vector<8x16xf32>
    %118 = vector.shape_cast %117 : vector<8x16xf32> to vector<8x16x1xf32>
    %119 = vector.broadcast %118 : vector<8x16x1xf32> to vector<8x16x16xf32>
    %120 = arith.subf %116, %119 : vector<8x16x16xf32>
    %121 = math.exp %120 : vector<8x16x16xf32>
    %cst_62 = arith.constant dense<0.000000e+00> : vector<8x16xf32>
    %122 = vector.multi_reduction <add>, %121, %cst_62 [2] : vector<8x16x16xf32> to vector<8x16xf32>
    %123 = vector.shape_cast %122 : vector<8x16xf32> to vector<8x16x1xf32>
    %124 = tpu.reciprocal %123 {approx = true} : vector<8x16x1xf32> -> vector<8x16x1xf32>
    %125 = vector.broadcast %124 : vector<8x16x1xf32> to vector<8x16x16xf32>
    %126 = arith.mulf %121, %125 : vector<8x16x16xf32>
    %127 = arith.truncf %126 : vector<8x16x16xf32> to vector<8x16x16xbf16>
    "tpu.trace_start"() <{level = 10 : i32, message = "bnm,bmd->bnd"}> : () -> ()
    %cst_63 = arith.constant dense<0.000000e+00> : vector<8x16x8xf32>
    %128 = tpu.matmul %127, %104, %cst_63 {dimension_numbers = #tpu.dot_dimension_numbers<[2], [1], [1], [2], [0, 0, 0, 1, 1, 2], [0], [0]>} : vector<8x16x16xbf16>, vector<8x16x8xbf16>, vector<8x16x8xf32> -> vector<8x16x8xf32>
    "tpu.trace_stop"() : () -> ()
    %129 = vector.shape_cast %128 : vector<8x16x8xf32> to vector<4x32x8xf32>
    %130 = vector.extract_strided_slice %129 {offsets = [0, 0, 0], sizes = [1, 32, 8], strides = [1, 1, 1]} : vector<4x32x8xf32> to vector<1x32x8xf32>
    %131 = vector.shape_cast %130 : vector<1x32x8xf32> to vector<32x8xf32>
    %132 = vector.extract_strided_slice %129 {offsets = [1, 0, 0], sizes = [1, 32, 8], strides = [1, 1, 1]} : vector<4x32x8xf32> to vector<1x32x8xf32>
    %133 = vector.shape_cast %132 : vector<1x32x8xf32> to vector<32x8xf32>
    %134 = vector.extract_strided_slice %129 {offsets = [2, 0, 0], sizes = [1, 32, 8], strides = [1, 1, 1]} : vector<4x32x8xf32> to vector<1x32x8xf32>
    %135 = vector.shape_cast %134 : vector<1x32x8xf32> to vector<32x8xf32>
    %136 = vector.extract_strided_slice %129 {offsets = [3, 0, 0], sizes = [1, 32, 8], strides = [1, 1, 1]} : vector<4x32x8xf32> to vector<1x32x8xf32>
    %137 = vector.shape_cast %136 : vector<1x32x8xf32> to vector<32x8xf32>
    %138 = tpu.concatenate %131, %133, %135, %137 in 1 : vector<32x8xf32>, vector<32x8xf32>, vector<32x8xf32>, vector<32x8xf32> -> vector<32x32xf32>
    %139 = arith.truncf %138 : vector<32x32xf32> to vector<32x32xbf16>
    %c0_64 = arith.constant 0 : index
    %c0_65 = arith.constant 0 : index
    %140 = vector.load %arg10[%c0_64, %c0_65] : memref<32x32xbf16, #tpu.memory_space<vmem>>, vector<32x32xbf16>
    %cst_66 = arith.constant dense<0.000000e+00> : vector<32x32xf32>
    %141 = tpu.matmul %139, %140, %cst_66 {dimension_numbers = #tpu.dot_dimension_numbers<[1], [0], [0], [1], [0, 0, 1, 1], [], []>} : vector<32x32xbf16>, vector<32x32xbf16>, vector<32x32xf32> -> vector<32x32xf32>
    %c0_67 = arith.constant 0 : index
    %c0_68 = arith.constant 0 : index
    %142 = vector.load %arg11[%c0_67, %c0_68] : memref<1x32xf32, #tpu.memory_space<vmem>>, vector<1x32xf32>
    %143 = vector.broadcast %142 : vector<1x32xf32> to vector<32x32xf32>
    %144 = arith.addf %141, %143 : vector<32x32xf32>
    %145 = arith.addf %24, %144 : vector<32x32xf32>
    %cst_69 = arith.constant dense<0.000000e+00> : vector<32xf32>
    %146 = vector.multi_reduction <add>, %145, %cst_69 [1] : vector<32x32xf32> to vector<32xf32>
    %147 = vector.shape_cast %146 : vector<32xf32> to vector<32x1xf32>
    %cst_70 = arith.constant 3.200000e+01 : f32
    %148 = vector.broadcast %cst_70 : f32 to vector<32x1xf32>
    %149 = arith.divf %147, %148 : vector<32x1xf32>
    %150 = vector.broadcast %149 : vector<32x1xf32> to vector<32x32xf32>
    %151 = arith.subf %145, %150 : vector<32x32xf32>
    %152 = arith.mulf %151, %151 : vector<32x32xf32>
    %cst_71 = arith.constant dense<0.000000e+00> : vector<32xf32>
    %153 = vector.multi_reduction <add>, %152, %cst_71 [1] : vector<32x32xf32> to vector<32xf32>
    %154 = vector.shape_cast %153 : vector<32xf32> to vector<32x1xf32>
    %cst_72 = arith.constant 3.200000e+01 : f32
    %155 = vector.broadcast %cst_72 : f32 to vector<32x1xf32>
    %156 = arith.divf %154, %155 : vector<32x1xf32>
    %157 = vector.broadcast %149 : vector<32x1xf32> to vector<32x32xf32>
    %158 = arith.subf %145, %157 : vector<32x32xf32>
    %cst_73 = arith.constant 9.99999974E-6 : f32
    %159 = vector.broadcast %cst_73 : f32 to vector<32x1xf32>
    %160 = arith.addf %156, %159 : vector<32x1xf32>
    %161 = math.rsqrt %160 : vector<32x1xf32>
    %162 = vector.broadcast %161 : vector<32x1xf32> to vector<32x32xf32>
    %163 = arith.mulf %158, %162 : vector<32x32xf32>
    %c0_74 = arith.constant 0 : index
    %c0_75 = arith.constant 0 : index
    %164 = vector.load %arg12[%c0_74, %c0_75] : memref<1x32xf32, #tpu.memory_space<vmem>>, vector<1x32xf32>
    %165 = vector.broadcast %164 : vector<1x32xf32> to vector<32x32xf32>
    %166 = arith.mulf %163, %165 : vector<32x32xf32>
    %c0_76 = arith.constant 0 : index
    %c0_77 = arith.constant 0 : index
    %167 = vector.load %arg13[%c0_76, %c0_77] : memref<1x32xf32, #tpu.memory_space<vmem>>, vector<1x32xf32>
    %168 = vector.broadcast %167 : vector<1x32xf32> to vector<32x32xf32>
    %169 = arith.addf %166, %168 : vector<32x32xf32>
    %170 = arith.truncf %169 : vector<32x32xf32> to vector<32x32xbf16>
    %c0_78 = arith.constant 0 : index
    %c0_79 = arith.constant 0 : index
    %171 = vector.load %arg14[%c0_78, %c0_79] : memref<32x128xbf16, #tpu.memory_space<vmem>>, vector<32x128xbf16>
    %cst_80 = arith.constant dense<0.000000e+00> : vector<32x128xf32>
    %172 = tpu.matmul %170, %171, %cst_80 {dimension_numbers = #tpu.dot_dimension_numbers<[1], [0], [0], [1], [0, 0, 1, 1], [], []>} : vector<32x32xbf16>, vector<32x128xbf16>, vector<32x128xf32> -> vector<32x128xf32>
    %c0_81 = arith.constant 0 : index
    %c0_82 = arith.constant 0 : index
    %173 = vector.load %arg15[%c0_81, %c0_82] : memref<1x128xf32, #tpu.memory_space<vmem>>, vector<1x128xf32>
    %174 = vector.broadcast %173 : vector<1x128xf32> to vector<32x128xf32>
    %175 = arith.addf %172, %174 : vector<32x128xf32>
    %cst_83 = arith.constant 5.000000e-01 : f32
    %176 = vector.broadcast %cst_83 : f32 to vector<32x128xf32>
    %177 = arith.mulf %176, %175 : vector<32x128xf32>
    %cst_84 = arith.constant 0.707106769 : f32
    %178 = vector.broadcast %cst_84 : f32 to vector<32x128xf32>
    %179 = arith.mulf %175, %178 : vector<32x128xf32>
    %180 = math.erf %179 : vector<32x128xf32>
    %cst_85 = arith.constant 1.000000e+00 : f32
    %181 = vector.broadcast %cst_85 : f32 to vector<32x128xf32>
    %182 = arith.addf %181, %180 : vector<32x128xf32>
    %183 = arith.mulf %177, %182 : vector<32x128xf32>
    %184 = arith.truncf %183 : vector<32x128xf32> to vector<32x128xbf16>
    %c0_86 = arith.constant 0 : index
    %c0_87 = arith.constant 0 : index
    %185 = vector.load %arg16[%c0_86, %c0_87] : memref<128x32xbf16, #tpu.memory_space<vmem>>, vector<128x32xbf16>
    %cst_88 = arith.constant dense<0.000000e+00> : vector<32x32xf32>
    %186 = tpu.matmul %184, %185, %cst_88 {dimension_numbers = #tpu.dot_dimension_numbers<[1], [0], [0], [1], [0, 0, 1, 1], [], []>} : vector<32x128xbf16>, vector<128x32xbf16>, vector<32x32xf32> -> vector<32x32xf32>
    %c0_89 = arith.constant 0 : index
    %c0_90 = arith.constant 0 : index
    %187 = vector.load %arg17[%c0_89, %c0_90] : memref<1x32xf32, #tpu.memory_space<vmem>>, vector<1x32xf32>
    %188 = vector.broadcast %187 : vector<1x32xf32> to vector<32x32xf32>
    %189 = arith.addf %186, %188 : vector<32x32xf32>
    %190 = arith.addf %145, %189 : vector<32x32xf32>
    %191 = vector.extract_strided_slice %190 {offsets = [0, 0], sizes = [4, 32], strides = [1, 1]} : vector<32x32xf32> to vector<4x32xf32>
    %c0_91 = arith.constant 0 : index
    %c0_92 = arith.constant 0 : index
    %c0_93 = arith.constant 0 : index
    %c0_94 = arith.constant 0 : index
    %192 = vector.load %arg18[%c0_91, %c0_92, %c0_93, %c0_94] : memref<1x4x8x32xf32, #tpu.memory_space<vmem>>, vector<1x1x4x32xf32>
    %193 = vector.shape_cast %192 : vector<1x1x4x32xf32> to vector<4x32xf32>
    %194 = vector.shape_cast %191 : vector<4x32xf32> to vector<1x1x4x32xf32>
    tpu.vector_store %arg18[%c0_91, %c0_92, %c0_93, %c0_94], %194 {strides = array<i32>} : memref<1x4x8x32xf32, #tpu.memory_space<vmem>>, vector<1x1x4x32xf32>,
    %195 = vector.extract_strided_slice %190 {offsets = [4, 0], sizes = [4, 32], strides = [1, 1]} : vector<32x32xf32> to vector<4x32xf32>
    %c0_95 = arith.constant 0 : index
    %c1_96 = arith.constant 1 : index
    %c0_97 = arith.constant 0 : index
    %c0_98 = arith.constant 0 : index
    %196 = vector.load %arg18[%c0_95, %c1_96, %c0_97, %c0_98] : memref<1x4x8x32xf32, #tpu.memory_space<vmem>>, vector<1x1x4x32xf32>
    %197 = vector.shape_cast %196 : vector<1x1x4x32xf32> to vector<4x32xf32>
    %198 = vector.shape_cast %195 : vector<4x32xf32> to vector<1x1x4x32xf32>
    tpu.vector_store %arg18[%c0_95, %c1_96, %c0_97, %c0_98], %198 {strides = array<i32>} : memref<1x4x8x32xf32, #tpu.memory_space<vmem>>, vector<1x1x4x32xf32>,
    %199 = vector.extract_strided_slice %190 {offsets = [8, 0], sizes = [4, 32], strides = [1, 1]} : vector<32x32xf32> to vector<4x32xf32>
    %c0_99 = arith.constant 0 : index
    %c2_100 = arith.constant 2 : index
    %c0_101 = arith.constant 0 : index
    %c0_102 = arith.constant 0 : index
    %200 = vector.load %arg18[%c0_99, %c2_100, %c0_101, %c0_102] : memref<1x4x8x32xf32, #tpu.memory_space<vmem>>, vector<1x1x4x32xf32>
    %201 = vector.shape_cast %200 : vector<1x1x4x32xf32> to vector<4x32xf32>
    %202 = vector.shape_cast %199 : vector<4x32xf32> to vector<1x1x4x32xf32>
    tpu.vector_store %arg18[%c0_99, %c2_100, %c0_101, %c0_102], %202 {strides = array<i32>} : memref<1x4x8x32xf32, #tpu.memory_space<vmem>>, vector<1x1x4x32xf32>,
    %203 = vector.extract_strided_slice %190 {offsets = [12, 0], sizes = [4, 32], strides = [1, 1]} : vector<32x32xf32> to vector<4x32xf32>
    %c0_103 = arith.constant 0 : index
    %c3_104 = arith.constant 3 : index
    %c0_105 = arith.constant 0 : index
    %c0_106 = arith.constant 0 : index
    %204 = vector.load %arg18[%c0_103, %c3_104, %c0_105, %c0_106] : memref<1x4x8x32xf32, #tpu.memory_space<vmem>>, vector<1x1x4x32xf32>
    %205 = vector.shape_cast %204 : vector<1x1x4x32xf32> to vector<4x32xf32>
    %206 = vector.shape_cast %203 : vector<4x32xf32> to vector<1x1x4x32xf32>
    tpu.vector_store %arg18[%c0_103, %c3_104, %c0_105, %c0_106], %206 {strides = array<i32>} : memref<1x4x8x32xf32, #tpu.memory_space<vmem>>, vector<1x1x4x32xf32>,
    %207 = vector.extract_strided_slice %190 {offsets = [16, 0], sizes = [4, 32], strides = [1, 1]} : vector<32x32xf32> to vector<4x32xf32>
    %c0_107 = arith.constant 0 : index
    %c0_108 = arith.constant 0 : index
    %c4_109 = arith.constant 4 : index
    %c0_110 = arith.constant 0 : index
    %208 = vector.load %arg18[%c0_107, %c0_108, %c4_109, %c0_110] : memref<1x4x8x32xf32, #tpu.memory_space<vmem>>, vector<1x1x4x32xf32>
    %209 = vector.shape_cast %208 : vector<1x1x4x32xf32> to vector<4x32xf32>
    %210 = vector.shape_cast %207 : vector<4x32xf32> to vector<1x1x4x32xf32>
    tpu.vector_store %arg18[%c0_107, %c0_108, %c4_109, %c0_110], %210 {strides = array<i32>} : memref<1x4x8x32xf32, #tpu.memory_space<vmem>>, vector<1x1x4x32xf32>,
    %211 = vector.extract_strided_slice %190 {offsets = [20, 0], sizes = [4, 32], strides = [1, 1]} : vector<32x32xf32> to vector<4x32xf32>
    %c0_111 = arith.constant 0 : index
    %c1_112 = arith.constant 1 : index
    %c4_113 = arith.constant 4 : index
    %c0_114 = arith.constant 0 : index
    %212 = vector.load %arg18[%c0_111, %c1_112, %c4_113, %c0_114] : memref<1x4x8x32xf32, #tpu.memory_space<vmem>>, vector<1x1x4x32xf32>
    %213 = vector.shape_cast %212 : vector<1x1x4x32xf32> to vector<4x32xf32>
    %214 = vector.shape_cast %211 : vector<4x32xf32> to vector<1x1x4x32xf32>
    tpu.vector_store %arg18[%c0_111, %c1_112, %c4_113, %c0_114], %214 {strides = array<i32>} : memref<1x4x8x32xf32, #tpu.memory_space<vmem>>, vector<1x1x4x32xf32>,
    %215 = vector.extract_strided_slice %190 {offsets = [24, 0], sizes = [4, 32], strides = [1, 1]} : vector<32x32xf32> to vector<4x32xf32>
    %c0_115 = arith.constant 0 : index
    %c2_116 = arith.constant 2 : index
    %c4_117 = arith.constant 4 : index
    %c0_118 = arith.constant 0 : index
    %216 = vector.load %arg18[%c0_115, %c2_116, %c4_117, %c0_118] : memref<1x4x8x32xf32, #tpu.memory_space<vmem>>, vector<1x1x4x32xf32>
    %217 = vector.shape_cast %216 : vector<1x1x4x32xf32> to vector<4x32xf32>
    %218 = vector.shape_cast %215 : vector<4x32xf32> to vector<1x1x4x32xf32>
    tpu.vector_store %arg18[%c0_115, %c2_116, %c4_117, %c0_118], %218 {strides = array<i32>} : memref<1x4x8x32xf32, #tpu.memory_space<vmem>>, vector<1x1x4x32xf32>,
    %219 = vector.extract_strided_slice %190 {offsets = [28, 0], sizes = [4, 32], strides = [1, 1]} : vector<32x32xf32> to vector<4x32xf32>
    %c0_119 = arith.constant 0 : index
    %c3_120 = arith.constant 3 : index
    %c4_121 = arith.constant 4 : index
    %c0_122 = arith.constant 0 : index
    %220 = vector.load %arg18[%c0_119, %c3_120, %c4_121, %c0_122] : memref<1x4x8x32xf32, #tpu.memory_space<vmem>>, vector<1x1x4x32xf32>
    %221 = vector.shape_cast %220 : vector<1x1x4x32xf32> to vector<4x32xf32>
    %222 = vector.shape_cast %219 : vector<4x32xf32> to vector<1x1x4x32xf32>
    tpu.vector_store %arg18[%c0_119, %c3_120, %c4_121, %c0_122], %222 {strides = array<i32>} : memref<1x4x8x32xf32, #tpu.memory_space<vmem>>, vector<1x1x4x32xf32>,
    return
  }
  func.func @transform_0(%arg0: i32, %arg1: i32, %arg2: i32) -> (i32, i32, i32, i32) {
    %c0_i32 = arith.constant 0 : i32
    %c0_i32_0 = arith.constant 0 : i32
    return %arg0, %arg1, %arg2, %c0_i32 : i32, i32, i32, i32
  }
  func.func @transform_1(%arg0: i32, %arg1: i32, %arg2: i32) -> (i32, i32, i32, i32) {
    %c0_i32 = arith.constant 0 : i32
    %c0_i32_0 = arith.constant 0 : i32
    %c0_i32_1 = arith.constant 0 : i32
    return %arg1, %arg2, %c0_i32, %c0_i32_0 : i32, i32, i32, i32
  }
  func.func @transform_2(%arg0: i32, %arg1: i32, %arg2: i32) -> (i32, i32, i32) {
    %c0_i32 = arith.constant 0 : i32
    %c0_i32_0 = arith.constant 0 : i32
    %c0_i32_1 = arith.constant 0 : i32
    %c0_i32_2 = arith.constant 0 : i32
    return %c0_i32, %c0_i32_0, %c0_i32_1 : i32, i32, i32
  }
  func.func @transform_3(%arg0: i32, %arg1: i32, %arg2: i32) -> (i32, i32) {
    %c0_i32 = arith.constant 0 : i32
    %c0_i32_0 = arith.constant 0 : i32
    %c0_i32_1 = arith.constant 0 : i32
    return %c0_i32, %c0_i32_0 : i32, i32
  }
  func.func @transform_4(%arg0: i32, %arg1: i32, %arg2: i32) -> (i32, i32) {
    %c0_i32 = arith.constant 0 : i32
    %c0_i32_0 = arith.constant 0 : i32
    %c0_i32_1 = arith.constant 0 : i32
    return %c0_i32, %c0_i32_0 : i32, i32
  }
  func.func @transform_5(%arg0: i32, %arg1: i32, %arg2: i32) -> (i32, i32) {
    %c0_i32 = arith.constant 0 : i32
    %c0_i32_0 = arith.constant 0 : i32
    %c0_i32_1 = arith.constant 0 : i32
    return %c0_i32, %c0_i32_0 : i32, i32
  }
  func.func @transform_6(%arg0: i32, %arg1: i32, %arg2: i32) -> (i32, i32) {
    %c0_i32 = arith.constant 0 : i32
    %c0_i32_0 = arith.constant 0 : i32
    %c0_i32_1 = arith.constant 0 : i32
    return %c0_i32, %c0_i32_0 : i32, i32
  }
  func.func @transform_7(%arg0: i32, %arg1: i32, %arg2: i32) -> (i32, i32) {
    %c0_i32 = arith.constant 0 : i32
    %c0_i32_0 = arith.constant 0 : i32
    %c0_i32_1 = arith.constant 0 : i32
    return %c0_i32, %c0_i32_0 : i32, i32
  }
  func.func @transform_8(%arg0: i32, %arg1: i32, %arg2: i32) -> (i32, i32) {
    %c0_i32 = arith.constant 0 : i32
    %c0_i32_0 = arith.constant 0 : i32
    %c0_i32_1 = arith.constant 0 : i32
    return %c0_i32, %c0_i32_0 : i32, i32
  }
  func.func @transform_9(%arg0: i32, %arg1: i32, %arg2: i32) -> (i32, i32) {
    %c0_i32 = arith.constant 0 : i32
    %c0_i32_0 = arith.constant 0 : i32
    %c0_i32_1 = arith.constant 0 : i32
    return %c0_i32, %c0_i32_0 : i32, i32
  }
  func.func @transform_10(%arg0: i32, %arg1: i32, %arg2: i32) -> (i32, i32) {
    %c0_i32 = arith.constant 0 : i32
    %c0_i32_0 = arith.constant 0 : i32
    %c0_i32_1 = arith.constant 0 : i32
    return %c0_i32, %c0_i32_0 : i32, i32
  }
  func.func @transform_11(%arg0: i32, %arg1: i32, %arg2: i32) -> (i32, i32) {
    %c0_i32 = arith.constant 0 : i32
    %c0_i32_0 = arith.constant 0 : i32
    %c0_i32_1 = arith.constant 0 : i32
    return %c0_i32, %c0_i32_0 : i32, i32
  }
  func.func @transform_12(%arg0: i32, %arg1: i32, %arg2: i32) -> (i32, i32) {
    %c0_i32 = arith.constant 0 : i32
    %c0_i32_0 = arith.constant 0 : i32
    %c0_i32_1 = arith.constant 0 : i32
    return %c0_i32, %c0_i32_0 : i32, i32
  }
  func.func @transform_13(%arg0: i32, %arg1: i32, %arg2: i32) -> (i32, i32) {
    %c0_i32 = arith.constant 0 : i32
    %c0_i32_0 = arith.constant 0 : i32
    %c0_i32_1 = arith.constant 0 : i32
    return %c0_i32, %c0_i32_0 : i32, i32
  }
  func.func @transform_14(%arg0: i32, %arg1: i32, %arg2: i32) -> (i32, i32) {
    %c0_i32 = arith.constant 0 : i32
    %c0_i32_0 = arith.constant 0 : i32
    %c0_i32_1 = arith.constant 0 : i32
    return %c0_i32, %c0_i32_0 : i32, i32
  }
  func.func @transform_15(%arg0: i32, %arg1: i32, %arg2: i32) -> (i32, i32, i32, i32) {
    %c0_i32 = arith.constant 0 : i32
    %c0_i32_0 = arith.constant 0 : i32
    return %arg0, %arg1, %arg2, %c0_i32 : i32, i32, i32, i32
  }
}

</mosaic_0001>

<llo_original>
// kernel: _basic_layer_jit.2
$region0: #{_basic_layer_jit.2}
  #allocation0 [shape = 'u32[]', space=smem, size = 0x4, offset = 0x4, fixed_abs, tag = 'smem constant byte address 0x4 - core index']
  #allocation1 [shape = 'u32[144,128]{1,0:T(1,128)}', space=vmem, size = 0x12000, scoped, tag = 'internal scratch']
  #allocation2 [shape = 'f32[32,32]{1,0:T(8,128)}', space=vmem, size = 0x4000, scoped, tag = 'scratch operand']
  %s0 = inlined_call_operand.vmem [shape: f32[2,8,8,32], index: 0, kind: input, shape index: {}]
  %s1 = inlined_call_operand.vmem [shape: f32[4,16,16], index: 1, kind: input, shape index: {}]
  %s2 = inlined_call_operand.vmem [shape: f32[1,32], index: 2, kind: input, shape index: {}]
  %s3 = inlined_call_operand.vmem [shape: f32[1,32], index: 3, kind: input, shape index: {}]
  %s4 = inlined_call_operand.vmem [shape: bf16[32,96], index: 4, kind: input, shape index: {}]
  %s5 = inlined_call_operand.vmem [shape: f32[1,96], index: 5, kind: input, shape index: {}]
  %s6 = inlined_call_operand.vmem [shape: bf16[32,32], index: 6, kind: input, shape index: {}]
  %s7 = inlined_call_operand.vmem [shape: f32[1,32], index: 7, kind: input, shape index: {}]
  %s8 = inlined_call_operand.vmem [shape: f32[1,32], index: 8, kind: input, shape index: {}]
  %s9 = inlined_call_operand.vmem [shape: f32[1,32], index: 9, kind: input, shape index: {}]
  %s10 = inlined_call_operand.vmem [shape: bf16[32,128], index: 10, kind: input, shape index: {}]
  %s11 = inlined_call_operand.vmem [shape: f32[1,128], index: 11, kind: input, shape index: {}]
  %s12 = inlined_call_operand.vmem [shape: bf16[128,32], index: 12, kind: input, shape index: {}]
  %s13 = inlined_call_operand.vmem [shape: f32[1,32], index: 13, kind: input, shape index: {}]
  %s14 = inlined_call_operand.vmem [shape: f32[2,8,8,32], index: 14, kind: output, shape index: {}]
  %s15 = sld [smem:[#allocation0]]
  $region89: #{_basic_layer_jit.2} parent=0
    _
  %s17 = ssub.s32 1, %s15
  %s18 = scalar_select 0, %s17, %s15
  loop: start=0, step=1, limit=6
  $region2: #{_basic_layer_jit.2} parent=0 // loop_pre_header
    _
  $region3: #{_basic_layer_jit.2} parent=0 // loop_header
    %s20 = sphi 0, %s24
    %p21 = scmp.ge.s32.totalorder %s20, 6
    %s27 = sphi 0, %s46
    %s28 = sphi 0, %s42
    %s29 = sphi 0, %s38
    %s30 = sphi 0, %s27
    %s31 = sphi 0, %s28
    %s32 = sphi 0, %s29
    %s33 = sphi 0, %s30
    %s34 = sphi 0, %s31
    %s35 = sphi 0, %s32
    %s53 = sphi 0, %s55
    %s56 = sphi 0, %s53
    %s57 = sphi 0, %s56
    %s73 = sphi 0, %s57
    %s77 = sphi 0, %s77
    %s79 = sphi 0, %s77
    %s80 = sphi 0, %s79
    %s94 = sphi 0, %s80
    %s98 = sphi 0, %s98
    %s100 = sphi 0, %s98
    %s101 = sphi 0, %s100
    %s115 = sphi 0, %s101
    %s119 = sphi 0, %s119
    %s121 = sphi 0, %s119
    %s122 = sphi 0, %s121
    %s136 = sphi 0, %s122
    %s140 = sphi 0, %s140
    %s142 = sphi 0, %s140
    %s143 = sphi 0, %s142
    %s157 = sphi 0, %s143
    %s161 = sphi 0, %s161
    %s163 = sphi 0, %s161
    %s164 = sphi 0, %s163
    %s178 = sphi 0, %s164
    %s182 = sphi 0, %s182
    %s184 = sphi 0, %s182
    %s185 = sphi 0, %s184
    %s199 = sphi 0, %s185
    %s203 = sphi 0, %s203
    %s205 = sphi 0, %s203
    %s206 = sphi 0, %s205
    %s220 = sphi 0, %s206
    %s224 = sphi 0, %s224
    %s226 = sphi 0, %s224
    %s227 = sphi 0, %s226
    %s241 = sphi 0, %s227
    %s245 = sphi 0, %s245
    %s247 = sphi 0, %s245
    %s248 = sphi 0, %s247
    %s262 = sphi 0, %s248
    %s266 = sphi 0, %s266
    %s268 = sphi 0, %s266
    %s269 = sphi 0, %s268
    %s283 = sphi 0, %s269
    %s287 = sphi 0, %s287
    %s289 = sphi 0, %s287
    %s290 = sphi 0, %s289
    %s304 = sphi 0, %s290
    %s308 = sphi 0, %s308
    %s310 = sphi 0, %s308
    %s311 = sphi 0, %s310
    %s325 = sphi 0, %s311
    %s329 = sphi 0, %s329
    %s331 = sphi 0, %s329
    %s332 = sphi 0, %s331
    %s346 = sphi 0, %s332
    %s356 = sphi 0, %s358
    %s359 = sphi 0, %s356
    %s360 = sphi 0, %s359
    %s376 = sphi 0, %s360
  $region4: #{_basic_layer_jit.2} parent=0 // loop_header_branch
    %23 = sbr.rel (%p21) target = $region8
  $region5: #{_basic_layer_jit.2} parent=0 // loop_body
    %s25 = ssub.s32 %s20, 1
    %s26 = ssub.s32 %s20, 2
    %s36 = sadd.s32 1, %s29
    %p37 = scmp.ge.s32.totalorder %s36, 1
    %s38 = scalar_select %p37, 0, %s36
    %s39 = sadd.s32 1, %s28
    %s40 = scalar_select %p37, %s39, %s28
    %p41 = scmp.ge.s32.totalorder %s40, 2
    %s42 = scalar_select %p41, 0, %s40
    %s43 = sadd.s32 1, %s27
    %s44 = scalar_select %p41, %s43, %s27
    %p45 = scmp.ge.s32.totalorder %s44, 2
    %s46 = scalar_select %p45, 0, %s44
    %s47 = ssub.s32 %s27, %s46
    %s48 = ssub.s32 %s28, %s42
    %s49 = sor.u32 %s47, %s48
    %s50 = ssub.s32 %s29, %s38
    %s51 = sor.u32 %s49, %s50
    %p52 = scmp.eq.s32.totalorder %s51, 0
    %s54 = sadd.s32 %s53, 1
    %s55 = scalar_select %p52, %s53, %s54
    %p58 = pneg %p52
    %p59 = scmp.eq.s32.totalorder %s20, 3
    %p60 = por %p58, %p59
    %p61 = scmp.ne.s32.totalorder %s53, %s56
    %p62 = scmp.eq.s32.totalorder %s20, 0
    %p63 = por %p61, %p62
    %p64 = scmp.ne.s32.totalorder %s53, %s56
    %p65 = scmp.eq.s32.totalorder %s25, 3
    %p66 = por %p64, %p65
    %p67 = scmp.ne.s32.totalorder %s56, %s57
    %p68 = scmp.eq.s32.totalorder %s25, 0
    %p69 = por %p67, %p68
    %p70 = scmp.ne.s32.totalorder %s56, %s57
    %p71 = scmp.eq.s32.totalorder %s26, 3
    %p72 = por %p70, %p71
    %p74 = scmp.ne.s32.totalorder %s57, %s73
    %p75 = scmp.eq.s32.totalorder %s26, 0
    %p76 = por %p74, %p75
    %s78 = sadd.s32 %s77, 1
    %p81 = scmp.eq.s32.totalorder %s20, 3
    %p82 = scmp.ne.s32.totalorder %s77, %s79
    %p83 = scmp.eq.s32.totalorder %s20, 0
    %p84 = por %p82, %p83
    %p85 = scmp.ne.s32.totalorder %s77, %s79
    %p86 = scmp.eq.s32.totalorder %s25, 3
    %p87 = por %p85, %p86
    %p88 = scmp.ne.s32.totalorder %s79, %s80
    %p89 = scmp.eq.s32.totalorder %s25, 0
    %p90 = por %p88, %p89
    %p91 = scmp.ne.s32.totalorder %s79, %s80
    %p92 = scmp.eq.s32.totalorder %s26, 3
    %p93 = por %p91, %p92
    %p95 = scmp.ne.s32.totalorder %s80, %s94
    %p96 = scmp.eq.s32.totalorder %s26, 0
    %p97 = por %p95, %p96
    %s99 = sadd.s32 %s98, 1
    %p102 = scmp.eq.s32.totalorder %s20, 3
    %p103 = scmp.ne.s32.totalorder %s98, %s100
    %p104 = scmp.eq.s32.totalorder %s20, 0
    %p105 = por %p103, %p104
    %p106 = scmp.ne.s32.totalorder %s98, %s100
    %p107 = scmp.eq.s32.totalorder %s25, 3
    %p108 = por %p106, %p107
    %p109 = scmp.ne.s32.totalorder %s100, %s101
    %p110 = scmp.eq.s32.totalorder %s25, 0
    %p111 = por %p109, %p110
    %p112 = scmp.ne.s32.totalorder %s100, %s101
    %p113 = scmp.eq.s32.totalorder %s26, 3
    %p114 = por %p112, %p113
    %p116 = scmp.ne.s32.totalorder %s101, %s115
    %p117 = scmp.eq.s32.totalorder %s26, 0
    %p118 = por %p116, %p117
    %s120 = sadd.s32 %s119, 1
    %p123 = scmp.eq.s32.totalorder %s20, 3
    %p124 = scmp.ne.s32.totalorder %s119, %s121
    %p125 = scmp.eq.s32.totalorder %s20, 0
    %p126 = por %p124, %p125
    %p127 = scmp.ne.s32.totalorder %s119, %s121
    %p128 = scmp.eq.s32.totalorder %s25, 3
    %p129 = por %p127, %p128
    %p130 = scmp.ne.s32.totalorder %s121, %s122
    %p131 = scmp.eq.s32.totalorder %s25, 0
    %p132 = por %p130, %p131
    %p133 = scmp.ne.s32.totalorder %s121, %s122
    %p134 = scmp.eq.s32.totalorder %s26, 3
    %p135 = por %p133, %p134
    %p137 = scmp.ne.s32.totalorder %s122, %s136
    %p138 = scmp.eq.s32.totalorder %s26, 0
    %p139 = por %p137, %p138
    %s141 = sadd.s32 %s140, 1
    %p144 = scmp.eq.s32.totalorder %s20, 3
    %p145 = scmp.ne.s32.totalorder %s140, %s142
    %p146 = scmp.eq.s32.totalorder %s20, 0
    %p147 = por %p145, %p146
    %p148 = scmp.ne.s32.totalorder %s140, %s142
    %p149 = scmp.eq.s32.totalorder %s25, 3
    %p150 = por %p148, %p149
    %p151 = scmp.ne.s32.totalorder %s142, %s143
    %p152 = scmp.eq.s32.totalorder %s25, 0
    %p153 = por %p151, %p152
    %p154 = scmp.ne.s32.totalorder %s142, %s143
    %p155 = scmp.eq.s32.totalorder %s26, 3
    %p156 = por %p154, %p155
    %p158 = scmp.ne.s32.totalorder %s143, %s157
    %p159 = scmp.eq.s32.totalorder %s26, 0
    %p160 = por %p158, %p159
    %s162 = sadd.s32 %s161, 1
    %p165 = scmp.eq.s32.totalorder %s20, 3
    %p166 = scmp.ne.s32.totalorder %s161, %s163
    %p167 = scmp.eq.s32.totalorder %s20, 0
    %p168 = por %p166, %p167
    %p169 = scmp.ne.s32.totalorder %s161, %s163
    %p170 = scmp.eq.s32.totalorder %s25, 3
    %p171 = por %p169, %p170
    %p172 = scmp.ne.s32.totalorder %s163, %s164
    %p173 = scmp.eq.s32.totalorder %s25, 0
    %p174 = por %p172, %p173
    %p175 = scmp.ne.s32.totalorder %s163, %s164
    %p176 = scmp.eq.s32.totalorder %s26, 3
    %p177 = por %p175, %p176
    %p179 = scmp.ne.s32.totalorder %s164, %s178
    %p180 = scmp.eq.s32.totalorder %s26, 0
    %p181 = por %p179, %p180
    %s183 = sadd.s32 %s182, 1
    %p186 = scmp.eq.s32.totalorder %s20, 3
    %p187 = scmp.ne.s32.totalorder %s182, %s184
    %p188 = scmp.eq.s32.totalorder %s20, 0
    %p189 = por %p187, %p188
    %p190 = scmp.ne.s32.totalorder %s182, %s184
    %p191 = scmp.eq.s32.totalorder %s25, 3
    %p192 = por %p190, %p191
    %p193 = scmp.ne.s32.totalorder %s184, %s185
    %p194 = scmp.eq.s32.totalorder %s25, 0
    %p195 = por %p193, %p194
    %p196 = scmp.ne.s32.totalorder %s184, %s185
    %p197 = scmp.eq.s32.totalorder %s26, 3
    %p198 = por %p196, %p197
    %p200 = scmp.ne.s32.totalorder %s185, %s199
    %p201 = scmp.eq.s32.totalorder %s26, 0
    %p202 = por %p200, %p201
    %s204 = sadd.s32 %s203, 1
    %p207 = scmp.eq.s32.totalorder %s20, 3
    %p208 = scmp.ne.s32.totalorder %s203, %s205
    %p209 = scmp.eq.s32.totalorder %s20, 0
    %p210 = por %p208, %p209
    %p211 = scmp.ne.s32.totalorder %s203, %s205
    %p212 = scmp.eq.s32.totalorder %s25, 3
    %p213 = por %p211, %p212
    %p214 = scmp.ne.s32.totalorder %s205, %s206
    %p215 = scmp.eq.s32.totalorder %s25, 0
    %p216 = por %p214, %p215
    %p217 = scmp.ne.s32.totalorder %s205, %s206
    %p218 = scmp.eq.s32.totalorder %s26, 3
    %p219 = por %p217, %p218
    %p221 = scmp.ne.s32.totalorder %s206, %s220
    %p222 = scmp.eq.s32.totalorder %s26, 0
    %p223 = por %p221, %p222
    %s225 = sadd.s32 %s224, 1
    %p228 = scmp.eq.s32.totalorder %s20, 3
    %p229 = scmp.ne.s32.totalorder %s224, %s226
    %p230 = scmp.eq.s32.totalorder %s20, 0
    %p231 = por %p229, %p230
    %p232 = scmp.ne.s32.totalorder %s224, %s226
    %p233 = scmp.eq.s32.totalorder %s25, 3
    %p234 = por %p232, %p233
    %p235 = scmp.ne.s32.totalorder %s226, %s227
    %p236 = scmp.eq.s32.totalorder %s25, 0
    %p237 = por %p235, %p236
    %p238 = scmp.ne.s32.totalorder %s226, %s227
    %p239 = scmp.eq.s32.totalorder %s26, 3
    %p240 = por %p238, %p239
    %p242 = scmp.ne.s32.totalorder %s227, %s241
    %p243 = scmp.eq.s32.totalorder %s26, 0
    %p244 = por %p242, %p243
    %s246 = sadd.s32 %s245, 1
    %p249 = scmp.eq.s32.totalorder %s20, 3
    %p250 = scmp.ne.s32.totalorder %s245, %s247
    %p251 = scmp.eq.s32.totalorder %s20, 0
    %p252 = por %p250, %p251
    %p253 = scmp.ne.s32.totalorder %s245, %s247
    %p254 = scmp.eq.s32.totalorder %s25, 3
    %p255 = por %p253, %p254
    %p256 = scmp.ne.s32.totalorder %s247, %s248
    %p257 = scmp.eq.s32.totalorder %s25, 0
    %p258 = por %p256, %p257
    %p259 = scmp.ne.s32.totalorder %s247, %s248
    %p260 = scmp.eq.s32.totalorder %s26, 3
    %p261 = por %p259, %p260
    %p263 = scmp.ne.s32.totalorder %s248, %s262
    %p264 = scmp.eq.s32.totalorder %s26, 0
    %p265 = por %p263, %p264
    %s267 = sadd.s32 %s266, 1
    %p270 = scmp.eq.s32.totalorder %s20, 3
    %p271 = scmp.ne.s32.totalorder %s266, %s268
    %p272 = scmp.eq.s32.totalorder %s20, 0
    %p273 = por %p271, %p272
    %p274 = scmp.ne.s32.totalorder %s266, %s268
    %p275 = scmp.eq.s32.totalorder %s25, 3
    %p276 = por %p274, %p275
    %p277 = scmp.ne.s32.totalorder %s268, %s269
    %p278 = scmp.eq.s32.totalorder %s25, 0
    %p279 = por %p277, %p278
    %p280 = scmp.ne.s32.totalorder %s268, %s269
    %p281 = scmp.eq.s32.totalorder %s26, 3
    %p282 = por %p280, %p281
    %p284 = scmp.ne.s32.totalorder %s269, %s283
    %p285 = scmp.eq.s32.totalorder %s26, 0
    %p286 = por %p284, %p285
    %s288 = sadd.s32 %s287, 1
    %p291 = scmp.eq.s32.totalorder %s20, 3
    %p292 = scmp.ne.s32.totalorder %s287, %s289
    %p293 = scmp.eq.s32.totalorder %s20, 0
    %p294 = por %p292, %p293
    %p295 = scmp.ne.s32.totalorder %s287, %s289
    %p296 = scmp.eq.s32.totalorder %s25, 3
    %p297 = por %p295, %p296
    %p298 = scmp.ne.s32.totalorder %s289, %s290
    %p299 = scmp.eq.s32.totalorder %s25, 0
    %p300 = por %p298, %p299
    %p301 = scmp.ne.s32.totalorder %s289, %s290
    %p302 = scmp.eq.s32.totalorder %s26, 3
    %p303 = por %p301, %p302
    %p305 = scmp.ne.s32.totalorder %s290, %s304
    %p306 = scmp.eq.s32.totalorder %s26, 0
    %p307 = por %p305, %p306
    %s309 = sadd.s32 %s308, 1
    %p312 = scmp.eq.s32.totalorder %s20, 3
    %p313 = scmp.ne.s32.totalorder %s308, %s310
    %p314 = scmp.eq.s32.totalorder %s20, 0
    %p315 = por %p313, %p314
    %p316 = scmp.ne.s32.totalorder %s308, %s310
    %p317 = scmp.eq.s32.totalorder %s25, 3
    %p318 = por %p316, %p317
    %p319 = scmp.ne.s32.totalorder %s310, %s311
    %p320 = scmp.eq.s32.totalorder %s25, 0
    %p321 = por %p319, %p320
    %p322 = scmp.ne.s32.totalorder %s310, %s311
    %p323 = scmp.eq.s32.totalorder %s26, 3
    %p324 = por %p322, %p323
    %p326 = scmp.ne.s32.totalorder %s311, %s325
    %p327 = scmp.eq.s32.totalorder %s26, 0
    %p328 = por %p326, %p327
    %s330 = sadd.s32 %s329, 1
    %p333 = scmp.eq.s32.totalorder %s20, 3
    %p334 = scmp.ne.s32.totalorder %s329, %s331
    %p335 = scmp.eq.s32.totalorder %s20, 0
    %p336 = por %p334, %p335
    %p337 = scmp.ne.s32.totalorder %s329, %s331
    %p338 = scmp.eq.s32.totalorder %s25, 3
    %p339 = por %p337, %p338
    %p340 = scmp.ne.s32.totalorder %s331, %s332
    %p341 = scmp.eq.s32.totalorder %s25, 0
    %p342 = por %p340, %p341
    %p343 = scmp.ne.s32.totalorder %s331, %s332
    %p344 = scmp.eq.s32.totalorder %s26, 3
    %p345 = por %p343, %p344
    %p347 = scmp.ne.s32.totalorder %s332, %s346
    %p348 = scmp.eq.s32.totalorder %s26, 0
    %p349 = por %p347, %p348
    %s350 = ssub.s32 %s27, %s46
    %s351 = ssub.s32 %s28, %s42
    %s352 = sor.u32 %s350, %s351
    %s353 = ssub.s32 %s29, %s38
    %s354 = sor.u32 %s352, %s353
    %p355 = scmp.eq.s32.totalorder %s354, 0
    %s357 = sadd.s32 %s356, 1
    %s358 = scalar_select %p355, %s356, %s357
    %p361 = pneg %p355
    %p362 = scmp.eq.s32.totalorder %s20, 3
    %p363 = por %p361, %p362
    %p364 = scmp.ne.s32.totalorder %s356, %s359
    %p365 = scmp.eq.s32.totalorder %s20, 0
    %p366 = por %p364, %p365
    %p367 = scmp.ne.s32.totalorder %s356, %s359
    %p368 = scmp.eq.s32.totalorder %s25, 3
    %p369 = por %p367, %p368
    %p370 = scmp.ne.s32.totalorder %s359, %s360
    %p371 = scmp.eq.s32.totalorder %s25, 0
    %p372 = por %p370, %p371
    %p373 = scmp.ne.s32.totalorder %s359, %s360
    %p374 = scmp.eq.s32.totalorder %s26, 3
    %p375 = por %p373, %p374
    %p377 = scmp.ne.s32.totalorder %s360, %s376
    %p378 = scmp.eq.s32.totalorder %s26, 0
    %p379 = por %p377, %p378
    %p380 = scmp.le.s32.totalorder 1, %s20
    %p381 = scmp.lt.s32.totalorder %s20, 5
    %p382 = pnand %p380, %p381
    %p383 = pneg %p382
    // Predicated region
    $region9: #{_basic_layer_jit.2} parent=5 // pred_check
      _
    $region10: #{_basic_layer_jit.2} parent=5 // pred_check_branch
      %385 = sbr.rel (%p382) target = $region12
    $region11: #{_basic_layer_jit.2} parent=5 // pred_region
      %s386 = ssub.s32 %s20, 1
      // Predicated region
      $region13: #{_basic_layer_jit.2} parent=11 // pred_check
        %p387 = pneg %p90
      $region14: #{_basic_layer_jit.2} parent=11 // pred_check_branch
        %389 = sbr.rel (%p387) target = $region16
      $region15: #{_basic_layer_jit.2} parent=11 // pred_region
        _
      $region16: #{_basic_layer_jit.2} parent=11 // pred_fallthru
        _
      // Predicated region
      $region17: #{_basic_layer_jit.2} parent=11 // pred_check
        %p390 = pneg %p111
      $region18: #{_basic_layer_jit.2} parent=11 // pred_check_branch
        %392 = sbr.rel (%p390) target = $region20
      $region19: #{_basic_layer_jit.2} parent=11 // pred_region
        _
      $region20: #{_basic_layer_jit.2} parent=11 // pred_fallthru
        _
      // Predicated region
      $region21: #{_basic_layer_jit.2} parent=11 // pred_check
        %p393 = pneg %p132
      $region22: #{_basic_layer_jit.2} parent=11 // pred_check_branch
        %395 = sbr.rel (%p393) target = $region24
      $region23: #{_basic_layer_jit.2} parent=11 // pred_region
        _
      $region24: #{_basic_layer_jit.2} parent=11 // pred_fallthru
        _
      // Predicated region
      $region25: #{_basic_layer_jit.2} parent=11 // pred_check
        %p396 = pneg %p153
      $region26: #{_basic_layer_jit.2} parent=11 // pred_check_branch
        %398 = sbr.rel (%p396) target = $region28
      $region27: #{_basic_layer_jit.2} parent=11 // pred_region
        _
      $region28: #{_basic_layer_jit.2} parent=11 // pred_fallthru
        _
      // Predicated region
      $region29: #{_basic_layer_jit.2} parent=11 // pred_check
        %p399 = pneg %p174
      $region30: #{_basic_layer_jit.2} parent=11 // pred_check_branch
        %401 = sbr.rel (%p399) target = $region32
      $region31: #{_basic_layer_jit.2} parent=11 // pred_region
        _
      $region32: #{_basic_layer_jit.2} parent=11 // pred_fallthru
        _
      // Predicated region
      $region33: #{_basic_layer_jit.2} parent=11 // pred_check
        %p402 = pneg %p195
      $region34: #{_basic_layer_jit.2} parent=11 // pred_check_branch
        %404 = sbr.rel (%p402) target = $region36
      $region35: #{_basic_layer_jit.2} parent=11 // pred_region
        _
      $region36: #{_basic_layer_jit.2} parent=11 // pred_fallthru
        _
      // Predicated region
      $region37: #{_basic_layer_jit.2} parent=11 // pred_check
        %p405 = pneg %p216
      $region38: #{_basic_layer_jit.2} parent=11 // pred_check_branch
        %407 = sbr.rel (%p405) target = $region40
      $region39: #{_basic_layer_jit.2} parent=11 // pred_region
        _
      $region40: #{_basic_layer_jit.2} parent=11 // pred_fallthru
        _
      // Predicated region
      $region41: #{_basic_layer_jit.2} parent=11 // pred_check
        %p408 = pneg %p237
      $region42: #{_basic_layer_jit.2} parent=11 // pred_check_branch
        %410 = sbr.rel (%p408) target = $region44
      $region43: #{_basic_layer_jit.2} parent=11 // pred_region
        _
      $region44: #{_basic_layer_jit.2} parent=11 // pred_fallthru
        _
      // Predicated region
      $region45: #{_basic_layer_jit.2} parent=11 // pred_check
        %p411 = pneg %p258
      $region46: #{_basic_layer_jit.2} parent=11 // pred_check_branch
        %413 = sbr.rel (%p411) target = $region48
      $region47: #{_basic_layer_jit.2} parent=11 // pred_region
        _
      $region48: #{_basic_layer_jit.2} parent=11 // pred_fallthru
        _
      // Predicated region
      $region49: #{_basic_layer_jit.2} parent=11 // pred_check
        %p414 = pneg %p279
      $region50: #{_basic_layer_jit.2} parent=11 // pred_check_branch
        %416 = sbr.rel (%p414) target = $region52
      $region51: #{_basic_layer_jit.2} parent=11 // pred_region
        _
      $region52: #{_basic_layer_jit.2} parent=11 // pred_fallthru
        _
      // Predicated region
      $region53: #{_basic_layer_jit.2} parent=11 // pred_check
        %p417 = pneg %p300
      $region54: #{_basic_layer_jit.2} parent=11 // pred_check_branch
        %419 = sbr.rel (%p417) target = $region56
      $region55: #{_basic_layer_jit.2} parent=11 // pred_region
        _
      $region56: #{_basic_layer_jit.2} parent=11 // pred_fallthru
        _
      // Predicated region
      $region57: #{_basic_layer_jit.2} parent=11 // pred_check
        %p420 = pneg %p321
      $region58: #{_basic_layer_jit.2} parent=11 // pred_check_branch
        %422 = sbr.rel (%p420) target = $region60
      $region59: #{_basic_layer_jit.2} parent=11 // pred_region
        _
      $region60: #{_basic_layer_jit.2} parent=11 // pred_fallthru
        _
      // Predicated region
      $region61: #{_basic_layer_jit.2} parent=11 // pred_check
        %p423 = pneg %p342
      $region62: #{_basic_layer_jit.2} parent=11 // pred_check_branch
        %425 = sbr.rel (%p423) target = $region64
      $region63: #{_basic_layer_jit.2} parent=11 // pred_region
        _
      $region64: #{_basic_layer_jit.2} parent=11 // pred_fallthru
        _
    $region12: #{_basic_layer_jit.2} parent=5 // pred_fallthru
      _
    %p426 = scmp.lt.s32.totalorder %s20, 4
    // Predicated region
    $region65: #{_basic_layer_jit.2} parent=5 // pred_check
      %p427 = pneg %p426
    $region66: #{_basic_layer_jit.2} parent=5 // pred_check_branch
      %429 = sbr.rel (%p427) target = $region68
    $region67: #{_basic_layer_jit.2} parent=5 // pred_region
      // Predicated region
      $region69: #{_basic_layer_jit.2} parent=67 // pred_check
        %p430 = pneg %p63
      $region70: #{_basic_layer_jit.2} parent=67 // pred_check_branch
        %432 = sbr.rel (%p430) target = $region72
      $region71: #{_basic_layer_jit.2} parent=67 // pred_region
        %s433 = smul.u32 4, %s28
        %p434 = scmp.lt.s32.totalorder %s27, 1
        %s435 = scalar_select %p434, %s27, 1
        %p436 = scmp.lt.s32.totalorder %s433, 7
        %s437 = scalar_select %p436, %s433, 7
        %p438 = scmp.lt.s32.totalorder %s29, 0
        %s439 = scalar_select %p438, %s29, 0
        %s440 = sadd.s32 %s439, %s437
        %s441 = smul.addr %s435, 8
        %s442 = sadd.s32 %s440, %s441
        %s443 = smul.addr %s442, 8
        %s444 = scalar_lea.vmem %s0, %s443
        %s445 = smul.u32 4, %s28
      $region72: #{_basic_layer_jit.2} parent=67 // pred_fallthru
        _
    $region68: #{_basic_layer_jit.2} parent=5 // pred_fallthru
      _
    %p446 = scmp.le.s32.totalorder 1, %s20
    %p447 = scmp.lt.s32.totalorder %s20, 5
    %p448 = pnand %p446, %p447
    %p449 = pneg %p448
    // Predicated region
    $region73: #{_basic_layer_jit.2} parent=5 // pred_check
      _
    $region74: #{_basic_layer_jit.2} parent=5 // pred_check_branch
      %451 = sbr.rel (%p448) target = $region76
    $region75: #{_basic_layer_jit.2} parent=5 // pred_region
      %s452 = ssub.s32 %s20, 1
      %s453 = smul.u32 4, %s31
      %p454 = scmp.lt.s32.totalorder %s30, 1
      %s455 = scalar_select %p454, %s30, 1
      %p456 = scmp.lt.s32.totalorder %s453, 7
      %s457 = scalar_select %p456, %s453, 7
      %p458 = scmp.lt.s32.totalorder %s32, 0
      %s459 = scalar_select %p458, %s32, 0
      %s460 = sadd.s32 %s459, %s457
      %s461 = smul.addr %s455, 8
      %s462 = sadd.s32 %s460, %s461
      %s463 = smul.addr %s462, 8
      %s464 = scalar_lea.vmem %s0, %s463
      %p465 = pneg %p69
      %p466 = pneg %p66
      %p467 = pneg %p90
      %p468 = pneg %p87
      %p469 = pneg %p111
      %p470 = pneg %p108
      %p471 = pneg %p132
      %p472 = pneg %p129
      %p473 = pneg %p153
      %p474 = pneg %p150
      %p475 = pneg %p174
      %p476 = pneg %p171
      %p477 = pneg %p195
      %p478 = pneg %p192
      %p479 = pneg %p216
      %p480 = pneg %p213
      %p481 = pneg %p237
      %p482 = pneg %p234
      %p483 = pneg %p258
      %p484 = pneg %p255
      %p485 = pneg %p279
      %p486 = pneg %p276
      %p487 = pneg %p300
      %p488 = pneg %p297
      %p489 = pneg %p321
      %p490 = pneg %p318
      %p491 = pneg %p342
      %p492 = pneg %p339
      %p493 = pneg %p372
      %p494 = pneg %p369
      %s495 = smul.u32 4, %s31
      %p496 = scmp.lt.s32.totalorder %s30, 1
      %s497 = scalar_select %p496, %s30, 1
      %p498 = scmp.lt.s32.totalorder %s495, 7
      %s499 = scalar_select %p498, %s495, 7
      %p500 = scmp.lt.s32.totalorder %s32, 0
      %s501 = scalar_select %p500, %s32, 0
      %s502 = sadd.s32 %s501, %s499
      %s503 = smul.addr %s497, 8
      %s504 = sadd.s32 %s502, %s503
      %s505 = smul.addr %s504, 8
      %s506 = scalar_lea.vmem %s14, %s505
      %s507 = smul.u32 4, %s31
      %p508 = scmp.lt.s32.totalorder %s30, 1
      %s509 = scalar_select %p508, %s30, 1
      %p510 = scmp.lt.s32.totalorder %s507, 7
      %s511 = scalar_select %p510, %s507, 7
      %p512 = scmp.lt.s32.totalorder %s32, 0
      %s513 = scalar_select %p512, %s32, 0
      %s514 = sadd.s32 %s513, %s511
      %s515 = smul.addr %s509, 8
      %s516 = sadd.s32 %s514, %s515
      %s517 = smul.addr %s516, 8
      %s518 = scalar_lea.vmem %s0, %s517
      %s519 = smul.u32 4, %s31
      %s520 = smul.u32 4, %s31
      %p521 = scmp.lt.s32.totalorder %s30, 1
      %s522 = scalar_select %p521, %s30, 1
      %p523 = scmp.lt.s32.totalorder %s520, 7
      %s524 = scalar_select %p523, %s520, 7
      %p525 = scmp.lt.s32.totalorder %s32, 0
      %s526 = scalar_select %p525, %s32, 0
      %s527 = sadd.s32 %s526, %s524
      %s528 = smul.addr %s522, 8
      %s529 = sadd.s32 %s527, %s528
      %s530 = smul.addr %s529, 8
      %s531 = scalar_lea.vmem %s14, %s530
      %s532 = smul.u32 4, %s31
      %v534 = vld [vmem:[%s518] sm:$0xf]
      %vm535 = vcmask 257024
      %536 = vst.msk [vmem:[#allocation2] sm:$0xf] %vm535, %v534
      %s537 = scalar_lea.vmem %s518, 8
      %v538 = vld [vmem:[%s537] sm:$0xf]
      %539 = vst.msk [vmem:[#allocation2 + $0x4] sm:$0xf] %vm535, %v538
      %s540 = scalar_lea.vmem %s518, 16
      %v541 = vld [vmem:[%s540] sm:$0xf]
      %542 = vst.msk [vmem:[#allocation2 + $0x8] sm:$0xf] %vm535, %v541
      %s543 = scalar_lea.vmem %s518, 24
      %v544 = vld [vmem:[%s543] sm:$0xf]
      %545 = vst.msk [vmem:[#allocation2 + $0xc] sm:$0xf] %vm535, %v544
      %v546 = vld [vmem:[%s518 + $0x4] sm:$0xf]
      %547 = vst.msk [vmem:[#allocation2 + $0x10] sm:$0xf] %vm535, %v546
      %v548 = vld [vmem:[%s537 + $0x4] sm:$0xf]
      %549 = vst.msk [vmem:[#allocation2 + $0x14] sm:$0xf] %vm535, %v548
      %v550 = vld [vmem:[%s540 + $0x4] sm:$0xf]
      %551 = vst.msk [vmem:[#allocation2 + $0x18] sm:$0xf] %vm535, %v550
      %v552 = vld [vmem:[%s543 + $0x4] sm:$0xf]
      %553 = vst.msk [vmem:[#allocation2 + $0x1c] sm:$0xf] %vm535, %v552
      %v554 = vld [vmem:[#allocation2] sm:$0xff]
      %v555 = vld [vmem:[#allocation2 + $0x8] sm:$0xff]
      %v556 = vld [vmem:[#allocation2 + $0x10] sm:$0xff]
      %v557 = vld [vmem:[#allocation2 + $0x18] sm:$0xff]
      %vm558 = vcmask 261120
      %v559 = vsel %vm558, %v554, 0.0
      %560 = vadd.xlane.f32.xlu0 %v559
      %v561 = vpop.xlane.xlu0 %560
      %v562 = vsel %vm558, %v555, 0.0
      %563 = vadd.xlane.f32.xlu0 %v562
      %v564 = vpop.xlane.xlu0 %563
      %v565 = vsel %vm558, %v556, 0.0
      %566 = vadd.xlane.f32.xlu0 %v565
      %v567 = vpop.xlane.xlu0 %566
      %v568 = vsel %vm558, %v557, 0.0
      %569 = vadd.xlane.f32.xlu0 %v568
      %v570 = vpop.xlane.xlu0 %569
      %v571 = vrcp.pop 32.0
      %v572 = vmul.f32 %v561, %v571
      %v573 = vmul.f32 %v564, %v571
      %v574 = vmul.f32 %v567, %v571
      %v575 = vmul.f32 %v570, %v571
      %v576 = vsub.f32 %v554, %v572
      %v577 = vsub.f32 %v555, %v573
      %v578 = vsub.f32 %v556, %v574
      %v579 = vsub.f32 %v557, %v575
      %v580 = vmul.f32 %v576, %v576
      %v581 = vmul.f32 %v577, %v577
      %v582 = vmul.f32 %v578, %v578
      %v583 = vmul.f32 %v579, %v579
      %v584 = vsel %vm558, %v580, 0.0
      %585 = vadd.xlane.f32.xlu0 %v584
      %v586 = vpop.xlane.xlu0 %585
      %v587 = vsel %vm558, %v581, 0.0
      %588 = vadd.xlane.f32.xlu0 %v587
      %v589 = vpop.xlane.xlu0 %588
      %v590 = vsel %vm558, %v582, 0.0
      %591 = vadd.xlane.f32.xlu0 %v590
      %v592 = vpop.xlane.xlu0 %591
      %v593 = vsel %vm558, %v583, 0.0
      %594 = vadd.xlane.f32.xlu0 %v593
      %v595 = vpop.xlane.xlu0 %594
      %v596 = vmul.f32 %v586, %v571
      %v597 = vmul.f32 %v589, %v571
      %v598 = vmul.f32 %v592, %v571
      %v599 = vmul.f32 %v595, %v571
      %v600 = vadd.f32 %v596, 1e-05
      %v601 = vadd.f32 %v597, 1e-05
      %v602 = vadd.f32 %v598, 1e-05
      %v603 = vadd.f32 %v599, 1e-05
      %v604 = vrsqrt.pop %v600
      %v605 = vrsqrt.pop %v601
      %v606 = vrsqrt.pop %v602
      %v607 = vrsqrt.pop %v603
      %v608 = vmul.f32 %v576, %v604
      %v609 = vmul.f32 %v577, %v605
      %v610 = vmul.f32 %v578, %v606
      %v611 = vmul.f32 %v579, %v607
      %v612 = vld [vmem:[%s2] sm:$0x1]
      %v614 = vlaneseq
      %v615 = vshrl.u32 %v614, 7
      %v616 = vsub.s32 0, %v615
      %v617 = vrot.slane %v612, %v616
      %v619 = vmul.f32 %v608, %v617
      %v620 = vmul.f32 %v609, %v617
      %v621 = vmul.f32 %v610, %v617
      %v622 = vmul.f32 %v611, %v617
      %v623 = vld [vmem:[%s3] sm:$0x1]
      %v625 = vlaneseq
      %v626 = vshrl.u32 %v625, 7
      %v627 = vsub.s32 0, %v626
      %v628 = vrot.slane %v623, %v627
      %v630 = vadd.f32 %v619, %v628
      %v631 = vadd.f32 %v620, %v628
      %v632 = vadd.f32 %v621, %v628
      %v633 = vadd.f32 %v622, %v628
      %v634 = vpack.c.bf16 %v631, %v630
      %v635 = vpack.c.bf16 %v633, %v632
      %v636 = vld [vmem:[%s4] sm:$0xf]
      %v637 = vld [vmem:[%s4 + $0x4] sm:$0xf]
      %v638 = vld [vmem:[%s4 + $0x8] sm:$0xf]
      %v639 = vld [vmem:[%s4 + $0xc] sm:$0xf]
      %v640 = vld [vmem:[%s5] sm:$0x1]
      %v642 = vlaneseq
      %v643 = vshrl.u32 %v642, 7
      %v644 = vsub.s32 0, %v643
      %v645 = vrot.slane %v640, %v644
      %v651 = vunpack.c.l.b16 %v636
      %v652 = vunpack.c.l.b16 %v637
      %v653 = vunpack.c.l.b16 %v638
      %v654 = vunpack.c.l.b16 %v639
      %v655 = vpack.c.b16 %v652, %v651
      %v656 = vpack.c.b16 %v654, %v653
      %v660 = vsel %vm558, %v634, 0
      %v663 = vsel %vm558, %v635, 0
      %665 = vmatprep.subr.bf16.mxu0 0
      %666 = vmatpush1.bf16.msra.mxu0 0
      %667 = vmatprep.subr.bf16.mxu0 0
      %668 = vmatpush1.bf16.msra.mxu0 0
      %669 = vmatprep.subr.bf16.mxu0 0
      %670 = vmatpush1.bf16.msra.mxu0 0
      %671 = vmatprep.subr.bf16.mxu0 0
      %672 = vmatpush1.bf16.msra.mxu0 0
      %673 = vmatprep.subr.bf16.mxu0 0
      %674 = vmatpush1.bf16.msra.mxu0 0
      %675 = vmatprep.subr.bf16.mxu0 0
      %676 = vmatpush1.bf16.msra.mxu0 0
      %677 = vmatprep.subr.bf16.mxu0 0
      %678 = vmatpush1.bf16.msra.mxu0 %v656
      %679 = vmatprep.subr.bf16.mxu0 0
      %680 = vmatpush1.bf16.msra.mxu0 %v655
      %681 = vmatprep.subr.bf16.mxu0 0
      %682 = vmatpush2.bf16.msra.mxu0 0
      %683 = vmatprep.subr.bf16.mxu0 0
      %684 = vmatpush2.bf16.msra.mxu0 0
      %685 = vmatprep.subr.bf16.mxu0 0
      %686 = vmatpush2.bf16.msra.mxu0 0
      %687 = vmatprep.subr.bf16.mxu0 0
      %688 = vmatpush2.bf16.msra.mxu0 0
      %689 = vmatprep.subr.bf16.mxu0 0
      %690 = vmatpush2.bf16.msra.mxu0 0
      %691 = vmatprep.subr.bf16.mxu0 0
      %692 = vmatpush2.bf16.msra.mxu0 0
      %693 = vmatprep.subr.bf16.mxu0 0
      %694 = vmatpush2.bf16.msra.mxu0 0
      %695 = vmatprep.subr.bf16.mxu0 0
      %696 = vmatpush2.bf16.msra.mxu0 0
      %697 = vmatprep.mubr.bf16.mxu0 0
      %698 = vmatmul.mubr.bf16.gmra.mxu0 %v660
      %v699 = vpop.f32.mrf.mxu0
      %v700 = vadd.f32 %v645, %v699
      %v701 = vpop.f32.mrf.mxu0
      %v702 = vpop.f32.mrf.mxu0
      %v703 = vadd.f32 %v645, %v702
      %v704 = vpop.f32.mrf.mxu0
      %705 = vmatprep.mubr.bf16.mxu0 0
      %706 = vmatmul.mubr.bf16.gmra.mxu0 %v663
      %v707 = vpop.f32.mrf.mxu0
      %v708 = vadd.f32 %v645, %v707
      %v709 = vpop.f32.mrf.mxu0
      %v710 = vpop.f32.mrf.mxu0
      %v711 = vadd.f32 %v645, %v710
      %v712 = vpop.f32.mrf.mxu0
      %713 = vdwg.mxu0
      %v714 = vmul.f32 %v700, 0.35355338
      %v715 = vmul.f32 %v703, 0.35355338
      %v716 = vmul.f32 %v708, 0.35355338
      %v717 = vmul.f32 %v711, 0.35355338
      %722 = vrot.lane.b32.xlu0 %v714, 120
      %v723 = vpop.permute.xlu0 %722
      %724 = vrot.lane.b32.xlu0 %v715, 120
      %v725 = vpop.permute.xlu0 %724
      %726 = vrot.lane.b32.xlu0 %v716, 120
      %v727 = vpop.permute.xlu0 %726
      %728 = vrot.lane.b32.xlu0 %v717, 120
      %v729 = vpop.permute.xlu0 %728
      %734 = vrot.lane.b32.xlu0 %v714, 112
      %v735 = vpop.permute.xlu0 %734
      %736 = vrot.lane.b32.xlu0 %v715, 112
      %v737 = vpop.permute.xlu0 %736
      %738 = vrot.lane.b32.xlu0 %v716, 112
      %v739 = vpop.permute.xlu0 %738
      %740 = vrot.lane.b32.xlu0 %v717, 112
      %v741 = vpop.permute.xlu0 %740
      %746 = vrot.lane.b32.xlu0 %v714, 104
      %v747 = vpop.permute.xlu0 %746
      %748 = vrot.lane.b32.xlu0 %v715, 104
      %v749 = vpop.permute.xlu0 %748
      %750 = vrot.lane.b32.xlu0 %v716, 104
      %v751 = vpop.permute.xlu0 %750
      %752 = vrot.lane.b32.xlu0 %v717, 104
      %v753 = vpop.permute.xlu0 %752
      %v758 = vpack.c.bf16 %v715, %v714
      %v759 = vpack.c.bf16 %v717, %v716
      %v760 = vpack.c.bf16 %v725, %v723
      %v761 = vpack.c.bf16 %v729, %v727
      %v762 = vpack.c.bf16 %v737, %v735
      %v763 = vpack.c.bf16 %v741, %v739
      %v764 = vpack.c.bf16 %v749, %v747
      %v765 = vpack.c.bf16 %v753, %v751
      %770 = vrot.lane.b32.xlu0 %v700, 120
      %v771 = vpop.permute.xlu0 %770
      %772 = vrot.lane.b32.xlu0 %v703, 120
      %v773 = vpop.permute.xlu0 %772
      %774 = vrot.lane.b32.xlu0 %v708, 120
      %v775 = vpop.permute.xlu0 %774
      %776 = vrot.lane.b32.xlu0 %v711, 120
      %v777 = vpop.permute.xlu0 %776
      %782 = vrot.lane.b32.xlu0 %v700, 112
      %v783 = vpop.permute.xlu0 %782
      %784 = vrot.lane.b32.xlu0 %v703, 112
      %v785 = vpop.permute.xlu0 %784
      %786 = vrot.lane.b32.xlu0 %v708, 112
      %v787 = vpop.permute.xlu0 %786
      %788 = vrot.lane.b32.xlu0 %v711, 112
      %v789 = vpop.permute.xlu0 %788
      %794 = vrot.lane.b32.xlu0 %v700, 104
      %v795 = vpop.permute.xlu0 %794
      %796 = vrot.lane.b32.xlu0 %v703, 104
      %v797 = vpop.permute.xlu0 %796
      %798 = vrot.lane.b32.xlu0 %v708, 104
      %v799 = vpop.permute.xlu0 %798
      %800 = vrot.lane.b32.xlu0 %v711, 104
      %v801 = vpop.permute.xlu0 %800
      %v806 = vpack.c.bf16 %v703, %v700
      %v807 = vpack.c.bf16 %v711, %v708
      %v808 = vpack.c.bf16 %v773, %v771
      %v809 = vpack.c.bf16 %v777, %v775
      %v810 = vpack.c.bf16 %v785, %v783
      %v811 = vpack.c.bf16 %v789, %v787
      %v812 = vpack.c.bf16 %v797, %v795
      %v813 = vpack.c.bf16 %v801, %v799
      %815 = vrot.lane.b32.xlu0 %v806, 96
      %v816 = vpop.permute.xlu0 %815
      %vm817 = vcmask 64512
      %v819 = vsel %vm817, %v758, 0
      %v822 = vsel %vm817, %v816, 0
      %824 = vmatprep.subr.bf16.mxu0 0
      %825 = vmatpush1.bf16.xpose.msra.mxu0 0
      %826 = vmatprep.subr.bf16.mxu0 0
      %827 = vmatpush1.bf16.xpose.msra.mxu0 0
      %828 = vmatprep.subr.bf16.mxu0 0
      %829 = vmatpush1.bf16.xpose.msra.mxu0 0
      %830 = vmatprep.subr.bf16.mxu0 0
      %831 = vmatpush1.bf16.xpose.msra.mxu0 0
      %832 = vmatprep.subr.bf16.mxu0 0
      %833 = vmatpush1.bf16.xpose.msra.mxu0 0
      %834 = vmatprep.subr.bf16.mxu0 0
      %835 = vmatpush1.bf16.xpose.msra.mxu0 0
      %836 = vmatprep.subr.bf16.mxu0 0
      %837 = vmatpush1.bf16.xpose.msra.mxu0 0
      %838 = vmatprep.subr.bf16.mxu0 0
      %839 = vmatpush1.bf16.xpose.msra.mxu0 %v822
      %840 = vmatprep.subr.bf16.mxu0 0
      %841 = vmatpush2.bf16.xpose.msra.mxu0 0
      %842 = vmatprep.subr.bf16.mxu0 0
      %843 = vmatpush2.bf16.xpose.msra.mxu0 0
      %844 = vmatprep.subr.bf16.mxu0 0
      %845 = vmatpush2.bf16.xpose.msra.mxu0 0
      %846 = vmatprep.subr.bf16.mxu0 0
      %847 = vmatpush2.bf16.xpose.msra.mxu0 0
      %848 = vmatprep.subr.bf16.mxu0 0
      %849 = vmatpush2.bf16.xpose.msra.mxu0 0
      %850 = vmatprep.subr.bf16.mxu0 0
      %851 = vmatpush2.bf16.xpose.msra.mxu0 0
      %852 = vmatprep.subr.bf16.mxu0 0
      %853 = vmatpush2.bf16.xpose.msra.mxu0 0
      %854 = vmatprep.subr.bf16.mxu0 0
      %855 = vmatpush2.bf16.xpose.msra.mxu0 0
      %856 = vmatprep.mubr.bf16.mxu0 0
      %857 = vmatmul.mubr.bf16.gmra.mxu0 %v819
      %v858 = vpop.f32.mrf.mxu0
      %v859 = vadd.f32 0.0, %v858
      %v860 = vpop.f32.mrf.mxu0
      %v861 = vpop.f32.mrf.mxu0
      %v862 = vadd.f32 0.0, %v861
      %v863 = vpop.f32.mrf.mxu0
      %864 = vdwg.mxu0
      %866 = vrot.lane.b32.xlu0 %v807, 96
      %v867 = vpop.permute.xlu0 %866
      %v869 = vsel %vm817, %v759, 0
      %v872 = vsel %vm817, %v867, 0
      %874 = vmatprep.subr.bf16.mxu0 0
      %875 = vmatpush1.bf16.xpose.msra.mxu0 0
      %876 = vmatprep.subr.bf16.mxu0 0
      %877 = vmatpush1.bf16.xpose.msra.mxu0 0
      %878 = vmatprep.subr.bf16.mxu0 0
      %879 = vmatpush1.bf16.xpose.msra.mxu0 0
      %880 = vmatprep.subr.bf16.mxu0 0
      %881 = vmatpush1.bf16.xpose.msra.mxu0 0
      %882 = vmatprep.subr.bf16.mxu0 0
      %883 = vmatpush1.bf16.xpose.msra.mxu0 0
      %884 = vmatprep.subr.bf16.mxu0 0
      %885 = vmatpush1.bf16.xpose.msra.mxu0 0
      %886 = vmatprep.subr.bf16.mxu0 0
      %887 = vmatpush1.bf16.xpose.msra.mxu0 0
      %888 = vmatprep.subr.bf16.mxu0 0
      %889 = vmatpush1.bf16.xpose.msra.mxu0 %v872
      %890 = vmatprep.subr.bf16.mxu0 0
      %891 = vmatpush2.bf16.xpose.msra.mxu0 0
      %892 = vmatprep.subr.bf16.mxu0 0
      %893 = vmatpush2.bf16.xpose.msra.mxu0 0
      %894 = vmatprep.subr.bf16.mxu0 0
      %895 = vmatpush2.bf16.xpose.msra.mxu0 0
      %896 = vmatprep.subr.bf16.mxu0 0
      %897 = vmatpush2.bf16.xpose.msra.mxu0 0
      %898 = vmatprep.subr.bf16.mxu0 0
      %899 = vmatpush2.bf16.xpose.msra.mxu0 0
      %900 = vmatprep.subr.bf16.mxu0 0
      %901 = vmatpush2.bf16.xpose.msra.mxu0 0
      %902 = vmatprep.subr.bf16.mxu0 0
      %903 = vmatpush2.bf16.xpose.msra.mxu0 0
      %904 = vmatprep.subr.bf16.mxu0 0
      %905 = vmatpush2.bf16.xpose.msra.mxu0 0
      %906 = vmatprep.mubr.bf16.mxu0 0
      %907 = vmatmul.mubr.bf16.gmra.mxu0 %v869
      %v908 = vpop.f32.mrf.mxu0
      %v909 = vadd.f32 0.0, %v908
      %v910 = vpop.f32.mrf.mxu0
      %v911 = vpop.f32.mrf.mxu0
      %v912 = vadd.f32 0.0, %v911
      %v913 = vpop.f32.mrf.mxu0
      %914 = vdwg.mxu0
      %916 = vrot.lane.b32.xlu0 %v808, 96
      %v917 = vpop.permute.xlu0 %916
      %v919 = vsel %vm817, %v760, 0
      %v922 = vsel %vm817, %v917, 0
      %924 = vmatprep.subr.bf16.mxu0 0
      %925 = vmatpush1.bf16.xpose.msra.mxu0 0
      %926 = vmatprep.subr.bf16.mxu0 0
      %927 = vmatpush1.bf16.xpose.msra.mxu0 0
      %928 = vmatprep.subr.bf16.mxu0 0
      %929 = vmatpush1.bf16.xpose.msra.mxu0 0
      %930 = vmatprep.subr.bf16.mxu0 0
      %931 = vmatpush1.bf16.xpose.msra.mxu0 0
      %932 = vmatprep.subr.bf16.mxu0 0
      %933 = vmatpush1.bf16.xpose.msra.mxu0 0
      %934 = vmatprep.subr.bf16.mxu0 0
      %935 = vmatpush1.bf16.xpose.msra.mxu0 0
      %936 = vmatprep.subr.bf16.mxu0 0
      %937 = vmatpush1.bf16.xpose.msra.mxu0 0
      %938 = vmatprep.subr.bf16.mxu0 0
      %939 = vmatpush1.bf16.xpose.msra.mxu0 %v922
      %940 = vmatprep.subr.bf16.mxu0 0
      %941 = vmatpush2.bf16.xpose.msra.mxu0 0
      %942 = vmatprep.subr.bf16.mxu0 0
      %943 = vmatpush2.bf16.xpose.msra.mxu0 0
      %944 = vmatprep.subr.bf16.mxu0 0
      %945 = vmatpush2.bf16.xpose.msra.mxu0 0
      %946 = vmatprep.subr.bf16.mxu0 0
      %947 = vmatpush2.bf16.xpose.msra.mxu0 0
      %948 = vmatprep.subr.bf16.mxu0 0
      %949 = vmatpush2.bf16.xpose.msra.mxu0 0
      %950 = vmatprep.subr.bf16.mxu0 0
      %951 = vmatpush2.bf16.xpose.msra.mxu0 0
      %952 = vmatprep.subr.bf16.mxu0 0
      %953 = vmatpush2.bf16.xpose.msra.mxu0 0
      %954 = vmatprep.subr.bf16.mxu0 0
      %955 = vmatpush2.bf16.xpose.msra.mxu0 0
      %956 = vmatprep.mubr.bf16.mxu0 0
      %957 = vmatmul.mubr.bf16.gmra.mxu0 %v919
      %v958 = vpop.f32.mrf.mxu0
      %v959 = vadd.f32 0.0, %v958
      %v960 = vpop.f32.mrf.mxu0
      %v961 = vpop.f32.mrf.mxu0
      %v962 = vadd.f32 0.0, %v961
      %v963 = vpop.f32.mrf.mxu0
      %964 = vdwg.mxu0
      %966 = vrot.lane.b32.xlu0 %v809, 96
      %v967 = vpop.permute.xlu0 %966
      %v969 = vsel %vm817, %v761, 0
      %v972 = vsel %vm817, %v967, 0
      %974 = vmatprep.subr.bf16.mxu0 0
      %975 = vmatpush1.bf16.xpose.msra.mxu0 0
      %976 = vmatprep.subr.bf16.mxu0 0
      %977 = vmatpush1.bf16.xpose.msra.mxu0 0
      %978 = vmatprep.subr.bf16.mxu0 0
      %979 = vmatpush1.bf16.xpose.msra.mxu0 0
      %980 = vmatprep.subr.bf16.mxu0 0
      %981 = vmatpush1.bf16.xpose.msra.mxu0 0
      %982 = vmatprep.subr.bf16.mxu0 0
      %983 = vmatpush1.bf16.xpose.msra.mxu0 0
      %984 = vmatprep.subr.bf16.mxu0 0
      %985 = vmatpush1.bf16.xpose.msra.mxu0 0
      %986 = vmatprep.subr.bf16.mxu0 0
      %987 = vmatpush1.bf16.xpose.msra.mxu0 0
      %988 = vmatprep.subr.bf16.mxu0 0
      %989 = vmatpush1.bf16.xpose.msra.mxu0 %v972
      %990 = vmatprep.subr.bf16.mxu0 0
      %991 = vmatpush2.bf16.xpose.msra.mxu0 0
      %992 = vmatprep.subr.bf16.mxu0 0
      %993 = vmatpush2.bf16.xpose.msra.mxu0 0
      %994 = vmatprep.subr.bf16.mxu0 0
      %995 = vmatpush2.bf16.xpose.msra.mxu0 0
      %996 = vmatprep.subr.bf16.mxu0 0
      %997 = vmatpush2.bf16.xpose.msra.mxu0 0
      %998 = vmatprep.subr.bf16.mxu0 0
      %999 = vmatpush2.bf16.xpose.msra.mxu0 0
      %1000 = vmatprep.subr.bf16.mxu0 0
      %1001 = vmatpush2.bf16.xpose.msra.mxu0 0
      %1002 = vmatprep.subr.bf16.mxu0 0
      %1003 = vmatpush2.bf16.xpose.msra.mxu0 0
      %1004 = vmatprep.subr.bf16.mxu0 0
      %1005 = vmatpush2.bf16.xpose.msra.mxu0 0
      %1006 = vmatprep.mubr.bf16.mxu0 0
      %1007 = vmatmul.mubr.bf16.gmra.mxu0 %v969
      %v1008 = vpop.f32.mrf.mxu0
      %v1009 = vadd.f32 0.0, %v1008
      %v1010 = vpop.f32.mrf.mxu0
      %v1011 = vpop.f32.mrf.mxu0
      %v1012 = vadd.f32 0.0, %v1011
      %v1013 = vpop.f32.mrf.mxu0
      %1014 = vdwg.mxu0
      %1016 = vrot.lane.b32.xlu0 %v810, 96
      %v1017 = vpop.permute.xlu0 %1016
      %v1019 = vsel %vm817, %v762, 0
      %v1022 = vsel %vm817, %v1017, 0
      %1024 = vmatprep.subr.bf16.mxu0 0
      %1025 = vmatpush1.bf16.xpose.msra.mxu0 0
      %1026 = vmatprep.subr.bf16.mxu0 0
      %1027 = vmatpush1.bf16.xpose.msra.mxu0 0
      %1028 = vmatprep.subr.bf16.mxu0 0
      %1029 = vmatpush1.bf16.xpose.msra.mxu0 0
      %1030 = vmatprep.subr.bf16.mxu0 0
      %1031 = vmatpush1.bf16.xpose.msra.mxu0 0
      %1032 = vmatprep.subr.bf16.mxu0 0
      %1033 = vmatpush1.bf16.xpose.msra.mxu0 0
      %1034 = vmatprep.subr.bf16.mxu0 0
      %1035 = vmatpush1.bf16.xpose.msra.mxu0 0
      %1036 = vmatprep.subr.bf16.mxu0 0
      %1037 = vmatpush1.bf16.xpose.msra.mxu0 0
      %1038 = vmatprep.subr.bf16.mxu0 0
      %1039 = vmatpush1.bf16.xpose.msra.mxu0 %v1022
      %1040 = vmatprep.subr.bf16.mxu0 0
      %1041 = vmatpush2.bf16.xpose.msra.mxu0 0
      %1042 = vmatprep.subr.bf16.mxu0 0
      %1043 = vmatpush2.bf16.xpose.msra.mxu0 0
      %1044 = vmatprep.subr.bf16.mxu0 0
      %1045 = vmatpush2.bf16.xpose.msra.mxu0 0
      %1046 = vmatprep.subr.bf16.mxu0 0
      %1047 = vmatpush2.bf16.xpose.msra.mxu0 0
      %1048 = vmatprep.subr.bf16.mxu0 0
      %1049 = vmatpush2.bf16.xpose.msra.mxu0 0
      %1050 = vmatprep.subr.bf16.mxu0 0
      %1051 = vmatpush2.bf16.xpose.msra.mxu0 0
      %1052 = vmatprep.subr.bf16.mxu0 0
      %1053 = vmatpush2.bf16.xpose.msra.mxu0 0
      %1054 = vmatprep.subr.bf16.mxu0 0
      %1055 = vmatpush2.bf16.xpose.msra.mxu0 0
      %1056 = vmatprep.mubr.bf16.mxu0 0
      %1057 = vmatmul.mubr.bf16.gmra.mxu0 %v1019
      %v1058 = vpop.f32.mrf.mxu0
      %v1059 = vadd.f32 0.0, %v1058
      %v1060 = vpop.f32.mrf.mxu0
      %v1061 = vpop.f32.mrf.mxu0
      %v1062 = vadd.f32 0.0, %v1061
      %v1063 = vpop.f32.mrf.mxu0
      %1064 = vdwg.mxu0
      %1066 = vrot.lane.b32.xlu0 %v811, 96
      %v1067 = vpop.permute.xlu0 %1066
      %v1069 = vsel %vm817, %v763, 0
      %v1072 = vsel %vm817, %v1067, 0
      %1074 = vmatprep.subr.bf16.mxu0 0
      %1075 = vmatpush1.bf16.xpose.msra.mxu0 0
      %1076 = vmatprep.subr.bf16.mxu0 0
      %1077 = vmatpush1.bf16.xpose.msra.mxu0 0
      %1078 = vmatprep.subr.bf16.mxu0 0
      %1079 = vmatpush1.bf16.xpose.msra.mxu0 0
      %1080 = vmatprep.subr.bf16.mxu0 0
      %1081 = vmatpush1.bf16.xpose.msra.mxu0 0
      %1082 = vmatprep.subr.bf16.mxu0 0
      %1083 = vmatpush1.bf16.xpose.msra.mxu0 0
      %1084 = vmatprep.subr.bf16.mxu0 0
      %1085 = vmatpush1.bf16.xpose.msra.mxu0 0
      %1086 = vmatprep.subr.bf16.mxu0 0
      %1087 = vmatpush1.bf16.xpose.msra.mxu0 0
      %1088 = vmatprep.subr.bf16.mxu0 0
      %1089 = vmatpush1.bf16.xpose.msra.mxu0 %v1072
      %1090 = vmatprep.subr.bf16.mxu0 0
      %1091 = vmatpush2.bf16.xpose.msra.mxu0 0
      %1092 = vmatprep.subr.bf16.mxu0 0
      %1093 = vmatpush2.bf16.xpose.msra.mxu0 0
      %1094 = vmatprep.subr.bf16.mxu0 0
      %1095 = vmatpush2.bf16.xpose.msra.mxu0 0
      %1096 = vmatprep.subr.bf16.mxu0 0
      %1097 = vmatpush2.bf16.xpose.msra.mxu0 0
      %1098 = vmatprep.subr.bf16.mxu0 0
      %1099 = vmatpush2.bf16.xpose.msra.mxu0 0
      %1100 = vmatprep.subr.bf16.mxu0 0
      %1101 = vmatpush2.bf16.xpose.msra.mxu0 0
      %1102 = vmatprep.subr.bf16.mxu0 0
      %1103 = vmatpush2.bf16.xpose.msra.mxu0 0
      %1104 = vmatprep.subr.bf16.mxu0 0
      %1105 = vmatpush2.bf16.xpose.msra.mxu0 0
      %1106 = vmatprep.mubr.bf16.mxu0 0
      %1107 = vmatmul.mubr.bf16.gmra.mxu0 %v1069
      %v1108 = vpop.f32.mrf.mxu0
      %v1109 = vadd.f32 0.0, %v1108
      %v1110 = vpop.f32.mrf.mxu0
      %v1111 = vpop.f32.mrf.mxu0
      %v1112 = vadd.f32 0.0, %v1111
      %v1113 = vpop.f32.mrf.mxu0
      %1114 = vdwg.mxu0
      %1116 = vrot.lane.b32.xlu0 %v812, 96
      %v1117 = vpop.permute.xlu0 %1116
      %v1119 = vsel %vm817, %v764, 0
      %v1122 = vsel %vm817, %v1117, 0
      %1124 = vmatprep.subr.bf16.mxu0 0
      %1125 = vmatpush1.bf16.xpose.msra.mxu0 0
      %1126 = vmatprep.subr.bf16.mxu0 0
      %1127 = vmatpush1.bf16.xpose.msra.mxu0 0
      %1128 = vmatprep.subr.bf16.mxu0 0
      %1129 = vmatpush1.bf16.xpose.msra.mxu0 0
      %1130 = vmatprep.subr.bf16.mxu0 0
      %1131 = vmatpush1.bf16.xpose.msra.mxu0 0
      %1132 = vmatprep.subr.bf16.mxu0 0
      %1133 = vmatpush1.bf16.xpose.msra.mxu0 0
      %1134 = vmatprep.subr.bf16.mxu0 0
      %1135 = vmatpush1.bf16.xpose.msra.mxu0 0
      %1136 = vmatprep.subr.bf16.mxu0 0
      %1137 = vmatpush1.bf16.xpose.msra.mxu0 0
      %1138 = vmatprep.subr.bf16.mxu0 0
      %1139 = vmatpush1.bf16.xpose.msra.mxu0 %v1122
      %1140 = vmatprep.subr.bf16.mxu0 0
      %1141 = vmatpush2.bf16.xpose.msra.mxu0 0
      %1142 = vmatprep.subr.bf16.mxu0 0
      %1143 = vmatpush2.bf16.xpose.msra.mxu0 0
      %1144 = vmatprep.subr.bf16.mxu0 0
      %1145 = vmatpush2.bf16.xpose.msra.mxu0 0
      %1146 = vmatprep.subr.bf16.mxu0 0
      %1147 = vmatpush2.bf16.xpose.msra.mxu0 0
      %1148 = vmatprep.subr.bf16.mxu0 0
      %1149 = vmatpush2.bf16.xpose.msra.mxu0 0
      %1150 = vmatprep.subr.bf16.mxu0 0
      %1151 = vmatpush2.bf16.xpose.msra.mxu0 0
      %1152 = vmatprep.subr.bf16.mxu0 0
      %1153 = vmatpush2.bf16.xpose.msra.mxu0 0
      %1154 = vmatprep.subr.bf16.mxu0 0
      %1155 = vmatpush2.bf16.xpose.msra.mxu0 0
      %1156 = vmatprep.mubr.bf16.mxu0 0
      %1157 = vmatmul.mubr.bf16.gmra.mxu0 %v1119
      %v1158 = vpop.f32.mrf.mxu0
      %v1159 = vadd.f32 0.0, %v1158
      %v1160 = vpop.f32.mrf.mxu0
      %v1161 = vpop.f32.mrf.mxu0
      %v1162 = vadd.f32 0.0, %v1161
      %v1163 = vpop.f32.mrf.mxu0
      %1164 = vdwg.mxu0
      %1166 = vrot.lane.b32.xlu0 %v813, 96
      %v1167 = vpop.permute.xlu0 %1166
      %v1169 = vsel %vm817, %v765, 0
      %v1172 = vsel %vm817, %v1167, 0
      %1174 = vmatprep.subr.bf16.mxu0 0
      %1175 = vmatpush1.bf16.xpose.msra.mxu0 0
      %1176 = vmatprep.subr.bf16.mxu0 0
      %1177 = vmatpush1.bf16.xpose.msra.mxu0 0
      %1178 = vmatprep.subr.bf16.mxu0 0
      %1179 = vmatpush1.bf16.xpose.msra.mxu0 0
      %1180 = vmatprep.subr.bf16.mxu0 0
      %1181 = vmatpush1.bf16.xpose.msra.mxu0 0
      %1182 = vmatprep.subr.bf16.mxu0 0
      %1183 = vmatpush1.bf16.xpose.msra.mxu0 0
      %1184 = vmatprep.subr.bf16.mxu0 0
      %1185 = vmatpush1.bf16.xpose.msra.mxu0 0
      %1186 = vmatprep.subr.bf16.mxu0 0
      %1187 = vmatpush1.bf16.xpose.msra.mxu0 0
      %1188 = vmatprep.subr.bf16.mxu0 0
      %1189 = vmatpush1.bf16.xpose.msra.mxu0 %v1172
      %1190 = vmatprep.subr.bf16.mxu0 0
      %1191 = vmatpush2.bf16.xpose.msra.mxu0 0
      %1192 = vmatprep.subr.bf16.mxu0 0
      %1193 = vmatpush2.bf16.xpose.msra.mxu0 0
      %1194 = vmatprep.subr.bf16.mxu0 0
      %1195 = vmatpush2.bf16.xpose.msra.mxu0 0
      %1196 = vmatprep.subr.bf16.mxu0 0
      %1197 = vmatpush2.bf16.xpose.msra.mxu0 0
      %1198 = vmatprep.subr.bf16.mxu0 0
      %1199 = vmatpush2.bf16.xpose.msra.mxu0 0
      %1200 = vmatprep.subr.bf16.mxu0 0
      %1201 = vmatpush2.bf16.xpose.msra.mxu0 0
      %1202 = vmatprep.subr.bf16.mxu0 0
      %1203 = vmatpush2.bf16.xpose.msra.mxu0 0
      %1204 = vmatprep.subr.bf16.mxu0 0
      %1205 = vmatpush2.bf16.xpose.msra.mxu0 0
      %1206 = vmatprep.mubr.bf16.mxu0 0
      %1207 = vmatmul.mubr.bf16.gmra.mxu0 %v1169
      %v1208 = vpop.f32.mrf.mxu0
      %v1209 = vadd.f32 0.0, %v1208
      %v1210 = vpop.f32.mrf.mxu0
      %v1211 = vpop.f32.mrf.mxu0
      %v1212 = vadd.f32 0.0, %v1211
      %v1213 = vpop.f32.mrf.mxu0
      %1214 = vdwg.mxu0
      %v1215 = vld [vmem:[%s1] sm:$0xff]
      %v1216 = vld [vmem:[%s1 + $0x8] sm:$0xff]
      %v1217 = vld [vmem:[%s1 + $0x10] sm:$0xff]
      %v1218 = vld [vmem:[%s1 + $0x18] sm:$0xff]
      %v1219 = vld [vmem:[%s1 + $0x20] sm:$0xff]
      %v1220 = vld [vmem:[%s1 + $0x28] sm:$0xff]
      %v1221 = vld [vmem:[%s1 + $0x30] sm:$0xff]
      %v1222 = vld [vmem:[%s1 + $0x38] sm:$0xff]
      %v1223 = vadd.f32 %v859, %v1215
      %v1224 = vadd.f32 %v862, %v1216
      %v1225 = vadd.f32 %v909, %v1215
      %v1226 = vadd.f32 %v912, %v1216
      %v1227 = vadd.f32 %v959, %v1217
      %v1228 = vadd.f32 %v962, %v1218
      %v1229 = vadd.f32 %v1009, %v1217
      %v1230 = vadd.f32 %v1012, %v1218
      %v1231 = vadd.f32 %v1059, %v1219
      %v1232 = vadd.f32 %v1062, %v1220
      %v1233 = vadd.f32 %v1109, %v1219
      %v1234 = vadd.f32 %v1112, %v1220
      %v1235 = vadd.f32 %v1159, %v1221
      %v1236 = vadd.f32 %v1162, %v1222
      %v1237 = vadd.f32 %v1209, %v1221
      %v1238 = vadd.f32 %v1212, %v1222
      %vm1239 = vcmask 130048
      %v1240 = vsel %vm1239, %v1223, -inf
      %1241 = vmax.xlane.f32.xlu0 %v1240
      %v1242 = vpop.xlane.xlu0 %1241
      %v1243 = vsel %vm1239, %v1224, -inf
      %1244 = vmax.xlane.f32.xlu0 %v1243
      %v1245 = vpop.xlane.xlu0 %1244
      %v1246 = vsel %vm1239, %v1225, -inf
      %1247 = vmax.xlane.f32.xlu0 %v1246
      %v1248 = vpop.xlane.xlu0 %1247
      %v1249 = vsel %vm1239, %v1226, -inf
      %1250 = vmax.xlane.f32.xlu0 %v1249
      %v1251 = vpop.xlane.xlu0 %1250
      %v1252 = vsel %vm1239, %v1227, -inf
      %1253 = vmax.xlane.f32.xlu0 %v1252
      %v1254 = vpop.xlane.xlu0 %1253
      %v1255 = vsel %vm1239, %v1228, -inf
      %1256 = vmax.xlane.f32.xlu0 %v1255
      %v1257 = vpop.xlane.xlu0 %1256
      %v1258 = vsel %vm1239, %v1229, -inf
      %1259 = vmax.xlane.f32.xlu0 %v1258
      %v1260 = vpop.xlane.xlu0 %1259
      %v1261 = vsel %vm1239, %v1230, -inf
      %1262 = vmax.xlane.f32.xlu0 %v1261
      %v1263 = vpop.xlane.xlu0 %1262
      %v1264 = vsel %vm1239, %v1231, -inf
      %1265 = vmax.xlane.f32.xlu0 %v1264
      %v1266 = vpop.xlane.xlu0 %1265
      %v1267 = vsel %vm1239, %v1232, -inf
      %1268 = vmax.xlane.f32.xlu0 %v1267
      %v1269 = vpop.xlane.xlu0 %1268
      %v1270 = vsel %vm1239, %v1233, -inf
      %1271 = vmax.xlane.f32.xlu0 %v1270
      %v1272 = vpop.xlane.xlu0 %1271
      %v1273 = vsel %vm1239, %v1234, -inf
      %1274 = vmax.xlane.f32.xlu0 %v1273
      %v1275 = vpop.xlane.xlu0 %1274
      %v1276 = vsel %vm1239, %v1235, -inf
      %1277 = vmax.xlane.f32.xlu0 %v1276
      %v1278 = vpop.xlane.xlu0 %1277
      %v1279 = vsel %vm1239, %v1236, -inf
      %1280 = vmax.xlane.f32.xlu0 %v1279
      %v1281 = vpop.xlane.xlu0 %1280
      %v1282 = vsel %vm1239, %v1237, -inf
      %1283 = vmax.xlane.f32.xlu0 %v1282
      %v1284 = vpop.xlane.xlu0 %1283
      %v1285 = vsel %vm1239, %v1238, -inf
      %1286 = vmax.xlane.f32.xlu0 %v1285
      %v1287 = vpop.xlane.xlu0 %1286
      %v1288 = vsub.f32 %v1223, %v1242
      %v1289 = vsub.f32 %v1224, %v1245
      %v1290 = vsub.f32 %v1225, %v1248
      %v1291 = vsub.f32 %v1226, %v1251
      %v1292 = vsub.f32 %v1227, %v1254
      %v1293 = vsub.f32 %v1228, %v1257
      %v1294 = vsub.f32 %v1229, %v1260
      %v1295 = vsub.f32 %v1230, %v1263
      %v1296 = vsub.f32 %v1231, %v1266
      %v1297 = vsub.f32 %v1232, %v1269
      %v1298 = vsub.f32 %v1233, %v1272
      %v1299 = vsub.f32 %v1234, %v1275
      %v1300 = vsub.f32 %v1235, %v1278
      %v1301 = vsub.f32 %v1236, %v1281
      %v1302 = vsub.f32 %v1237, %v1284
      %v1303 = vsub.f32 %v1238, %v1287
      %v1304 = vmul.f32 %v1288, 1.442695
      %v1305 = vpow.pop %v1304
      %v1306 = vmul.f32 %v1289, 1.442695
      %v1307 = vpow.pop %v1306
      %v1308 = vmul.f32 %v1290, 1.442695
      %v1309 = vpow.pop %v1308
      %v1310 = vmul.f32 %v1291, 1.442695
      %v1311 = vpow.pop %v1310
      %v1312 = vmul.f32 %v1292, 1.442695
      %v1313 = vpow.pop %v1312
      %v1314 = vmul.f32 %v1293, 1.442695
      %v1315 = vpow.pop %v1314
      %v1316 = vmul.f32 %v1294, 1.442695
      %v1317 = vpow.pop %v1316
      %v1318 = vmul.f32 %v1295, 1.442695
      %v1319 = vpow.pop %v1318
      %v1320 = vmul.f32 %v1296, 1.442695
      %v1321 = vpow.pop %v1320
      %v1322 = vmul.f32 %v1297, 1.442695
      %v1323 = vpow.pop %v1322
      %v1324 = vmul.f32 %v1298, 1.442695
      %v1325 = vpow.pop %v1324
      %v1326 = vmul.f32 %v1299, 1.442695
      %v1327 = vpow.pop %v1326
      %v1328 = vmul.f32 %v1300, 1.442695
      %v1329 = vpow.pop %v1328
      %v1330 = vmul.f32 %v1301, 1.442695
      %v1331 = vpow.pop %v1330
      %v1332 = vmul.f32 %v1302, 1.442695
      %v1333 = vpow.pop %v1332
      %v1334 = vmul.f32 %v1303, 1.442695
      %v1335 = vpow.pop %v1334
      %v1336 = vsel %vm1239, %v1305, 0.0
      %1337 = vadd.xlane.f32.xlu0 %v1336
      %v1338 = vpop.xlane.xlu0 %1337
      %v1339 = vsel %vm1239, %v1307, 0.0
      %1340 = vadd.xlane.f32.xlu0 %v1339
      %v1341 = vpop.xlane.xlu0 %1340
      %v1342 = vsel %vm1239, %v1309, 0.0
      %1343 = vadd.xlane.f32.xlu0 %v1342
      %v1344 = vpop.xlane.xlu0 %1343
      %v1345 = vsel %vm1239, %v1311, 0.0
      %1346 = vadd.xlane.f32.xlu0 %v1345
      %v1347 = vpop.xlane.xlu0 %1346
      %v1348 = vsel %vm1239, %v1313, 0.0
      %1349 = vadd.xlane.f32.xlu0 %v1348
      %v1350 = vpop.xlane.xlu0 %1349
      %v1351 = vsel %vm1239, %v1315, 0.0
      %1352 = vadd.xlane.f32.xlu0 %v1351
      %v1353 = vpop.xlane.xlu0 %1352
      %v1354 = vsel %vm1239, %v1317, 0.0
      %1355 = vadd.xlane.f32.xlu0 %v1354
      %v1356 = vpop.xlane.xlu0 %1355
      %v1357 = vsel %vm1239, %v1319, 0.0
      %1358 = vadd.xlane.f32.xlu0 %v1357
      %v1359 = vpop.xlane.xlu0 %1358
      %v1360 = vsel %vm1239, %v1321, 0.0
      %1361 = vadd.xlane.f32.xlu0 %v1360
      %v1362 = vpop.xlane.xlu0 %1361
      %v1363 = vsel %vm1239, %v1323, 0.0
      %1364 = vadd.xlane.f32.xlu0 %v1363
      %v1365 = vpop.xlane.xlu0 %1364
      %v1366 = vsel %vm1239, %v1325, 0.0
      %1367 = vadd.xlane.f32.xlu0 %v1366
      %v1368 = vpop.xlane.xlu0 %1367
      %v1369 = vsel %vm1239, %v1327, 0.0
      %1370 = vadd.xlane.f32.xlu0 %v1369
      %v1371 = vpop.xlane.xlu0 %1370
      %v1372 = vsel %vm1239, %v1329, 0.0
      %1373 = vadd.xlane.f32.xlu0 %v1372
      %v1374 = vpop.xlane.xlu0 %1373
      %v1375 = vsel %vm1239, %v1331, 0.0
      %1376 = vadd.xlane.f32.xlu0 %v1375
      %v1377 = vpop.xlane.xlu0 %1376
      %v1378 = vsel %vm1239, %v1333, 0.0
      %1379 = vadd.xlane.f32.xlu0 %v1378
      %v1380 = vpop.xlane.xlu0 %1379
      %v1381 = vsel %vm1239, %v1335, 0.0
      %1382 = vadd.xlane.f32.xlu0 %v1381
      %v1383 = vpop.xlane.xlu0 %1382
      %v1384 = vrcp.pop %v1338
      %v1385 = vrcp.pop %v1341
      %v1386 = vrcp.pop %v1344
      %v1387 = vrcp.pop %v1347
      %v1388 = vrcp.pop %v1350
      %v1389 = vrcp.pop %v1353
      %v1390 = vrcp.pop %v1356
      %v1391 = vrcp.pop %v1359
      %v1392 = vrcp.pop %v1362
      %v1393 = vrcp.pop %v1365
      %v1394 = vrcp.pop %v1368
      %v1395 = vrcp.pop %v1371
      %v1396 = vrcp.pop %v1374
      %v1397 = vrcp.pop %v1377
      %v1398 = vrcp.pop %v1380
      %v1399 = vrcp.pop %v1383
      %v1400 = vmul.f32 %v1305, %v1384
      %v1401 = vmul.f32 %v1307, %v1385
      %v1402 = vmul.f32 %v1309, %v1386
      %v1403 = vmul.f32 %v1311, %v1387
      %v1404 = vmul.f32 %v1313, %v1388
      %v1405 = vmul.f32 %v1315, %v1389
      %v1406 = vmul.f32 %v1317, %v1390
      %v1407 = vmul.f32 %v1319, %v1391
      %v1408 = vmul.f32 %v1321, %v1392
      %v1409 = vmul.f32 %v1323, %v1393
      %v1410 = vmul.f32 %v1325, %v1394
      %v1411 = vmul.f32 %v1327, %v1395
      %v1412 = vmul.f32 %v1329, %v1396
      %v1413 = vmul.f32 %v1331, %v1397
      %v1414 = vmul.f32 %v1333, %v1398
      %v1415 = vmul.f32 %v1335, %v1399
      %v1416 = vpack.c.bf16 %v1401, %v1400
      %v1417 = vpack.c.bf16 %v1403, %v1402
      %v1418 = vpack.c.bf16 %v1405, %v1404
      %v1419 = vpack.c.bf16 %v1407, %v1406
      %v1420 = vpack.c.bf16 %v1409, %v1408
      %v1421 = vpack.c.bf16 %v1411, %v1410
      %v1422 = vpack.c.bf16 %v1413, %v1412
      %v1423 = vpack.c.bf16 %v1415, %v1414
      %1424 = vrot.lane.b32.xlu0 %v806, 64
      %v1425 = vpop.permute.xlu0 %1424
      %v1428 = vsel %vm1239, %v1416, 0
      %1430 = vmatprep.subr.bf16.mxu0 0
      %1431 = vmatpush1.bf16.msra.mxu0 0
      %1432 = vmatprep.subr.bf16.mxu0 0
      %1433 = vmatpush1.bf16.msra.mxu0 0
      %1434 = vmatprep.subr.bf16.mxu0 0
      %1435 = vmatpush1.bf16.msra.mxu0 0
      %1436 = vmatprep.subr.bf16.mxu0 0
      %1437 = vmatpush1.bf16.msra.mxu0 0
      %1438 = vmatprep.subr.bf16.mxu0 0
      %1439 = vmatpush1.bf16.msra.mxu0 0
      %1440 = vmatprep.subr.bf16.mxu0 0
      %1441 = vmatpush1.bf16.msra.mxu0 0
      %1442 = vmatprep.subr.bf16.mxu0 0
      %1443 = vmatpush1.bf16.msra.mxu0 0
      %1444 = vmatprep.subr.bf16.mxu0 0
      %1445 = vmatpush1.bf16.msra.mxu0 %v1425
      %1446 = vmatprep.subr.bf16.mxu0 0
      %1447 = vmatpush2.bf16.msra.mxu0 0
      %1448 = vmatprep.subr.bf16.mxu0 0
      %1449 = vmatpush2.bf16.msra.mxu0 0
      %1450 = vmatprep.subr.bf16.mxu0 0
      %1451 = vmatpush2.bf16.msra.mxu0 0
      %1452 = vmatprep.subr.bf16.mxu0 0
      %1453 = vmatpush2.bf16.msra.mxu0 0
      %1454 = vmatprep.subr.bf16.mxu0 0
      %1455 = vmatpush2.bf16.msra.mxu0 0
      %1456 = vmatprep.subr.bf16.mxu0 0
      %1457 = vmatpush2.bf16.msra.mxu0 0
      %1458 = vmatprep.subr.bf16.mxu0 0
      %1459 = vmatpush2.bf16.msra.mxu0 0
      %1460 = vmatprep.subr.bf16.mxu0 0
      %1461 = vmatpush2.bf16.msra.mxu0 0
      %1462 = vmatprep.mubr.bf16.mxu0 0
      %1463 = vmatmul.mubr.bf16.gmra.mxu0 %v1428
      %v1464 = vpop.f32.mrf.mxu0
      %v1465 = vadd.f32 0.0, %v1464
      %v1466 = vpop.f32.mrf.mxu0
      %v1467 = vpop.f32.mrf.mxu0
      %v1468 = vadd.f32 0.0, %v1467
      %v1469 = vpop.f32.mrf.mxu0
      %1470 = vdwg.mxu0
      %1471 = vrot.lane.b32.xlu0 %v807, 64
      %v1472 = vpop.permute.xlu0 %1471
      %v1475 = vsel %vm1239, %v1417, 0
      %1477 = vmatprep.subr.bf16.mxu0 0
      %1478 = vmatpush1.bf16.msra.mxu0 0
      %1479 = vmatprep.subr.bf16.mxu0 0
      %1480 = vmatpush1.bf16.msra.mxu0 0
      %1481 = vmatprep.subr.bf16.mxu0 0
      %1482 = vmatpush1.bf16.msra.mxu0 0
      %1483 = vmatprep.subr.bf16.mxu0 0
      %1484 = vmatpush1.bf16.msra.mxu0 0
      %1485 = vmatprep.subr.bf16.mxu0 0
      %1486 = vmatpush1.bf16.msra.mxu0 0
      %1487 = vmatprep.subr.bf16.mxu0 0
      %1488 = vmatpush1.bf16.msra.mxu0 0
      %1489 = vmatprep.subr.bf16.mxu0 0
      %1490 = vmatpush1.bf16.msra.mxu0 0
      %1491 = vmatprep.subr.bf16.mxu0 0
      %1492 = vmatpush1.bf16.msra.mxu0 %v1472
      %1493 = vmatprep.subr.bf16.mxu0 0
      %1494 = vmatpush2.bf16.msra.mxu0 0
      %1495 = vmatprep.subr.bf16.mxu0 0
      %1496 = vmatpush2.bf16.msra.mxu0 0
      %1497 = vmatprep.subr.bf16.mxu0 0
      %1498 = vmatpush2.bf16.msra.mxu0 0
      %1499 = vmatprep.subr.bf16.mxu0 0
      %1500 = vmatpush2.bf16.msra.mxu0 0
      %1501 = vmatprep.subr.bf16.mxu0 0
      %1502 = vmatpush2.bf16.msra.mxu0 0
      %1503 = vmatprep.subr.bf16.mxu0 0
      %1504 = vmatpush2.bf16.msra.mxu0 0
      %1505 = vmatprep.subr.bf16.mxu0 0
      %1506 = vmatpush2.bf16.msra.mxu0 0
      %1507 = vmatprep.subr.bf16.mxu0 0
      %1508 = vmatpush2.bf16.msra.mxu0 0
      %1509 = vmatprep.mubr.bf16.mxu0 0
      %1510 = vmatmul.mubr.bf16.gmra.mxu0 %v1475
      %v1511 = vpop.f32.mrf.mxu0
      %v1512 = vadd.f32 0.0, %v1511
      %v1513 = vpop.f32.mrf.mxu0
      %v1514 = vpop.f32.mrf.mxu0
      %v1515 = vadd.f32 0.0, %v1514
      %v1516 = vpop.f32.mrf.mxu0
      %1517 = vdwg.mxu0
      %1518 = vrot.lane.b32.xlu0 %v808, 64
      %v1519 = vpop.permute.xlu0 %1518
      %v1522 = vsel %vm1239, %v1418, 0
      %1524 = vmatprep.subr.bf16.mxu0 0
      %1525 = vmatpush1.bf16.msra.mxu0 0
      %1526 = vmatprep.subr.bf16.mxu0 0
      %1527 = vmatpush1.bf16.msra.mxu0 0
      %1528 = vmatprep.subr.bf16.mxu0 0
      %1529 = vmatpush1.bf16.msra.mxu0 0
      %1530 = vmatprep.subr.bf16.mxu0 0
      %1531 = vmatpush1.bf16.msra.mxu0 0
      %1532 = vmatprep.subr.bf16.mxu0 0
      %1533 = vmatpush1.bf16.msra.mxu0 0
      %1534 = vmatprep.subr.bf16.mxu0 0
      %1535 = vmatpush1.bf16.msra.mxu0 0
      %1536 = vmatprep.subr.bf16.mxu0 0
      %1537 = vmatpush1.bf16.msra.mxu0 0
      %1538 = vmatprep.subr.bf16.mxu0 0
      %1539 = vmatpush1.bf16.msra.mxu0 %v1519
      %1540 = vmatprep.subr.bf16.mxu0 0
      %1541 = vmatpush2.bf16.msra.mxu0 0
      %1542 = vmatprep.subr.bf16.mxu0 0
      %1543 = vmatpush2.bf16.msra.mxu0 0
      %1544 = vmatprep.subr.bf16.mxu0 0
      %1545 = vmatpush2.bf16.msra.mxu0 0
      %1546 = vmatprep.subr.bf16.mxu0 0
      %1547 = vmatpush2.bf16.msra.mxu0 0
      %1548 = vmatprep.subr.bf16.mxu0 0
      %1549 = vmatpush2.bf16.msra.mxu0 0
      %1550 = vmatprep.subr.bf16.mxu0 0
      %1551 = vmatpush2.bf16.msra.mxu0 0
      %1552 = vmatprep.subr.bf16.mxu0 0
      %1553 = vmatpush2.bf16.msra.mxu0 0
      %1554 = vmatprep.subr.bf16.mxu0 0
      %1555 = vmatpush2.bf16.msra.mxu0 0
      %1556 = vmatprep.mubr.bf16.mxu0 0
      %1557 = vmatmul.mubr.bf16.gmra.mxu0 %v1522
      %v1558 = vpop.f32.mrf.mxu0
      %v1559 = vadd.f32 0.0, %v1558
      %v1560 = vpop.f32.mrf.mxu0
      %v1561 = vpop.f32.mrf.mxu0
      %v1562 = vadd.f32 0.0, %v1561
      %v1563 = vpop.f32.mrf.mxu0
      %1564 = vdwg.mxu0
      %1565 = vrot.lane.b32.xlu0 %v809, 64
      %v1566 = vpop.permute.xlu0 %1565
      %v1569 = vsel %vm1239, %v1419, 0
      %1571 = vmatprep.subr.bf16.mxu0 0
      %1572 = vmatpush1.bf16.msra.mxu0 0
      %1573 = vmatprep.subr.bf16.mxu0 0
      %1574 = vmatpush1.bf16.msra.mxu0 0
      %1575 = vmatprep.subr.bf16.mxu0 0
      %1576 = vmatpush1.bf16.msra.mxu0 0
      %1577 = vmatprep.subr.bf16.mxu0 0
      %1578 = vmatpush1.bf16.msra.mxu0 0
      %1579 = vmatprep.subr.bf16.mxu0 0
      %1580 = vmatpush1.bf16.msra.mxu0 0
      %1581 = vmatprep.subr.bf16.mxu0 0
      %1582 = vmatpush1.bf16.msra.mxu0 0
      %1583 = vmatprep.subr.bf16.mxu0 0
      %1584 = vmatpush1.bf16.msra.mxu0 0
      %1585 = vmatprep.subr.bf16.mxu0 0
      %1586 = vmatpush1.bf16.msra.mxu0 %v1566
      %1587 = vmatprep.subr.bf16.mxu0 0
      %1588 = vmatpush2.bf16.msra.mxu0 0
      %1589 = vmatprep.subr.bf16.mxu0 0
      %1590 = vmatpush2.bf16.msra.mxu0 0
      %1591 = vmatprep.subr.bf16.mxu0 0
      %1592 = vmatpush2.bf16.msra.mxu0 0
      %1593 = vmatprep.subr.bf16.mxu0 0
      %1594 = vmatpush2.bf16.msra.mxu0 0
      %1595 = vmatprep.subr.bf16.mxu0 0
      %1596 = vmatpush2.bf16.msra.mxu0 0
      %1597 = vmatprep.subr.bf16.mxu0 0
      %1598 = vmatpush2.bf16.msra.mxu0 0
      %1599 = vmatprep.subr.bf16.mxu0 0
      %1600 = vmatpush2.bf16.msra.mxu0 0
      %1601 = vmatprep.subr.bf16.mxu0 0
      %1602 = vmatpush2.bf16.msra.mxu0 0
      %1603 = vmatprep.mubr.bf16.mxu0 0
      %1604 = vmatmul.mubr.bf16.gmra.mxu0 %v1569
      %v1605 = vpop.f32.mrf.mxu0
      %v1606 = vadd.f32 0.0, %v1605
      %v1607 = vpop.f32.mrf.mxu0
      %v1608 = vpop.f32.mrf.mxu0
      %v1609 = vadd.f32 0.0, %v1608
      %v1610 = vpop.f32.mrf.mxu0
      %1611 = vdwg.mxu0
      %1612 = vrot.lane.b32.xlu0 %v810, 64
      %v1613 = vpop.permute.xlu0 %1612
      %v1616 = vsel %vm1239, %v1420, 0
      %1618 = vmatprep.subr.bf16.mxu0 0
      %1619 = vmatpush1.bf16.msra.mxu0 0
      %1620 = vmatprep.subr.bf16.mxu0 0
      %1621 = vmatpush1.bf16.msra.mxu0 0
      %1622 = vmatprep.subr.bf16.mxu0 0
      %1623 = vmatpush1.bf16.msra.mxu0 0
      %1624 = vmatprep.subr.bf16.mxu0 0
      %1625 = vmatpush1.bf16.msra.mxu0 0
      %1626 = vmatprep.subr.bf16.mxu0 0
      %1627 = vmatpush1.bf16.msra.mxu0 0
      %1628 = vmatprep.subr.bf16.mxu0 0
      %1629 = vmatpush1.bf16.msra.mxu0 0
      %1630 = vmatprep.subr.bf16.mxu0 0
      %1631 = vmatpush1.bf16.msra.mxu0 0
      %1632 = vmatprep.subr.bf16.mxu0 0
      %1633 = vmatpush1.bf16.msra.mxu0 %v1613
      %1634 = vmatprep.subr.bf16.mxu0 0
      %1635 = vmatpush2.bf16.msra.mxu0 0
      %1636 = vmatprep.subr.bf16.mxu0 0
      %1637 = vmatpush2.bf16.msra.mxu0 0
      %1638 = vmatprep.subr.bf16.mxu0 0
      %1639 = vmatpush2.bf16.msra.mxu0 0
      %1640 = vmatprep.subr.bf16.mxu0 0
      %1641 = vmatpush2.bf16.msra.mxu0 0
      %1642 = vmatprep.subr.bf16.mxu0 0
      %1643 = vmatpush2.bf16.msra.mxu0 0
      %1644 = vmatprep.subr.bf16.mxu0 0
      %1645 = vmatpush2.bf16.msra.mxu0 0
      %1646 = vmatprep.subr.bf16.mxu0 0
      %1647 = vmatpush2.bf16.msra.mxu0 0
      %1648 = vmatprep.subr.bf16.mxu0 0
      %1649 = vmatpush2.bf16.msra.mxu0 0
      %1650 = vmatprep.mubr.bf16.mxu0 0
      %1651 = vmatmul.mubr.bf16.gmra.mxu0 %v1616
      %v1652 = vpop.f32.mrf.mxu0
      %v1653 = vadd.f32 0.0, %v1652
      %v1654 = vpop.f32.mrf.mxu0
      %v1655 = vpop.f32.mrf.mxu0
      %v1656 = vadd.f32 0.0, %v1655
      %v1657 = vpop.f32.mrf.mxu0
      %1658 = vdwg.mxu0
      %1659 = vrot.lane.b32.xlu0 %v811, 64
      %v1660 = vpop.permute.xlu0 %1659
      %v1663 = vsel %vm1239, %v1421, 0
      %1665 = vmatprep.subr.bf16.mxu0 0
      %1666 = vmatpush1.bf16.msra.mxu0 0
      %1667 = vmatprep.subr.bf16.mxu0 0
      %1668 = vmatpush1.bf16.msra.mxu0 0
      %1669 = vmatprep.subr.bf16.mxu0 0
      %1670 = vmatpush1.bf16.msra.mxu0 0
      %1671 = vmatprep.subr.bf16.mxu0 0
      %1672 = vmatpush1.bf16.msra.mxu0 0
      %1673 = vmatprep.subr.bf16.mxu0 0
      %1674 = vmatpush1.bf16.msra.mxu0 0
      %1675 = vmatprep.subr.bf16.mxu0 0
      %1676 = vmatpush1.bf16.msra.mxu0 0
      %1677 = vmatprep.subr.bf16.mxu0 0
      %1678 = vmatpush1.bf16.msra.mxu0 0
      %1679 = vmatprep.subr.bf16.mxu0 0
      %1680 = vmatpush1.bf16.msra.mxu0 %v1660
      %1681 = vmatprep.subr.bf16.mxu0 0
      %1682 = vmatpush2.bf16.msra.mxu0 0
      %1683 = vmatprep.subr.bf16.mxu0 0
      %1684 = vmatpush2.bf16.msra.mxu0 0
      %1685 = vmatprep.subr.bf16.mxu0 0
      %1686 = vmatpush2.bf16.msra.mxu0 0
      %1687 = vmatprep.subr.bf16.mxu0 0
      %1688 = vmatpush2.bf16.msra.mxu0 0
      %1689 = vmatprep.subr.bf16.mxu0 0
      %1690 = vmatpush2.bf16.msra.mxu0 0
      %1691 = vmatprep.subr.bf16.mxu0 0
      %1692 = vmatpush2.bf16.msra.mxu0 0
      %1693 = vmatprep.subr.bf16.mxu0 0
      %1694 = vmatpush2.bf16.msra.mxu0 0
      %1695 = vmatprep.subr.bf16.mxu0 0
      %1696 = vmatpush2.bf16.msra.mxu0 0
      %1697 = vmatprep.mubr.bf16.mxu0 0
      %1698 = vmatmul.mubr.bf16.gmra.mxu0 %v1663
      %v1699 = vpop.f32.mrf.mxu0
      %v1700 = vadd.f32 0.0, %v1699
      %v1701 = vpop.f32.mrf.mxu0
      %v1702 = vpop.f32.mrf.mxu0
      %v1703 = vadd.f32 0.0, %v1702
      %v1704 = vpop.f32.mrf.mxu0
      %1705 = vdwg.mxu0
      %1706 = vrot.lane.b32.xlu0 %v812, 64
      %v1707 = vpop.permute.xlu0 %1706
      %v1710 = vsel %vm1239, %v1422, 0
      %1712 = vmatprep.subr.bf16.mxu0 0
      %1713 = vmatpush1.bf16.msra.mxu0 0
      %1714 = vmatprep.subr.bf16.mxu0 0
      %1715 = vmatpush1.bf16.msra.mxu0 0
      %1716 = vmatprep.subr.bf16.mxu0 0
      %1717 = vmatpush1.bf16.msra.mxu0 0
      %1718 = vmatprep.subr.bf16.mxu0 0
      %1719 = vmatpush1.bf16.msra.mxu0 0
      %1720 = vmatprep.subr.bf16.mxu0 0
      %1721 = vmatpush1.bf16.msra.mxu0 0
      %1722 = vmatprep.subr.bf16.mxu0 0
      %1723 = vmatpush1.bf16.msra.mxu0 0
      %1724 = vmatprep.subr.bf16.mxu0 0
      %1725 = vmatpush1.bf16.msra.mxu0 0
      %1726 = vmatprep.subr.bf16.mxu0 0
      %1727 = vmatpush1.bf16.msra.mxu0 %v1707
      %1728 = vmatprep.subr.bf16.mxu0 0
      %1729 = vmatpush2.bf16.msra.mxu0 0
      %1730 = vmatprep.subr.bf16.mxu0 0
      %1731 = vmatpush2.bf16.msra.mxu0 0
      %1732 = vmatprep.subr.bf16.mxu0 0
      %1733 = vmatpush2.bf16.msra.mxu0 0
      %1734 = vmatprep.subr.bf16.mxu0 0
      %1735 = vmatpush2.bf16.msra.mxu0 0
      %1736 = vmatprep.subr.bf16.mxu0 0
      %1737 = vmatpush2.bf16.msra.mxu0 0
      %1738 = vmatprep.subr.bf16.mxu0 0
      %1739 = vmatpush2.bf16.msra.mxu0 0
      %1740 = vmatprep.subr.bf16.mxu0 0
      %1741 = vmatpush2.bf16.msra.mxu0 0
      %1742 = vmatprep.subr.bf16.mxu0 0
      %1743 = vmatpush2.bf16.msra.mxu0 0
      %1744 = vmatprep.mubr.bf16.mxu0 0
      %1745 = vmatmul.mubr.bf16.gmra.mxu0 %v1710
      %v1746 = vpop.f32.mrf.mxu0
      %v1747 = vadd.f32 0.0, %v1746
      %v1748 = vpop.f32.mrf.mxu0
      %v1749 = vpop.f32.mrf.mxu0
      %v1750 = vadd.f32 0.0, %v1749
      %v1751 = vpop.f32.mrf.mxu0
      %1752 = vdwg.mxu0
      %1753 = vrot.lane.b32.xlu0 %v813, 64
      %v1754 = vpop.permute.xlu0 %1753
      %v1757 = vsel %vm1239, %v1423, 0
      %1759 = vmatprep.subr.bf16.mxu0 0
      %1760 = vmatpush1.bf16.msra.mxu0 0
      %1761 = vmatprep.subr.bf16.mxu0 0
      %1762 = vmatpush1.bf16.msra.mxu0 0
      %1763 = vmatprep.subr.bf16.mxu0 0
      %1764 = vmatpush1.bf16.msra.mxu0 0
      %1765 = vmatprep.subr.bf16.mxu0 0
      %1766 = vmatpush1.bf16.msra.mxu0 0
      %1767 = vmatprep.subr.bf16.mxu0 0
      %1768 = vmatpush1.bf16.msra.mxu0 0
      %1769 = vmatprep.subr.bf16.mxu0 0
      %1770 = vmatpush1.bf16.msra.mxu0 0
      %1771 = vmatprep.subr.bf16.mxu0 0
      %1772 = vmatpush1.bf16.msra.mxu0 0
      %1773 = vmatprep.subr.bf16.mxu0 0
      %1774 = vmatpush1.bf16.msra.mxu0 %v1754
      %1775 = vmatprep.subr.bf16.mxu0 0
      %1776 = vmatpush2.bf16.msra.mxu0 0
      %1777 = vmatprep.subr.bf16.mxu0 0
      %1778 = vmatpush2.bf16.msra.mxu0 0
      %1779 = vmatprep.subr.bf16.mxu0 0
      %1780 = vmatpush2.bf16.msra.mxu0 0
      %1781 = vmatprep.subr.bf16.mxu0 0
      %1782 = vmatpush2.bf16.msra.mxu0 0
      %1783 = vmatprep.subr.bf16.mxu0 0
      %1784 = vmatpush2.bf16.msra.mxu0 0
      %1785 = vmatprep.subr.bf16.mxu0 0
      %1786 = vmatpush2.bf16.msra.mxu0 0
      %1787 = vmatprep.subr.bf16.mxu0 0
      %1788 = vmatpush2.bf16.msra.mxu0 0
      %1789 = vmatprep.subr.bf16.mxu0 0
      %1790 = vmatpush2.bf16.msra.mxu0 0
      %1791 = vmatprep.mubr.bf16.mxu0 0
      %1792 = vmatmul.mubr.bf16.gmra.mxu0 %v1757
      %v1793 = vpop.f32.mrf.mxu0
      %v1794 = vadd.f32 0.0, %v1793
      %v1795 = vpop.f32.mrf.mxu0
      %v1796 = vpop.f32.mrf.mxu0
      %v1797 = vadd.f32 0.0, %v1796
      %v1798 = vpop.f32.mrf.mxu0
      %1799 = vdwg.mxu0
      %1804 = vrot.lane.b32.xlu0 %v1559, 8
      %v1805 = vpop.permute.xlu0 %1804
      %1806 = vrot.lane.b32.xlu0 %v1562, 8
      %v1807 = vpop.permute.xlu0 %1806
      %1808 = vrot.lane.b32.xlu0 %v1606, 8
      %v1809 = vpop.permute.xlu0 %1808
      %1810 = vrot.lane.b32.xlu0 %v1609, 8
      %v1811 = vpop.permute.xlu0 %1810
      %1820 = vrot.lane.b32.xlu0 %v1653, 16
      %v1821 = vpop.permute.xlu0 %1820
      %1822 = vrot.lane.b32.xlu0 %v1656, 16
      %v1823 = vpop.permute.xlu0 %1822
      %1824 = vrot.lane.b32.xlu0 %v1700, 16
      %v1825 = vpop.permute.xlu0 %1824
      %1826 = vrot.lane.b32.xlu0 %v1703, 16
      %v1827 = vpop.permute.xlu0 %1826
      %1836 = vrot.lane.b32.xlu0 %v1747, 24
      %v1837 = vpop.permute.xlu0 %1836
      %1838 = vrot.lane.b32.xlu0 %v1750, 24
      %v1839 = vpop.permute.xlu0 %1838
      %1840 = vrot.lane.b32.xlu0 %v1794, 24
      %v1841 = vpop.permute.xlu0 %1840
      %1842 = vrot.lane.b32.xlu0 %v1797, 24
      %v1843 = vpop.permute.xlu0 %1842
      %v1848 = vsel %vm817, %v1465, %v1805
      %v1849 = vsel %vm817, %v1468, %v1807
      %v1850 = vsel %vm817, %v1512, %v1809
      %v1851 = vsel %vm817, %v1515, %v1811
      %v1852 = vsel %vm1239, %v1848, %v1821
      %v1853 = vsel %vm1239, %v1849, %v1823
      %v1854 = vsel %vm1239, %v1850, %v1825
      %v1855 = vsel %vm1239, %v1851, %v1827
      %vm1856 = vcmask 195584
      %v1857 = vsel %vm1856, %v1852, %v1837
      %v1858 = vsel %vm1856, %v1853, %v1839
      %v1859 = vsel %vm1856, %v1854, %v1841
      %v1860 = vsel %vm1856, %v1855, %v1843
      %v1861 = vpack.c.bf16 %v1858, %v1857
      %v1862 = vpack.c.bf16 %v1860, %v1859
      %v1863 = vld [vmem:[%s6] sm:$0xf]
      %v1864 = vld [vmem:[%s6 + $0x4] sm:$0xf]
      %v1865 = vld [vmem:[%s6 + $0x8] sm:$0xf]
      %v1866 = vld [vmem:[%s6 + $0xc] sm:$0xf]
      %v1867 = vld [vmem:[%s7] sm:$0x1]
      %v1869 = vlaneseq
      %v1870 = vshrl.u32 %v1869, 7
      %v1871 = vsub.s32 0, %v1870
      %v1872 = vrot.slane %v1867, %v1871
      %v1878 = vunpack.c.l.b16 %v1863
      %v1879 = vunpack.c.l.b16 %v1864
      %v1880 = vunpack.c.l.b16 %v1865
      %v1881 = vunpack.c.l.b16 %v1866
      %v1882 = vpack.c.b16 %v1879, %v1878
      %v1883 = vpack.c.b16 %v1881, %v1880
      %v1887 = vsel %vm558, %v1861, 0
      %v1890 = vsel %vm558, %v1862, 0
      %1892 = vmatprep.subr.bf16.mxu0 0
      %1893 = vmatpush1.bf16.msra.mxu0 0
      %1894 = vmatprep.subr.bf16.mxu0 0
      %1895 = vmatpush1.bf16.msra.mxu0 0
      %1896 = vmatprep.subr.bf16.mxu0 0
      %1897 = vmatpush1.bf16.msra.mxu0 0
      %1898 = vmatprep.subr.bf16.mxu0 0
      %1899 = vmatpush1.bf16.msra.mxu0 0
      %1900 = vmatprep.subr.bf16.mxu0 0
      %1901 = vmatpush1.bf16.msra.mxu0 0
      %1902 = vmatprep.subr.bf16.mxu0 0
      %1903 = vmatpush1.bf16.msra.mxu0 0
      %1904 = vmatprep.subr.bf16.mxu0 0
      %1905 = vmatpush1.bf16.msra.mxu0 %v1883
      %1906 = vmatprep.subr.bf16.mxu0 0
      %1907 = vmatpush1.bf16.msra.mxu0 %v1882
      %1908 = vmatprep.subr.bf16.mxu0 0
      %1909 = vmatpush2.bf16.msra.mxu0 0
      %1910 = vmatprep.subr.bf16.mxu0 0
      %1911 = vmatpush2.bf16.msra.mxu0 0
      %1912 = vmatprep.subr.bf16.mxu0 0
      %1913 = vmatpush2.bf16.msra.mxu0 0
      %1914 = vmatprep.subr.bf16.mxu0 0
      %1915 = vmatpush2.bf16.msra.mxu0 0
      %1916 = vmatprep.subr.bf16.mxu0 0
      %1917 = vmatpush2.bf16.msra.mxu0 0
      %1918 = vmatprep.subr.bf16.mxu0 0
      %1919 = vmatpush2.bf16.msra.mxu0 0
      %1920 = vmatprep.subr.bf16.mxu0 0
      %1921 = vmatpush2.bf16.msra.mxu0 0
      %1922 = vmatprep.subr.bf16.mxu0 0
      %1923 = vmatpush2.bf16.msra.mxu0 0
      %1924 = vmatprep.mubr.bf16.mxu0 0
      %1925 = vmatmul.mubr.bf16.gmra.mxu0 %v1887
      %v1926 = vpop.f32.mrf.mxu0
      %v1927 = vadd.f32 %v1872, %v1926
      %v1928 = vpop.f32.mrf.mxu0
      %v1929 = vpop.f32.mrf.mxu0
      %v1930 = vadd.f32 %v1872, %v1929
      %v1931 = vpop.f32.mrf.mxu0
      %1932 = vmatprep.mubr.bf16.mxu0 0
      %1933 = vmatmul.mubr.bf16.gmra.mxu0 %v1890
      %v1934 = vpop.f32.mrf.mxu0
      %v1935 = vadd.f32 %v1872, %v1934
      %v1936 = vpop.f32.mrf.mxu0
      %v1937 = vpop.f32.mrf.mxu0
      %v1938 = vadd.f32 %v1872, %v1937
      %v1939 = vpop.f32.mrf.mxu0
      %1940 = vdwg.mxu0
      %v1941 = vadd.f32 %v554, %v1927
      %v1942 = vadd.f32 %v555, %v1930
      %v1943 = vadd.f32 %v556, %v1935
      %v1944 = vadd.f32 %v557, %v1938
      %v1945 = vsel %vm558, %v1941, 0.0
      %1946 = vadd.xlane.f32.xlu0 %v1945
      %v1947 = vpop.xlane.xlu0 %1946
      %v1948 = vsel %vm558, %v1942, 0.0
      %1949 = vadd.xlane.f32.xlu0 %v1948
      %v1950 = vpop.xlane.xlu0 %1949
      %v1951 = vsel %vm558, %v1943, 0.0
      %1952 = vadd.xlane.f32.xlu0 %v1951
      %v1953 = vpop.xlane.xlu0 %1952
      %v1954 = vsel %vm558, %v1944, 0.0
      %1955 = vadd.xlane.f32.xlu0 %v1954
      %v1956 = vpop.xlane.xlu0 %1955
      %v1957 = vmul.f32 %v1947, %v571
      %v1958 = vmul.f32 %v1950, %v571
      %v1959 = vmul.f32 %v1953, %v571
      %v1960 = vmul.f32 %v1956, %v571
      %v1961 = vsub.f32 %v1941, %v1957
      %v1962 = vsub.f32 %v1942, %v1958
      %v1963 = vsub.f32 %v1943, %v1959
      %v1964 = vsub.f32 %v1944, %v1960
      %v1965 = vmul.f32 %v1961, %v1961
      %v1966 = vmul.f32 %v1962, %v1962
      %v1967 = vmul.f32 %v1963, %v1963
      %v1968 = vmul.f32 %v1964, %v1964
      %v1969 = vsel %vm558, %v1965, 0.0
      %1970 = vadd.xlane.f32.xlu0 %v1969
      %v1971 = vpop.xlane.xlu0 %1970
      %v1972 = vsel %vm558, %v1966, 0.0
      %1973 = vadd.xlane.f32.xlu0 %v1972
      %v1974 = vpop.xlane.xlu0 %1973
      %v1975 = vsel %vm558, %v1967, 0.0
      %1976 = vadd.xlane.f32.xlu0 %v1975
      %v1977 = vpop.xlane.xlu0 %1976
      %v1978 = vsel %vm558, %v1968, 0.0
      %1979 = vadd.xlane.f32.xlu0 %v1978
      %v1980 = vpop.xlane.xlu0 %1979
      %v1981 = vmul.f32 %v1971, %v571
      %v1982 = vmul.f32 %v1974, %v571
      %v1983 = vmul.f32 %v1977, %v571
      %v1984 = vmul.f32 %v1980, %v571
      %v1985 = vadd.f32 %v1981, 1e-05
      %v1986 = vadd.f32 %v1982, 1e-05
      %v1987 = vadd.f32 %v1983, 1e-05
      %v1988 = vadd.f32 %v1984, 1e-05
      %v1989 = vrsqrt.pop %v1985
      %v1990 = vrsqrt.pop %v1986
      %v1991 = vrsqrt.pop %v1987
      %v1992 = vrsqrt.pop %v1988
      %v1993 = vmul.f32 %v1961, %v1989
      %v1994 = vmul.f32 %v1962, %v1990
      %v1995 = vmul.f32 %v1963, %v1991
      %v1996 = vmul.f32 %v1964, %v1992
      %v1997 = vld [vmem:[%s8] sm:$0x1]
      %v1999 = vlaneseq
      %v2000 = vshrl.u32 %v1999, 7
      %v2001 = vsub.s32 0, %v2000
      %v2002 = vrot.slane %v1997, %v2001
      %v2004 = vmul.f32 %v1993, %v2002
      %v2005 = vmul.f32 %v1994, %v2002
      %v2006 = vmul.f32 %v1995, %v2002
      %v2007 = vmul.f32 %v1996, %v2002
      %v2008 = vld [vmem:[%s9] sm:$0x1]
      %v2010 = vlaneseq
      %v2011 = vshrl.u32 %v2010, 7
      %v2012 = vsub.s32 0, %v2011
      %v2013 = vrot.slane %v2008, %v2012
      %v2015 = vadd.f32 %v2004, %v2013
      %v2016 = vadd.f32 %v2005, %v2013
      %v2017 = vadd.f32 %v2006, %v2013
      %v2018 = vadd.f32 %v2007, %v2013
      %v2019 = vpack.c.bf16 %v2016, %v2015
      %v2020 = vpack.c.bf16 %v2018, %v2017
      %v2021 = vld [vmem:[%s10] sm:$0xf]
      %v2022 = vld [vmem:[%s10 + $0x4] sm:$0xf]
      %v2023 = vld [vmem:[%s10 + $0x8] sm:$0xf]
      %v2024 = vld [vmem:[%s10 + $0xc] sm:$0xf]
      %v2025 = vld [vmem:[%s11] sm:$0x1]
      %v2027 = vlaneseq
      %v2028 = vshrl.u32 %v2027, 7
      %v2029 = vsub.s32 0, %v2028
      %v2030 = vrot.slane %v2025, %v2029
      %v2036 = vunpack.c.l.b16 %v2021
      %v2037 = vunpack.c.l.b16 %v2022
      %v2038 = vunpack.c.l.b16 %v2023
      %v2039 = vunpack.c.l.b16 %v2024
      %v2040 = vpack.c.b16 %v2037, %v2036
      %v2041 = vpack.c.b16 %v2039, %v2038
      %v2045 = vsel %vm558, %v2019, 0
      %v2048 = vsel %vm558, %v2020, 0
      %2050 = vmatprep.subr.bf16.mxu0 0
      %2051 = vmatpush1.bf16.msra.mxu0 0
      %2052 = vmatprep.subr.bf16.mxu0 0
      %2053 = vmatpush1.bf16.msra.mxu0 0
      %2054 = vmatprep.subr.bf16.mxu0 0
      %2055 = vmatpush1.bf16.msra.mxu0 0
      %2056 = vmatprep.subr.bf16.mxu0 0
      %2057 = vmatpush1.bf16.msra.mxu0 0
      %2058 = vmatprep.subr.bf16.mxu0 0
      %2059 = vmatpush1.bf16.msra.mxu0 0
      %2060 = vmatprep.subr.bf16.mxu0 0
      %2061 = vmatpush1.bf16.msra.mxu0 0
      %2062 = vmatprep.subr.bf16.mxu0 0
      %2063 = vmatpush1.bf16.msra.mxu0 %v2041
      %2064 = vmatprep.subr.bf16.mxu0 0
      %2065 = vmatpush1.bf16.msra.mxu0 %v2040
      %2066 = vmatprep.subr.bf16.mxu0 0
      %2067 = vmatpush2.bf16.msra.mxu0 0
      %2068 = vmatprep.subr.bf16.mxu0 0
      %2069 = vmatpush2.bf16.msra.mxu0 0
      %2070 = vmatprep.subr.bf16.mxu0 0
      %2071 = vmatpush2.bf16.msra.mxu0 0
      %2072 = vmatprep.subr.bf16.mxu0 0
      %2073 = vmatpush2.bf16.msra.mxu0 0
      %2074 = vmatprep.subr.bf16.mxu0 0
      %2075 = vmatpush2.bf16.msra.mxu0 0
      %2076 = vmatprep.subr.bf16.mxu0 0
      %2077 = vmatpush2.bf16.msra.mxu0 0
      %2078 = vmatprep.subr.bf16.mxu0 0
      %2079 = vmatpush2.bf16.msra.mxu0 0
      %2080 = vmatprep.subr.bf16.mxu0 0
      %2081 = vmatpush2.bf16.msra.mxu0 0
      %2082 = vmatprep.mubr.bf16.mxu0 0
      %2083 = vmatmul.mubr.bf16.gmra.mxu0 %v2045
      %v2084 = vpop.f32.mrf.mxu0
      %v2085 = vadd.f32 %v2030, %v2084
      %v2086 = vpop.f32.mrf.mxu0
      %v2087 = vpop.f32.mrf.mxu0
      %v2088 = vadd.f32 %v2030, %v2087
      %v2089 = vpop.f32.mrf.mxu0
      %2090 = vmatprep.mubr.bf16.mxu0 0
      %2091 = vmatmul.mubr.bf16.gmra.mxu0 %v2048
      %v2092 = vpop.f32.mrf.mxu0
      %v2093 = vadd.f32 %v2030, %v2092
      %v2094 = vpop.f32.mrf.mxu0
      %v2095 = vpop.f32.mrf.mxu0
      %v2096 = vadd.f32 %v2030, %v2095
      %v2097 = vpop.f32.mrf.mxu0
      %2098 = vdwg.mxu0
      %v2099 = vmul.f32 %v2085, 0.5
      %v2100 = vmul.f32 %v2088, 0.5
      %v2101 = vmul.f32 %v2093, 0.5
      %v2102 = vmul.f32 %v2096, 0.5
      %v2103 = vmul.f32 %v2085, 0.70710677
      %v2104 = vmul.f32 %v2088, 0.70710677
      %v2105 = vmul.f32 %v2093, 0.70710677
      %v2106 = vmul.f32 %v2096, 0.70710677
      %v2107 = verf.f32.pop %v2103
      %v2108 = verf.f32.pop %v2104
      %v2109 = verf.f32.pop %v2105
      %v2110 = verf.f32.pop %v2106
      %v2111 = vadd.f32 %v2107, 1.0
      %v2112 = vadd.f32 %v2108, 1.0
      %v2113 = vadd.f32 %v2109, 1.0
      %v2114 = vadd.f32 %v2110, 1.0
      %v2115 = vmul.f32 %v2099, %v2111
      %v2116 = vmul.f32 %v2100, %v2112
      %v2117 = vmul.f32 %v2101, %v2113
      %v2118 = vmul.f32 %v2102, %v2114
      %v2119 = vpack.c.bf16 %v2116, %v2115
      %v2120 = vpack.c.bf16 %v2118, %v2117
      %v2121 = vld [vmem:[%s12] sm:$0xf]
      %v2122 = vld [vmem:[%s12 + $0x4] sm:$0xf]
      %v2123 = vld [vmem:[%s12 + $0x8] sm:$0xf]
      %v2124 = vld [vmem:[%s12 + $0xc] sm:$0xf]
      %v2125 = vld [vmem:[%s12 + $0x10] sm:$0xf]
      %v2126 = vld [vmem:[%s12 + $0x14] sm:$0xf]
      %v2127 = vld [vmem:[%s12 + $0x18] sm:$0xf]
      %v2128 = vld [vmem:[%s12 + $0x1c] sm:$0xf]
      %v2129 = vld [vmem:[%s12 + $0x20] sm:$0xf]
      %v2130 = vld [vmem:[%s12 + $0x24] sm:$0xf]
      %v2131 = vld [vmem:[%s12 + $0x28] sm:$0xf]
      %v2132 = vld [vmem:[%s12 + $0x2c] sm:$0xf]
      %v2133 = vld [vmem:[%s12 + $0x30] sm:$0xf]
      %v2134 = vld [vmem:[%s12 + $0x34] sm:$0xf]
      %v2135 = vld [vmem:[%s12 + $0x38] sm:$0xf]
      %v2136 = vld [vmem:[%s12 + $0x3c] sm:$0xf]
      %v2137 = vld [vmem:[%s13] sm:$0x1]
      %v2139 = vlaneseq
      %v2140 = vshrl.u32 %v2139, 7
      %v2141 = vsub.s32 0, %v2140
      %v2142 = vrot.slane %v2137, %v2141
      %v2160 = vunpack.c.l.b16 %v2121
      %v2161 = vunpack.c.l.b16 %v2122
      %v2162 = vunpack.c.l.b16 %v2123
      %v2163 = vunpack.c.l.b16 %v2124
      %v2164 = vunpack.c.l.b16 %v2125
      %v2165 = vunpack.c.l.b16 %v2126
      %v2166 = vunpack.c.l.b16 %v2127
      %v2167 = vunpack.c.l.b16 %v2128
      %v2168 = vunpack.c.l.b16 %v2129
      %v2169 = vunpack.c.l.b16 %v2130
      %v2170 = vunpack.c.l.b16 %v2131
      %v2171 = vunpack.c.l.b16 %v2132
      %v2172 = vunpack.c.l.b16 %v2133
      %v2173 = vunpack.c.l.b16 %v2134
      %v2174 = vunpack.c.l.b16 %v2135
      %v2175 = vunpack.c.l.b16 %v2136
      %v2176 = vpack.c.b16 %v2161, %v2160
      %v2177 = vpack.c.b16 %v2163, %v2162
      %v2178 = vpack.c.b16 %v2165, %v2164
      %v2179 = vpack.c.b16 %v2167, %v2166
      %v2180 = vpack.c.b16 %v2169, %v2168
      %v2181 = vpack.c.b16 %v2171, %v2170
      %v2182 = vpack.c.b16 %v2173, %v2172
      %v2183 = vpack.c.b16 %v2175, %v2174
      %2192 = vmatprep.subr.bf16.mxu0 0
      %2193 = vmatpush1.bf16.msra.mxu0 %v2183
      %2194 = vmatprep.subr.bf16.mxu0 0
      %2195 = vmatpush1.bf16.msra.mxu0 %v2182
      %2196 = vmatprep.subr.bf16.mxu0 0
      %2197 = vmatpush1.bf16.msra.mxu0 %v2181
      %2198 = vmatprep.subr.bf16.mxu0 0
      %2199 = vmatpush1.bf16.msra.mxu0 %v2180
      %2200 = vmatprep.subr.bf16.mxu0 0
      %2201 = vmatpush1.bf16.msra.mxu0 %v2179
      %2202 = vmatprep.subr.bf16.mxu0 0
      %2203 = vmatpush1.bf16.msra.mxu0 %v2178
      %2204 = vmatprep.subr.bf16.mxu0 0
      %2205 = vmatpush1.bf16.msra.mxu0 %v2177
      %2206 = vmatprep.subr.bf16.mxu0 0
      %2207 = vmatpush1.bf16.msra.mxu0 %v2176
      %2208 = vmatprep.subr.bf16.mxu0 0
      %2209 = vmatpush2.bf16.msra.mxu0 0
      %2210 = vmatprep.subr.bf16.mxu0 0
      %2211 = vmatpush2.bf16.msra.mxu0 0
      %2212 = vmatprep.subr.bf16.mxu0 0
      %2213 = vmatpush2.bf16.msra.mxu0 0
      %2214 = vmatprep.subr.bf16.mxu0 0
      %2215 = vmatpush2.bf16.msra.mxu0 0
      %2216 = vmatprep.subr.bf16.mxu0 0
      %2217 = vmatpush2.bf16.msra.mxu0 0
      %2218 = vmatprep.subr.bf16.mxu0 0
      %2219 = vmatpush2.bf16.msra.mxu0 0
      %2220 = vmatprep.subr.bf16.mxu0 0
      %2221 = vmatpush2.bf16.msra.mxu0 0
      %2222 = vmatprep.subr.bf16.mxu0 0
      %2223 = vmatpush2.bf16.msra.mxu0 0
      %2224 = vmatprep.mubr.bf16.mxu0 0
      %2225 = vmatmul.mubr.bf16.gmra.mxu0 %v2119
      %v2226 = vpop.f32.mrf.mxu0
      %v2227 = vadd.f32 %v2142, %v2226
      %v2228 = vpop.f32.mrf.mxu0
      %v2229 = vpop.f32.mrf.mxu0
      %v2230 = vadd.f32 %v2142, %v2229
      %v2231 = vpop.f32.mrf.mxu0
      %2232 = vmatprep.mubr.bf16.mxu0 0
      %2233 = vmatmul.mubr.bf16.gmra.mxu0 %v2120
      %v2234 = vpop.f32.mrf.mxu0
      %v2235 = vadd.f32 %v2142, %v2234
      %v2236 = vpop.f32.mrf.mxu0
      %v2237 = vpop.f32.mrf.mxu0
      %v2238 = vadd.f32 %v2142, %v2237
      %v2239 = vpop.f32.mrf.mxu0
      %2240 = vdwg.mxu0
      %v2241 = vadd.f32 %v1941, %v2227
      %v2242 = vadd.f32 %v1942, %v2230
      %v2243 = vadd.f32 %v1943, %v2235
      %v2244 = vadd.f32 %v1944, %v2238
      %2245 = vst.msk [vmem:[%s531] sm:$0xf] %vm535, %v2241
      %s2246 = scalar_lea.vmem %s531, 8
      %vm2247 = vcmask 261124
      %2248 = vst.msk [vmem:[%s2246 - $0x4] sm:$0xf0] %vm2247, %v2241
      %s2249 = scalar_lea.vmem %s531, 16
      %2250 = vst.msk [vmem:[%s2249] sm:$0xf] %vm535, %v2242
      %s2251 = scalar_lea.vmem %s531, 24
      %2252 = vst.msk [vmem:[%s2251 - $0x4] sm:$0xf0] %vm2247, %v2242
      %2253 = vst.msk [vmem:[%s531 + $0x4] sm:$0xf] %vm535, %v2243
      %2254 = vst.msk [vmem:[%s2246] sm:$0xf0] %vm2247, %v2243
      %2255 = vst.msk [vmem:[%s2249 + $0x4] sm:$0xf] %vm535, %v2244
      %2256 = vst.msk [vmem:[%s2251] sm:$0xf0] %vm2247, %v2244
      %s2257 = smul.u32 4, %s31
      %p2258 = scmp.lt.s32.totalorder %s30, 1
      %s2259 = scalar_select %p2258, %s30, 1
      %p2260 = scmp.lt.s32.totalorder %s2257, 7
      %s2261 = scalar_select %p2260, %s2257, 7
      %p2262 = scmp.lt.s32.totalorder %s32, 0
      %s2263 = scalar_select %p2262, %s32, 0
      %s2264 = sadd.s32 %s2263, %s2261
      %s2265 = smul.addr %s2259, 8
      %s2266 = sadd.s32 %s2264, %s2265
      %s2267 = smul.addr %s2266, 8
      %s2268 = scalar_lea.vmem %s14, %s2267
      // Predicated region
      $region77: #{_basic_layer_jit.2} parent=75 // pred_check
        %p2269 = pneg %p369
      $region78: #{_basic_layer_jit.2} parent=75 // pred_check_branch
        %2271 = sbr.rel (%p2269) target = $region80
      $region79: #{_basic_layer_jit.2} parent=75 // pred_region
        %s2272 = smul.u32 4, %s31
      $region80: #{_basic_layer_jit.2} parent=75 // pred_fallthru
        _
    $region76: #{_basic_layer_jit.2} parent=5 // pred_fallthru
      _
    %p2273 = scmp.le.s32.totalorder 2, %s20
    // Predicated region
    $region81: #{_basic_layer_jit.2} parent=5 // pred_check
      %p2274 = pneg %p2273
    $region82: #{_basic_layer_jit.2} parent=5 // pred_check_branch
      %2276 = sbr.rel (%p2274) target = $region84
    $region83: #{_basic_layer_jit.2} parent=5 // pred_region
      %s2277 = ssub.s32 %s20, 2
      // Predicated region
      $region85: #{_basic_layer_jit.2} parent=83 // pred_check
        %p2278 = pneg %p375
      $region86: #{_basic_layer_jit.2} parent=83 // pred_check_branch
        %2280 = sbr.rel (%p2278) target = $region88
      $region87: #{_basic_layer_jit.2} parent=83 // pred_region
        %s2281 = smul.u32 4, %s34
        %p2282 = scmp.lt.s32.totalorder %s33, 1
        %s2283 = scalar_select %p2282, %s33, 1
        %p2284 = scmp.lt.s32.totalorder %s2281, 7
        %s2285 = scalar_select %p2284, %s2281, 7
        %p2286 = scmp.lt.s32.totalorder %s35, 0
        %s2287 = scalar_select %p2286, %s35, 0
        %s2288 = sadd.s32 %s2287, %s2285
        %s2289 = smul.addr %s2283, 8
        %s2290 = sadd.s32 %s2288, %s2289
        %s2291 = smul.addr %s2290, 8
        %s2292 = scalar_lea.vmem %s14, %s2291
      $region88: #{_basic_layer_jit.2} parent=83 // pred_fallthru
        _
    $region84: #{_basic_layer_jit.2} parent=5 // pred_fallthru
      _
  $region6: #{_basic_layer_jit.2} parent=0 // loop_footer
    %s24 = sadd.s32 1, %s20
  $region7: #{_basic_layer_jit.2} parent=0 // loop_footer_branch
    %19 = sbr.rel target = $region3
  $region8: #{_basic_layer_jit.2} parent=0 // loop_exit
    _

// kernel: _basic_layer_jit.3
$region0: #{_basic_layer_jit.3}
  #allocation0 [shape = 'u32[]', space=smem, size = 0x4, offset = 0x4, fixed_abs, tag = 'smem constant byte address 0x4 - core index']
  #allocation1 [shape = 'u32[144,128]{1,0:T(1,128)}', space=vmem, size = 0x12000, scoped, tag = 'internal scratch']
  #allocation2 [shape = 'f32[32,32]{1,0:T(8,128)}', space=vmem, size = 0x4000, scoped, tag = 'scratch operand']
  %s0 = inlined_call_operand.vmem [shape: f32[2,8,8,32], index: 0, kind: input, shape index: {}]
  %s1 = inlined_call_operand.vmem [shape: f32[2,2,16,16], index: 1, kind: input, shape index: {}]
  %s2 = inlined_call_operand.vmem [shape: f32[4,16,16], index: 2, kind: input, shape index: {}]
  %s3 = inlined_call_operand.vmem [shape: f32[1,32], index: 3, kind: input, shape index: {}]
  %s4 = inlined_call_operand.vmem [shape: f32[1,32], index: 4, kind: input, shape index: {}]
  %s5 = inlined_call_operand.vmem [shape: bf16[32,96], index: 5, kind: input, shape index: {}]
  %s6 = inlined_call_operand.vmem [shape: f32[1,96], index: 6, kind: input, shape index: {}]
  %s7 = inlined_call_operand.vmem [shape: bf16[32,32], index: 7, kind: input, shape index: {}]
  %s8 = inlined_call_operand.vmem [shape: f32[1,32], index: 8, kind: input, shape index: {}]
  %s9 = inlined_call_operand.vmem [shape: f32[1,32], index: 9, kind: input, shape index: {}]
  %s10 = inlined_call_operand.vmem [shape: f32[1,32], index: 10, kind: input, shape index: {}]
  %s11 = inlined_call_operand.vmem [shape: bf16[32,128], index: 11, kind: input, shape index: {}]
  %s12 = inlined_call_operand.vmem [shape: f32[1,128], index: 12, kind: input, shape index: {}]
  %s13 = inlined_call_operand.vmem [shape: bf16[128,32], index: 13, kind: input, shape index: {}]
  %s14 = inlined_call_operand.vmem [shape: f32[1,32], index: 14, kind: input, shape index: {}]
  %s15 = inlined_call_operand.vmem [shape: f32[2,8,8,32], index: 15, kind: output, shape index: {}]
  %s16 = sld [smem:[#allocation0]]
  $region93: #{_basic_layer_jit.3} parent=0
    _
  %s18 = ssub.s32 1, %s16
  %s19 = scalar_select 0, %s18, %s16
  loop: start=0, step=1, limit=6
  $region2: #{_basic_layer_jit.3} parent=0 // loop_pre_header
    _
  $region3: #{_basic_layer_jit.3} parent=0 // loop_header
    %s21 = sphi 0, %s25
    %p22 = scmp.ge.s32.totalorder %s21, 6
    %s28 = sphi 0, %s47
    %s29 = sphi 0, %s43
    %s30 = sphi 0, %s39
    %s31 = sphi 0, %s28
    %s32 = sphi 0, %s29
    %s33 = sphi 0, %s30
    %s34 = sphi 0, %s31
    %s35 = sphi 0, %s32
    %s36 = sphi 0, %s33
    %s54 = sphi 0, %s56
    %s57 = sphi 0, %s54
    %s58 = sphi 0, %s57
    %s74 = sphi 0, %s58
    %s82 = sphi 0, %s84
    %s85 = sphi 0, %s82
    %s86 = sphi 0, %s85
    %s102 = sphi 0, %s86
    %s106 = sphi 0, %s106
    %s108 = sphi 0, %s106
    %s109 = sphi 0, %s108
    %s123 = sphi 0, %s109
    %s127 = sphi 0, %s127
    %s129 = sphi 0, %s127
    %s130 = sphi 0, %s129
    %s144 = sphi 0, %s130
    %s148 = sphi 0, %s148
    %s150 = sphi 0, %s148
    %s151 = sphi 0, %s150
    %s165 = sphi 0, %s151
    %s169 = sphi 0, %s169
    %s171 = sphi 0, %s169
    %s172 = sphi 0, %s171
    %s186 = sphi 0, %s172
    %s190 = sphi 0, %s190
    %s192 = sphi 0, %s190
    %s193 = sphi 0, %s192
    %s207 = sphi 0, %s193
    %s211 = sphi 0, %s211
    %s213 = sphi 0, %s211
    %s214 = sphi 0, %s213
    %s228 = sphi 0, %s214
    %s232 = sphi 0, %s232
    %s234 = sphi 0, %s232
    %s235 = sphi 0, %s234
    %s249 = sphi 0, %s235
    %s253 = sphi 0, %s253
    %s255 = sphi 0, %s253
    %s256 = sphi 0, %s255
    %s270 = sphi 0, %s256
    %s274 = sphi 0, %s274
    %s276 = sphi 0, %s274
    %s277 = sphi 0, %s276
    %s291 = sphi 0, %s277
    %s295 = sphi 0, %s295
    %s297 = sphi 0, %s295
    %s298 = sphi 0, %s297
    %s312 = sphi 0, %s298
    %s316 = sphi 0, %s316
    %s318 = sphi 0, %s316
    %s319 = sphi 0, %s318
    %s333 = sphi 0, %s319
    %s337 = sphi 0, %s337
    %s339 = sphi 0, %s337
    %s340 = sphi 0, %s339
    %s354 = sphi 0, %s340
    %s358 = sphi 0, %s358
    %s360 = sphi 0, %s358
    %s361 = sphi 0, %s360
    %s375 = sphi 0, %s361
    %s385 = sphi 0, %s387
    %s388 = sphi 0, %s385
    %s389 = sphi 0, %s388
    %s405 = sphi 0, %s389
  $region4: #{_basic_layer_jit.3} parent=0 // loop_header_branch
    %24 = sbr.rel (%p22) target = $region8
  $region5: #{_basic_layer_jit.3} parent=0 // loop_body
    %s26 = ssub.s32 %s21, 1
    %s27 = ssub.s32 %s21, 2
    %s37 = sadd.s32 1, %s30
    %p38 = scmp.ge.s32.totalorder %s37, 1
    %s39 = scalar_select %p38, 0, %s37
    %s40 = sadd.s32 1, %s29
    %s41 = scalar_select %p38, %s40, %s29
    %p42 = scmp.ge.s32.totalorder %s41, 2
    %s43 = scalar_select %p42, 0, %s41
    %s44 = sadd.s32 1, %s28
    %s45 = scalar_select %p42, %s44, %s28
    %p46 = scmp.ge.s32.totalorder %s45, 2
    %s47 = scalar_select %p46, 0, %s45
    %s48 = ssub.s32 %s28, %s47
    %s49 = ssub.s32 %s29, %s43
    %s50 = sor.u32 %s48, %s49
    %s51 = ssub.s32 %s30, %s39
    %s52 = sor.u32 %s50, %s51
    %p53 = scmp.eq.s32.totalorder %s52, 0
    %s55 = sadd.s32 %s54, 1
    %s56 = scalar_select %p53, %s54, %s55
    %p59 = pneg %p53
    %p60 = scmp.eq.s32.totalorder %s21, 3
    %p61 = por %p59, %p60
    %p62 = scmp.ne.s32.totalorder %s54, %s57
    %p63 = scmp.eq.s32.totalorder %s21, 0
    %p64 = por %p62, %p63
    %p65 = scmp.ne.s32.totalorder %s54, %s57
    %p66 = scmp.eq.s32.totalorder %s26, 3
    %p67 = por %p65, %p66
    %p68 = scmp.ne.s32.totalorder %s57, %s58
    %p69 = scmp.eq.s32.totalorder %s26, 0
    %p70 = por %p68, %p69
    %p71 = scmp.ne.s32.totalorder %s57, %s58
    %p72 = scmp.eq.s32.totalorder %s27, 3
    %p73 = por %p71, %p72
    %p75 = scmp.ne.s32.totalorder %s58, %s74
    %p76 = scmp.eq.s32.totalorder %s27, 0
    %p77 = por %p75, %p76
    %s78 = ssub.s32 %s29, %s43
    %s79 = ssub.s32 %s30, %s39
    %s80 = sor.u32 %s78, %s79
    %p81 = scmp.eq.s32.totalorder %s80, 0
    %s83 = sadd.s32 %s82, 1
    %s84 = scalar_select %p81, %s82, %s83
    %p87 = pneg %p81
    %p88 = scmp.eq.s32.totalorder %s21, 3
    %p89 = por %p87, %p88
    %p90 = scmp.ne.s32.totalorder %s82, %s85
    %p91 = scmp.eq.s32.totalorder %s21, 0
    %p92 = por %p90, %p91
    %p93 = scmp.ne.s32.totalorder %s82, %s85
    %p94 = scmp.eq.s32.totalorder %s26, 3
    %p95 = por %p93, %p94
    %p96 = scmp.ne.s32.totalorder %s85, %s86
    %p97 = scmp.eq.s32.totalorder %s26, 0
    %p98 = por %p96, %p97
    %p99 = scmp.ne.s32.totalorder %s85, %s86
    %p100 = scmp.eq.s32.totalorder %s27, 3
    %p101 = por %p99, %p100
    %p103 = scmp.ne.s32.totalorder %s86, %s102
    %p104 = scmp.eq.s32.totalorder %s27, 0
    %p105 = por %p103, %p104
    %s107 = sadd.s32 %s106, 1
    %p110 = scmp.eq.s32.totalorder %s21, 3
    %p111 = scmp.ne.s32.totalorder %s106, %s108
    %p112 = scmp.eq.s32.totalorder %s21, 0
    %p113 = por %p111, %p112
    %p114 = scmp.ne.s32.totalorder %s106, %s108
    %p115 = scmp.eq.s32.totalorder %s26, 3
    %p116 = por %p114, %p115
    %p117 = scmp.ne.s32.totalorder %s108, %s109
    %p118 = scmp.eq.s32.totalorder %s26, 0
    %p119 = por %p117, %p118
    %p120 = scmp.ne.s32.totalorder %s108, %s109
    %p121 = scmp.eq.s32.totalorder %s27, 3
    %p122 = por %p120, %p121
    %p124 = scmp.ne.s32.totalorder %s109, %s123
    %p125 = scmp.eq.s32.totalorder %s27, 0
    %p126 = por %p124, %p125
    %s128 = sadd.s32 %s127, 1
    %p131 = scmp.eq.s32.totalorder %s21, 3
    %p132 = scmp.ne.s32.totalorder %s127, %s129
    %p133 = scmp.eq.s32.totalorder %s21, 0
    %p134 = por %p132, %p133
    %p135 = scmp.ne.s32.totalorder %s127, %s129
    %p136 = scmp.eq.s32.totalorder %s26, 3
    %p137 = por %p135, %p136
    %p138 = scmp.ne.s32.totalorder %s129, %s130
    %p139 = scmp.eq.s32.totalorder %s26, 0
    %p140 = por %p138, %p139
    %p141 = scmp.ne.s32.totalorder %s129, %s130
    %p142 = scmp.eq.s32.totalorder %s27, 3
    %p143 = por %p141, %p142
    %p145 = scmp.ne.s32.totalorder %s130, %s144
    %p146 = scmp.eq.s32.totalorder %s27, 0
    %p147 = por %p145, %p146
    %s149 = sadd.s32 %s148, 1
    %p152 = scmp.eq.s32.totalorder %s21, 3
    %p153 = scmp.ne.s32.totalorder %s148, %s150
    %p154 = scmp.eq.s32.totalorder %s21, 0
    %p155 = por %p153, %p154
    %p156 = scmp.ne.s32.totalorder %s148, %s150
    %p157 = scmp.eq.s32.totalorder %s26, 3
    %p158 = por %p156, %p157
    %p159 = scmp.ne.s32.totalorder %s150, %s151
    %p160 = scmp.eq.s32.totalorder %s26, 0
    %p161 = por %p159, %p160
    %p162 = scmp.ne.s32.totalorder %s150, %s151
    %p163 = scmp.eq.s32.totalorder %s27, 3
    %p164 = por %p162, %p163
    %p166 = scmp.ne.s32.totalorder %s151, %s165
    %p167 = scmp.eq.s32.totalorder %s27, 0
    %p168 = por %p166, %p167
    %s170 = sadd.s32 %s169, 1
    %p173 = scmp.eq.s32.totalorder %s21, 3
    %p174 = scmp.ne.s32.totalorder %s169, %s171
    %p175 = scmp.eq.s32.totalorder %s21, 0
    %p176 = por %p174, %p175
    %p177 = scmp.ne.s32.totalorder %s169, %s171
    %p178 = scmp.eq.s32.totalorder %s26, 3
    %p179 = por %p177, %p178
    %p180 = scmp.ne.s32.totalorder %s171, %s172
    %p181 = scmp.eq.s32.totalorder %s26, 0
    %p182 = por %p180, %p181
    %p183 = scmp.ne.s32.totalorder %s171, %s172
    %p184 = scmp.eq.s32.totalorder %s27, 3
    %p185 = por %p183, %p184
    %p187 = scmp.ne.s32.totalorder %s172, %s186
    %p188 = scmp.eq.s32.totalorder %s27, 0
    %p189 = por %p187, %p188
    %s191 = sadd.s32 %s190, 1
    %p194 = scmp.eq.s32.totalorder %s21, 3
    %p195 = scmp.ne.s32.totalorder %s190, %s192
    %p196 = scmp.eq.s32.totalorder %s21, 0
    %p197 = por %p195, %p196
    %p198 = scmp.ne.s32.totalorder %s190, %s192
    %p199 = scmp.eq.s32.totalorder %s26, 3
    %p200 = por %p198, %p199
    %p201 = scmp.ne.s32.totalorder %s192, %s193
    %p202 = scmp.eq.s32.totalorder %s26, 0
    %p203 = por %p201, %p202
    %p204 = scmp.ne.s32.totalorder %s192, %s193
    %p205 = scmp.eq.s32.totalorder %s27, 3
    %p206 = por %p204, %p205
    %p208 = scmp.ne.s32.totalorder %s193, %s207
    %p209 = scmp.eq.s32.totalorder %s27, 0
    %p210 = por %p208, %p209
    %s212 = sadd.s32 %s211, 1
    %p215 = scmp.eq.s32.totalorder %s21, 3
    %p216 = scmp.ne.s32.totalorder %s211, %s213
    %p217 = scmp.eq.s32.totalorder %s21, 0
    %p218 = por %p216, %p217
    %p219 = scmp.ne.s32.totalorder %s211, %s213
    %p220 = scmp.eq.s32.totalorder %s26, 3
    %p221 = por %p219, %p220
    %p222 = scmp.ne.s32.totalorder %s213, %s214
    %p223 = scmp.eq.s32.totalorder %s26, 0
    %p224 = por %p222, %p223
    %p225 = scmp.ne.s32.totalorder %s213, %s214
    %p226 = scmp.eq.s32.totalorder %s27, 3
    %p227 = por %p225, %p226
    %p229 = scmp.ne.s32.totalorder %s214, %s228
    %p230 = scmp.eq.s32.totalorder %s27, 0
    %p231 = por %p229, %p230
    %s233 = sadd.s32 %s232, 1
    %p236 = scmp.eq.s32.totalorder %s21, 3
    %p237 = scmp.ne.s32.totalorder %s232, %s234
    %p238 = scmp.eq.s32.totalorder %s21, 0
    %p239 = por %p237, %p238
    %p240 = scmp.ne.s32.totalorder %s232, %s234
    %p241 = scmp.eq.s32.totalorder %s26, 3
    %p242 = por %p240, %p241
    %p243 = scmp.ne.s32.totalorder %s234, %s235
    %p244 = scmp.eq.s32.totalorder %s26, 0
    %p245 = por %p243, %p244
    %p246 = scmp.ne.s32.totalorder %s234, %s235
    %p247 = scmp.eq.s32.totalorder %s27, 3
    %p248 = por %p246, %p247
    %p250 = scmp.ne.s32.totalorder %s235, %s249
    %p251 = scmp.eq.s32.totalorder %s27, 0
    %p252 = por %p250, %p251
    %s254 = sadd.s32 %s253, 1
    %p257 = scmp.eq.s32.totalorder %s21, 3
    %p258 = scmp.ne.s32.totalorder %s253, %s255
    %p259 = scmp.eq.s32.totalorder %s21, 0
    %p260 = por %p258, %p259
    %p261 = scmp.ne.s32.totalorder %s253, %s255
    %p262 = scmp.eq.s32.totalorder %s26, 3
    %p263 = por %p261, %p262
    %p264 = scmp.ne.s32.totalorder %s255, %s256
    %p265 = scmp.eq.s32.totalorder %s26, 0
    %p266 = por %p264, %p265
    %p267 = scmp.ne.s32.totalorder %s255, %s256
    %p268 = scmp.eq.s32.totalorder %s27, 3
    %p269 = por %p267, %p268
    %p271 = scmp.ne.s32.totalorder %s256, %s270
    %p272 = scmp.eq.s32.totalorder %s27, 0
    %p273 = por %p271, %p272
    %s275 = sadd.s32 %s274, 1
    %p278 = scmp.eq.s32.totalorder %s21, 3
    %p279 = scmp.ne.s32.totalorder %s274, %s276
    %p280 = scmp.eq.s32.totalorder %s21, 0
    %p281 = por %p279, %p280
    %p282 = scmp.ne.s32.totalorder %s274, %s276
    %p283 = scmp.eq.s32.totalorder %s26, 3
    %p284 = por %p282, %p283
    %p285 = scmp.ne.s32.totalorder %s276, %s277
    %p286 = scmp.eq.s32.totalorder %s26, 0
    %p287 = por %p285, %p286
    %p288 = scmp.ne.s32.totalorder %s276, %s277
    %p289 = scmp.eq.s32.totalorder %s27, 3
    %p290 = por %p288, %p289
    %p292 = scmp.ne.s32.totalorder %s277, %s291
    %p293 = scmp.eq.s32.totalorder %s27, 0
    %p294 = por %p292, %p293
    %s296 = sadd.s32 %s295, 1
    %p299 = scmp.eq.s32.totalorder %s21, 3
    %p300 = scmp.ne.s32.totalorder %s295, %s297
    %p301 = scmp.eq.s32.totalorder %s21, 0
    %p302 = por %p300, %p301
    %p303 = scmp.ne.s32.totalorder %s295, %s297
    %p304 = scmp.eq.s32.totalorder %s26, 3
    %p305 = por %p303, %p304
    %p306 = scmp.ne.s32.totalorder %s297, %s298
    %p307 = scmp.eq.s32.totalorder %s26, 0
    %p308 = por %p306, %p307
    %p309 = scmp.ne.s32.totalorder %s297, %s298
    %p310 = scmp.eq.s32.totalorder %s27, 3
    %p311 = por %p309, %p310
    %p313 = scmp.ne.s32.totalorder %s298, %s312
    %p314 = scmp.eq.s32.totalorder %s27, 0
    %p315 = por %p313, %p314
    %s317 = sadd.s32 %s316, 1
    %p320 = scmp.eq.s32.totalorder %s21, 3
    %p321 = scmp.ne.s32.totalorder %s316, %s318
    %p322 = scmp.eq.s32.totalorder %s21, 0
    %p323 = por %p321, %p322
    %p324 = scmp.ne.s32.totalorder %s316, %s318
    %p325 = scmp.eq.s32.totalorder %s26, 3
    %p326 = por %p324, %p325
    %p327 = scmp.ne.s32.totalorder %s318, %s319
    %p328 = scmp.eq.s32.totalorder %s26, 0
    %p329 = por %p327, %p328
    %p330 = scmp.ne.s32.totalorder %s318, %s319
    %p331 = scmp.eq.s32.totalorder %s27, 3
    %p332 = por %p330, %p331
    %p334 = scmp.ne.s32.totalorder %s319, %s333
    %p335 = scmp.eq.s32.totalorder %s27, 0
    %p336 = por %p334, %p335
    %s338 = sadd.s32 %s337, 1
    %p341 = scmp.eq.s32.totalorder %s21, 3
    %p342 = scmp.ne.s32.totalorder %s337, %s339
    %p343 = scmp.eq.s32.totalorder %s21, 0
    %p344 = por %p342, %p343
    %p345 = scmp.ne.s32.totalorder %s337, %s339
    %p346 = scmp.eq.s32.totalorder %s26, 3
    %p347 = por %p345, %p346
    %p348 = scmp.ne.s32.totalorder %s339, %s340
    %p349 = scmp.eq.s32.totalorder %s26, 0
    %p350 = por %p348, %p349
    %p351 = scmp.ne.s32.totalorder %s339, %s340
    %p352 = scmp.eq.s32.totalorder %s27, 3
    %p353 = por %p351, %p352
    %p355 = scmp.ne.s32.totalorder %s340, %s354
    %p356 = scmp.eq.s32.totalorder %s27, 0
    %p357 = por %p355, %p356
    %s359 = sadd.s32 %s358, 1
    %p362 = scmp.eq.s32.totalorder %s21, 3
    %p363 = scmp.ne.s32.totalorder %s358, %s360
    %p364 = scmp.eq.s32.totalorder %s21, 0
    %p365 = por %p363, %p364
    %p366 = scmp.ne.s32.totalorder %s358, %s360
    %p367 = scmp.eq.s32.totalorder %s26, 3
    %p368 = por %p366, %p367
    %p369 = scmp.ne.s32.totalorder %s360, %s361
    %p370 = scmp.eq.s32.totalorder %s26, 0
    %p371 = por %p369, %p370
    %p372 = scmp.ne.s32.totalorder %s360, %s361
    %p373 = scmp.eq.s32.totalorder %s27, 3
    %p374 = por %p372, %p373
    %p376 = scmp.ne.s32.totalorder %s361, %s375
    %p377 = scmp.eq.s32.totalorder %s27, 0
    %p378 = por %p376, %p377
    %s379 = ssub.s32 %s28, %s47
    %s380 = ssub.s32 %s29, %s43
    %s381 = sor.u32 %s379, %s380
    %s382 = ssub.s32 %s30, %s39
    %s383 = sor.u32 %s381, %s382
    %p384 = scmp.eq.s32.totalorder %s383, 0
    %s386 = sadd.s32 %s385, 1
    %s387 = scalar_select %p384, %s385, %s386
    %p390 = pneg %p384
    %p391 = scmp.eq.s32.totalorder %s21, 3
    %p392 = por %p390, %p391
    %p393 = scmp.ne.s32.totalorder %s385, %s388
    %p394 = scmp.eq.s32.totalorder %s21, 0
    %p395 = por %p393, %p394
    %p396 = scmp.ne.s32.totalorder %s385, %s388
    %p397 = scmp.eq.s32.totalorder %s26, 3
    %p398 = por %p396, %p397
    %p399 = scmp.ne.s32.totalorder %s388, %s389
    %p400 = scmp.eq.s32.totalorder %s26, 0
    %p401 = por %p399, %p400
    %p402 = scmp.ne.s32.totalorder %s388, %s389
    %p403 = scmp.eq.s32.totalorder %s27, 3
    %p404 = por %p402, %p403
    %p406 = scmp.ne.s32.totalorder %s389, %s405
    %p407 = scmp.eq.s32.totalorder %s27, 0
    %p408 = por %p406, %p407
    %p409 = scmp.le.s32.totalorder 1, %s21
    %p410 = scmp.lt.s32.totalorder %s21, 5
    %p411 = pnand %p409, %p410
    %p412 = pneg %p411
    // Predicated region
    $region9: #{_basic_layer_jit.3} parent=5 // pred_check
      _
    $region10: #{_basic_layer_jit.3} parent=5 // pred_check_branch
      %414 = sbr.rel (%p411) target = $region12
    $region11: #{_basic_layer_jit.3} parent=5 // pred_region
      %s415 = ssub.s32 %s21, 1
      // Predicated region
      $region13: #{_basic_layer_jit.3} parent=11 // pred_check
        %p416 = pneg %p119
      $region14: #{_basic_layer_jit.3} parent=11 // pred_check_branch
        %418 = sbr.rel (%p416) target = $region16
      $region15: #{_basic_layer_jit.3} parent=11 // pred_region
        _
      $region16: #{_basic_layer_jit.3} parent=11 // pred_fallthru
        _
      // Predicated region
      $region17: #{_basic_layer_jit.3} parent=11 // pred_check
        %p419 = pneg %p140
      $region18: #{_basic_layer_jit.3} parent=11 // pred_check_branch
        %421 = sbr.rel (%p419) target = $region20
      $region19: #{_basic_layer_jit.3} parent=11 // pred_region
        _
      $region20: #{_basic_layer_jit.3} parent=11 // pred_fallthru
        _
      // Predicated region
      $region21: #{_basic_layer_jit.3} parent=11 // pred_check
        %p422 = pneg %p161
      $region22: #{_basic_layer_jit.3} parent=11 // pred_check_branch
        %424 = sbr.rel (%p422) target = $region24
      $region23: #{_basic_layer_jit.3} parent=11 // pred_region
        _
      $region24: #{_basic_layer_jit.3} parent=11 // pred_fallthru
        _
      // Predicated region
      $region25: #{_basic_layer_jit.3} parent=11 // pred_check
        %p425 = pneg %p182
      $region26: #{_basic_layer_jit.3} parent=11 // pred_check_branch
        %427 = sbr.rel (%p425) target = $region28
      $region27: #{_basic_layer_jit.3} parent=11 // pred_region
        _
      $region28: #{_basic_layer_jit.3} parent=11 // pred_fallthru
        _
      // Predicated region
      $region29: #{_basic_layer_jit.3} parent=11 // pred_check
        %p428 = pneg %p203
      $region30: #{_basic_layer_jit.3} parent=11 // pred_check_branch
        %430 = sbr.rel (%p428) target = $region32
      $region31: #{_basic_layer_jit.3} parent=11 // pred_region
        _
      $region32: #{_basic_layer_jit.3} parent=11 // pred_fallthru
        _
      // Predicated region
      $region33: #{_basic_layer_jit.3} parent=11 // pred_check
        %p431 = pneg %p224
      $region34: #{_basic_layer_jit.3} parent=11 // pred_check_branch
        %433 = sbr.rel (%p431) target = $region36
      $region35: #{_basic_layer_jit.3} parent=11 // pred_region
        _
      $region36: #{_basic_layer_jit.3} parent=11 // pred_fallthru
        _
      // Predicated region
      $region37: #{_basic_layer_jit.3} parent=11 // pred_check
        %p434 = pneg %p245
      $region38: #{_basic_layer_jit.3} parent=11 // pred_check_branch
        %436 = sbr.rel (%p434) target = $region40
      $region39: #{_basic_layer_jit.3} parent=11 // pred_region
        _
      $region40: #{_basic_layer_jit.3} parent=11 // pred_fallthru
        _
      // Predicated region
      $region41: #{_basic_layer_jit.3} parent=11 // pred_check
        %p437 = pneg %p266
      $region42: #{_basic_layer_jit.3} parent=11 // pred_check_branch
        %439 = sbr.rel (%p437) target = $region44
      $region43: #{_basic_layer_jit.3} parent=11 // pred_region
        _
      $region44: #{_basic_layer_jit.3} parent=11 // pred_fallthru
        _
      // Predicated region
      $region45: #{_basic_layer_jit.3} parent=11 // pred_check
        %p440 = pneg %p287
      $region46: #{_basic_layer_jit.3} parent=11 // pred_check_branch
        %442 = sbr.rel (%p440) target = $region48
      $region47: #{_basic_layer_jit.3} parent=11 // pred_region
        _
      $region48: #{_basic_layer_jit.3} parent=11 // pred_fallthru
        _
      // Predicated region
      $region49: #{_basic_layer_jit.3} parent=11 // pred_check
        %p443 = pneg %p308
      $region50: #{_basic_layer_jit.3} parent=11 // pred_check_branch
        %445 = sbr.rel (%p443) target = $region52
      $region51: #{_basic_layer_jit.3} parent=11 // pred_region
        _
      $region52: #{_basic_layer_jit.3} parent=11 // pred_fallthru
        _
      // Predicated region
      $region53: #{_basic_layer_jit.3} parent=11 // pred_check
        %p446 = pneg %p329
      $region54: #{_basic_layer_jit.3} parent=11 // pred_check_branch
        %448 = sbr.rel (%p446) target = $region56
      $region55: #{_basic_layer_jit.3} parent=11 // pred_region
        _
      $region56: #{_basic_layer_jit.3} parent=11 // pred_fallthru
        _
      // Predicated region
      $region57: #{_basic_layer_jit.3} parent=11 // pred_check
        %p449 = pneg %p350
      $region58: #{_basic_layer_jit.3} parent=11 // pred_check_branch
        %451 = sbr.rel (%p449) target = $region60
      $region59: #{_basic_layer_jit.3} parent=11 // pred_region
        _
      $region60: #{_basic_layer_jit.3} parent=11 // pred_fallthru
        _
      // Predicated region
      $region61: #{_basic_layer_jit.3} parent=11 // pred_check
        %p452 = pneg %p371
      $region62: #{_basic_layer_jit.3} parent=11 // pred_check_branch
        %454 = sbr.rel (%p452) target = $region64
      $region63: #{_basic_layer_jit.3} parent=11 // pred_region
        _
      $region64: #{_basic_layer_jit.3} parent=11 // pred_fallthru
        _
    $region12: #{_basic_layer_jit.3} parent=5 // pred_fallthru
      _
    %p455 = scmp.lt.s32.totalorder %s21, 4
    // Predicated region
    $region65: #{_basic_layer_jit.3} parent=5 // pred_check
      %p456 = pneg %p455
    $region66: #{_basic_layer_jit.3} parent=5 // pred_check_branch
      %458 = sbr.rel (%p456) target = $region68
    $region67: #{_basic_layer_jit.3} parent=5 // pred_region
      // Predicated region
      $region69: #{_basic_layer_jit.3} parent=67 // pred_check
        %p459 = pneg %p64
      $region70: #{_basic_layer_jit.3} parent=67 // pred_check_branch
        %461 = sbr.rel (%p459) target = $region72
      $region71: #{_basic_layer_jit.3} parent=67 // pred_region
        %s462 = smul.u32 4, %s29
        %p463 = scmp.lt.s32.totalorder %s28, 1
        %s464 = scalar_select %p463, %s28, 1
        %p465 = scmp.lt.s32.totalorder %s462, 7
        %s466 = scalar_select %p465, %s462, 7
        %p467 = scmp.lt.s32.totalorder %s30, 0
        %s468 = scalar_select %p467, %s30, 0
        %s469 = sadd.s32 %s468, %s466
        %s470 = smul.addr %s464, 8
        %s471 = sadd.s32 %s469, %s470
        %s472 = smul.addr %s471, 8
        %s473 = scalar_lea.vmem %s0, %s472
        %s474 = smul.u32 4, %s29
      $region72: #{_basic_layer_jit.3} parent=67 // pred_fallthru
        _
      // Predicated region
      $region73: #{_basic_layer_jit.3} parent=67 // pred_check
        %p475 = pneg %p92
      $region74: #{_basic_layer_jit.3} parent=67 // pred_check_branch
        %477 = sbr.rel (%p475) target = $region76
      $region75: #{_basic_layer_jit.3} parent=67 // pred_region
        %s478 = smul.u32 2, %s30
        %p479 = scmp.lt.s32.totalorder %s29, 1
        %s480 = scalar_select %p479, %s29, 1
        %p481 = scmp.lt.s32.totalorder %s478, 1
        %s482 = scalar_select %p481, %s478, 1
        %s483 = smul.addr %s482, 2
        %s484 = smul.addr %s480, 4
        %s485 = sadd.s32 %s483, %s484
        %s486 = smul.addr %s485, 8
        %s487 = scalar_lea.vmem %s1, %s486
        %s488 = smul.u32 2, %s30
      $region76: #{_basic_layer_jit.3} parent=67 // pred_fallthru
        _
    $region68: #{_basic_layer_jit.3} parent=5 // pred_fallthru
      _
    %p489 = scmp.le.s32.totalorder 1, %s21
    %p490 = scmp.lt.s32.totalorder %s21, 5
    %p491 = pnand %p489, %p490
    %p492 = pneg %p491
    // Predicated region
    $region77: #{_basic_layer_jit.3} parent=5 // pred_check
      _
    $region78: #{_basic_layer_jit.3} parent=5 // pred_check_branch
      %494 = sbr.rel (%p491) target = $region80
    $region79: #{_basic_layer_jit.3} parent=5 // pred_region
      %s495 = ssub.s32 %s21, 1
      %s496 = smul.u32 4, %s32
      %p497 = scmp.lt.s32.totalorder %s31, 1
      %s498 = scalar_select %p497, %s31, 1
      %p499 = scmp.lt.s32.totalorder %s496, 7
      %s500 = scalar_select %p499, %s496, 7
      %p501 = scmp.lt.s32.totalorder %s33, 0
      %s502 = scalar_select %p501, %s33, 0
      %s503 = sadd.s32 %s502, %s500
      %s504 = smul.addr %s498, 8
      %s505 = sadd.s32 %s503, %s504
      %s506 = smul.addr %s505, 8
      %s507 = scalar_lea.vmem %s0, %s506
      %p508 = pneg %p70
      %p509 = pneg %p67
      %s510 = smul.u32 2, %s33
      %p511 = scmp.lt.s32.totalorder %s32, 1
      %s512 = scalar_select %p511, %s32, 1
      %p513 = scmp.lt.s32.totalorder %s510, 1
      %s514 = scalar_select %p513, %s510, 1
      %s515 = smul.addr %s514, 2
      %s516 = smul.addr %s512, 4
      %s517 = sadd.s32 %s515, %s516
      %s518 = smul.addr %s517, 8
      %s519 = scalar_lea.vmem %s1, %s518
      %p520 = pneg %p98
      %p521 = pneg %p95
      %p522 = pneg %p119
      %p523 = pneg %p116
      %p524 = pneg %p140
      %p525 = pneg %p137
      %p526 = pneg %p161
      %p527 = pneg %p158
      %p528 = pneg %p182
      %p529 = pneg %p179
      %p530 = pneg %p203
      %p531 = pneg %p200
      %p532 = pneg %p224
      %p533 = pneg %p221
      %p534 = pneg %p245
      %p535 = pneg %p242
      %p536 = pneg %p266
      %p537 = pneg %p263
      %p538 = pneg %p287
      %p539 = pneg %p284
      %p540 = pneg %p308
      %p541 = pneg %p305
      %p542 = pneg %p329
      %p543 = pneg %p326
      %p544 = pneg %p350
      %p545 = pneg %p347
      %p546 = pneg %p371
      %p547 = pneg %p368
      %p548 = pneg %p401
      %p549 = pneg %p398
      %s550 = smul.u32 4, %s32
      %p551 = scmp.lt.s32.totalorder %s31, 1
      %s552 = scalar_select %p551, %s31, 1
      %p553 = scmp.lt.s32.totalorder %s550, 7
      %s554 = scalar_select %p553, %s550, 7
      %p555 = scmp.lt.s32.totalorder %s33, 0
      %s556 = scalar_select %p555, %s33, 0
      %s557 = sadd.s32 %s556, %s554
      %s558 = smul.addr %s552, 8
      %s559 = sadd.s32 %s557, %s558
      %s560 = smul.addr %s559, 8
      %s561 = scalar_lea.vmem %s15, %s560
      %s562 = smul.u32 4, %s32
      %p563 = scmp.lt.s32.totalorder %s31, 1
      %s564 = scalar_select %p563, %s31, 1
      %p565 = scmp.lt.s32.totalorder %s562, 7
      %s566 = scalar_select %p565, %s562, 7
      %p567 = scmp.lt.s32.totalorder %s33, 0
      %s568 = scalar_select %p567, %s33, 0
      %s569 = sadd.s32 %s568, %s566
      %s570 = smul.addr %s564, 8
      %s571 = sadd.s32 %s569, %s570
      %s572 = smul.addr %s571, 8
      %s573 = scalar_lea.vmem %s0, %s572
      %s574 = smul.u32 4, %s32
      %s575 = smul.u32 2, %s33
      %p576 = scmp.lt.s32.totalorder %s32, 1
      %s577 = scalar_select %p576, %s32, 1
      %p578 = scmp.lt.s32.totalorder %s575, 1
      %s579 = scalar_select %p578, %s575, 1
      %s580 = smul.addr %s579, 2
      %s581 = smul.addr %s577, 4
      %s582 = sadd.s32 %s580, %s581
      %s583 = smul.addr %s582, 8
      %s584 = scalar_lea.vmem %s1, %s583
      %s585 = smul.u32 2, %s33
      %s586 = smul.u32 4, %s32
      %p587 = scmp.lt.s32.totalorder %s31, 1
      %s588 = scalar_select %p587, %s31, 1
      %p589 = scmp.lt.s32.totalorder %s586, 7
      %s590 = scalar_select %p589, %s586, 7
      %p591 = scmp.lt.s32.totalorder %s33, 0
      %s592 = scalar_select %p591, %s33, 0
      %s593 = sadd.s32 %s592, %s590
      %s594 = smul.addr %s588, 8
      %s595 = sadd.s32 %s593, %s594
      %s596 = smul.addr %s595, 8
      %s597 = scalar_lea.vmem %s15, %s596
      %s598 = smul.u32 4, %s32
      %v600 = vld [vmem:[%s573] sm:$0xf]
      %vm601 = vcmask 257024
      %602 = vst.msk [vmem:[#allocation2] sm:$0xf] %vm601, %v600
      %s603 = scalar_lea.vmem %s573, 8
      %v604 = vld [vmem:[%s603] sm:$0xf]
      %605 = vst.msk [vmem:[#allocation2 + $0x4] sm:$0xf] %vm601, %v604
      %s606 = scalar_lea.vmem %s573, 16
      %v607 = vld [vmem:[%s606] sm:$0xf]
      %608 = vst.msk [vmem:[#allocation2 + $0x8] sm:$0xf] %vm601, %v607
      %s609 = scalar_lea.vmem %s573, 24
      %v610 = vld [vmem:[%s609] sm:$0xf]
      %611 = vst.msk [vmem:[#allocation2 + $0xc] sm:$0xf] %vm601, %v610
      %v612 = vld [vmem:[%s573 + $0x4] sm:$0xf]
      %613 = vst.msk [vmem:[#allocation2 + $0x10] sm:$0xf] %vm601, %v612
      %v614 = vld [vmem:[%s603 + $0x4] sm:$0xf]
      %615 = vst.msk [vmem:[#allocation2 + $0x14] sm:$0xf] %vm601, %v614
      %v616 = vld [vmem:[%s606 + $0x4] sm:$0xf]
      %617 = vst.msk [vmem:[#allocation2 + $0x18] sm:$0xf] %vm601, %v616
      %v618 = vld [vmem:[%s609 + $0x4] sm:$0xf]
      %619 = vst.msk [vmem:[#allocation2 + $0x1c] sm:$0xf] %vm601, %v618
      %v620 = vld [vmem:[#allocation2] sm:$0xff]
      %v621 = vld [vmem:[#allocation2 + $0x8] sm:$0xff]
      %v622 = vld [vmem:[#allocation2 + $0x10] sm:$0xff]
      %v623 = vld [vmem:[#allocation2 + $0x18] sm:$0xff]
      %vm624 = vcmask 261120
      %v625 = vsel %vm624, %v620, 0.0
      %626 = vadd.xlane.f32.xlu0 %v625
      %v627 = vpop.xlane.xlu0 %626
      %v628 = vsel %vm624, %v621, 0.0
      %629 = vadd.xlane.f32.xlu0 %v628
      %v630 = vpop.xlane.xlu0 %629
      %v631 = vsel %vm624, %v622, 0.0
      %632 = vadd.xlane.f32.xlu0 %v631
      %v633 = vpop.xlane.xlu0 %632
      %v634 = vsel %vm624, %v623, 0.0
      %635 = vadd.xlane.f32.xlu0 %v634
      %v636 = vpop.xlane.xlu0 %635
      %v637 = vrcp.pop 32.0
      %v638 = vmul.f32 %v627, %v637
      %v639 = vmul.f32 %v630, %v637
      %v640 = vmul.f32 %v633, %v637
      %v641 = vmul.f32 %v636, %v637
      %v642 = vsub.f32 %v620, %v638
      %v643 = vsub.f32 %v621, %v639
      %v644 = vsub.f32 %v622, %v640
      %v645 = vsub.f32 %v623, %v641
      %v646 = vmul.f32 %v642, %v642
      %v647 = vmul.f32 %v643, %v643
      %v648 = vmul.f32 %v644, %v644
      %v649 = vmul.f32 %v645, %v645
      %v650 = vsel %vm624, %v646, 0.0
      %651 = vadd.xlane.f32.xlu0 %v650
      %v652 = vpop.xlane.xlu0 %651
      %v653 = vsel %vm624, %v647, 0.0
      %654 = vadd.xlane.f32.xlu0 %v653
      %v655 = vpop.xlane.xlu0 %654
      %v656 = vsel %vm624, %v648, 0.0
      %657 = vadd.xlane.f32.xlu0 %v656
      %v658 = vpop.xlane.xlu0 %657
      %v659 = vsel %vm624, %v649, 0.0
      %660 = vadd.xlane.f32.xlu0 %v659
      %v661 = vpop.xlane.xlu0 %660
      %v662 = vmul.f32 %v652, %v637
      %v663 = vmul.f32 %v655, %v637
      %v664 = vmul.f32 %v658, %v637
      %v665 = vmul.f32 %v661, %v637
      %v666 = vadd.f32 %v662, 1e-05
      %v667 = vadd.f32 %v663, 1e-05
      %v668 = vadd.f32 %v664, 1e-05
      %v669 = vadd.f32 %v665, 1e-05
      %v670 = vrsqrt.pop %v666
      %v671 = vrsqrt.pop %v667
      %v672 = vrsqrt.pop %v668
      %v673 = vrsqrt.pop %v669
      %v674 = vmul.f32 %v642, %v670
      %v675 = vmul.f32 %v643, %v671
      %v676 = vmul.f32 %v644, %v672
      %v677 = vmul.f32 %v645, %v673
      %v678 = vld [vmem:[%s3] sm:$0x1]
      %v680 = vlaneseq
      %v681 = vshrl.u32 %v680, 7
      %v682 = vsub.s32 0, %v681
      %v683 = vrot.slane %v678, %v682
      %v685 = vmul.f32 %v674, %v683
      %v686 = vmul.f32 %v675, %v683
      %v687 = vmul.f32 %v676, %v683
      %v688 = vmul.f32 %v677, %v683
      %v689 = vld [vmem:[%s4] sm:$0x1]
      %v691 = vlaneseq
      %v692 = vshrl.u32 %v691, 7
      %v693 = vsub.s32 0, %v692
      %v694 = vrot.slane %v689, %v693
      %v696 = vadd.f32 %v685, %v694
      %v697 = vadd.f32 %v686, %v694
      %v698 = vadd.f32 %v687, %v694
      %v699 = vadd.f32 %v688, %v694
      %v700 = vpack.c.bf16 %v697, %v696
      %v701 = vpack.c.bf16 %v699, %v698
      %v702 = vld [vmem:[%s5] sm:$0xf]
      %v703 = vld [vmem:[%s5 + $0x4] sm:$0xf]
      %v704 = vld [vmem:[%s5 + $0x8] sm:$0xf]
      %v705 = vld [vmem:[%s5 + $0xc] sm:$0xf]
      %v706 = vld [vmem:[%s6] sm:$0x1]
      %v708 = vlaneseq
      %v709 = vshrl.u32 %v708, 7
      %v710 = vsub.s32 0, %v709
      %v711 = vrot.slane %v706, %v710
      %v717 = vunpack.c.l.b16 %v702
      %v718 = vunpack.c.l.b16 %v703
      %v719 = vunpack.c.l.b16 %v704
      %v720 = vunpack.c.l.b16 %v705
      %v721 = vpack.c.b16 %v718, %v717
      %v722 = vpack.c.b16 %v720, %v719
      %v726 = vsel %vm624, %v700, 0
      %v729 = vsel %vm624, %v701, 0
      %731 = vmatprep.subr.bf16.mxu0 0
      %732 = vmatpush1.bf16.msra.mxu0 0
      %733 = vmatprep.subr.bf16.mxu0 0
      %734 = vmatpush1.bf16.msra.mxu0 0
      %735 = vmatprep.subr.bf16.mxu0 0
      %736 = vmatpush1.bf16.msra.mxu0 0
      %737 = vmatprep.subr.bf16.mxu0 0
      %738 = vmatpush1.bf16.msra.mxu0 0
      %739 = vmatprep.subr.bf16.mxu0 0
      %740 = vmatpush1.bf16.msra.mxu0 0
      %741 = vmatprep.subr.bf16.mxu0 0
      %742 = vmatpush1.bf16.msra.mxu0 0
      %743 = vmatprep.subr.bf16.mxu0 0
      %744 = vmatpush1.bf16.msra.mxu0 %v722
      %745 = vmatprep.subr.bf16.mxu0 0
      %746 = vmatpush1.bf16.msra.mxu0 %v721
      %747 = vmatprep.subr.bf16.mxu0 0
      %748 = vmatpush2.bf16.msra.mxu0 0
      %749 = vmatprep.subr.bf16.mxu0 0
      %750 = vmatpush2.bf16.msra.mxu0 0
      %751 = vmatprep.subr.bf16.mxu0 0
      %752 = vmatpush2.bf16.msra.mxu0 0
      %753 = vmatprep.subr.bf16.mxu0 0
      %754 = vmatpush2.bf16.msra.mxu0 0
      %755 = vmatprep.subr.bf16.mxu0 0
      %756 = vmatpush2.bf16.msra.mxu0 0
      %757 = vmatprep.subr.bf16.mxu0 0
      %758 = vmatpush2.bf16.msra.mxu0 0
      %759 = vmatprep.subr.bf16.mxu0 0
      %760 = vmatpush2.bf16.msra.mxu0 0
      %761 = vmatprep.subr.bf16.mxu0 0
      %762 = vmatpush2.bf16.msra.mxu0 0
      %763 = vmatprep.mubr.bf16.mxu0 0
      %764 = vmatmul.mubr.bf16.gmra.mxu0 %v726
      %v765 = vpop.f32.mrf.mxu0
      %v766 = vadd.f32 %v711, %v765
      %v767 = vpop.f32.mrf.mxu0
      %v768 = vpop.f32.mrf.mxu0
      %v769 = vadd.f32 %v711, %v768
      %v770 = vpop.f32.mrf.mxu0
      %771 = vmatprep.mubr.bf16.mxu0 0
      %772 = vmatmul.mubr.bf16.gmra.mxu0 %v729
      %v773 = vpop.f32.mrf.mxu0
      %v774 = vadd.f32 %v711, %v773
      %v775 = vpop.f32.mrf.mxu0
      %v776 = vpop.f32.mrf.mxu0
      %v777 = vadd.f32 %v711, %v776
      %v778 = vpop.f32.mrf.mxu0
      %779 = vdwg.mxu0
      %v780 = vmul.f32 %v766, 0.35355338
      %v781 = vmul.f32 %v769, 0.35355338
      %v782 = vmul.f32 %v774, 0.35355338
      %v783 = vmul.f32 %v777, 0.35355338
      %788 = vrot.lane.b32.xlu0 %v780, 120
      %v789 = vpop.permute.xlu0 %788
      %790 = vrot.lane.b32.xlu0 %v781, 120
      %v791 = vpop.permute.xlu0 %790
      %792 = vrot.lane.b32.xlu0 %v782, 120
      %v793 = vpop.permute.xlu0 %792
      %794 = vrot.lane.b32.xlu0 %v783, 120
      %v795 = vpop.permute.xlu0 %794
      %800 = vrot.lane.b32.xlu0 %v780, 112
      %v801 = vpop.permute.xlu0 %800
      %802 = vrot.lane.b32.xlu0 %v781, 112
      %v803 = vpop.permute.xlu0 %802
      %804 = vrot.lane.b32.xlu0 %v782, 112
      %v805 = vpop.permute.xlu0 %804
      %806 = vrot.lane.b32.xlu0 %v783, 112
      %v807 = vpop.permute.xlu0 %806
      %812 = vrot.lane.b32.xlu0 %v780, 104
      %v813 = vpop.permute.xlu0 %812
      %814 = vrot.lane.b32.xlu0 %v781, 104
      %v815 = vpop.permute.xlu0 %814
      %816 = vrot.lane.b32.xlu0 %v782, 104
      %v817 = vpop.permute.xlu0 %816
      %818 = vrot.lane.b32.xlu0 %v783, 104
      %v819 = vpop.permute.xlu0 %818
      %v824 = vpack.c.bf16 %v781, %v780
      %v825 = vpack.c.bf16 %v783, %v782
      %v826 = vpack.c.bf16 %v791, %v789
      %v827 = vpack.c.bf16 %v795, %v793
      %v828 = vpack.c.bf16 %v803, %v801
      %v829 = vpack.c.bf16 %v807, %v805
      %v830 = vpack.c.bf16 %v815, %v813
      %v831 = vpack.c.bf16 %v819, %v817
      %836 = vrot.lane.b32.xlu0 %v766, 120
      %v837 = vpop.permute.xlu0 %836
      %838 = vrot.lane.b32.xlu0 %v769, 120
      %v839 = vpop.permute.xlu0 %838
      %840 = vrot.lane.b32.xlu0 %v774, 120
      %v841 = vpop.permute.xlu0 %840
      %842 = vrot.lane.b32.xlu0 %v777, 120
      %v843 = vpop.permute.xlu0 %842
      %848 = vrot.lane.b32.xlu0 %v766, 112
      %v849 = vpop.permute.xlu0 %848
      %850 = vrot.lane.b32.xlu0 %v769, 112
      %v851 = vpop.permute.xlu0 %850
      %852 = vrot.lane.b32.xlu0 %v774, 112
      %v853 = vpop.permute.xlu0 %852
      %854 = vrot.lane.b32.xlu0 %v777, 112
      %v855 = vpop.permute.xlu0 %854
      %860 = vrot.lane.b32.xlu0 %v766, 104
      %v861 = vpop.permute.xlu0 %860
      %862 = vrot.lane.b32.xlu0 %v769, 104
      %v863 = vpop.permute.xlu0 %862
      %864 = vrot.lane.b32.xlu0 %v774, 104
      %v865 = vpop.permute.xlu0 %864
      %866 = vrot.lane.b32.xlu0 %v777, 104
      %v867 = vpop.permute.xlu0 %866
      %v872 = vpack.c.bf16 %v769, %v766
      %v873 = vpack.c.bf16 %v777, %v774
      %v874 = vpack.c.bf16 %v839, %v837
      %v875 = vpack.c.bf16 %v843, %v841
      %v876 = vpack.c.bf16 %v851, %v849
      %v877 = vpack.c.bf16 %v855, %v853
      %v878 = vpack.c.bf16 %v863, %v861
      %v879 = vpack.c.bf16 %v867, %v865
      %881 = vrot.lane.b32.xlu0 %v872, 96
      %v882 = vpop.permute.xlu0 %881
      %vm883 = vcmask 64512
      %v885 = vsel %vm883, %v824, 0
      %v888 = vsel %vm883, %v882, 0
      %890 = vmatprep.subr.bf16.mxu0 0
      %891 = vmatpush1.bf16.xpose.msra.mxu0 0
      %892 = vmatprep.subr.bf16.mxu0 0
      %893 = vmatpush1.bf16.xpose.msra.mxu0 0
      %894 = vmatprep.subr.bf16.mxu0 0
      %895 = vmatpush1.bf16.xpose.msra.mxu0 0
      %896 = vmatprep.subr.bf16.mxu0 0
      %897 = vmatpush1.bf16.xpose.msra.mxu0 0
      %898 = vmatprep.subr.bf16.mxu0 0
      %899 = vmatpush1.bf16.xpose.msra.mxu0 0
      %900 = vmatprep.subr.bf16.mxu0 0
      %901 = vmatpush1.bf16.xpose.msra.mxu0 0
      %902 = vmatprep.subr.bf16.mxu0 0
      %903 = vmatpush1.bf16.xpose.msra.mxu0 0
      %904 = vmatprep.subr.bf16.mxu0 0
      %905 = vmatpush1.bf16.xpose.msra.mxu0 %v888
      %906 = vmatprep.subr.bf16.mxu0 0
      %907 = vmatpush2.bf16.xpose.msra.mxu0 0
      %908 = vmatprep.subr.bf16.mxu0 0
      %909 = vmatpush2.bf16.xpose.msra.mxu0 0
      %910 = vmatprep.subr.bf16.mxu0 0
      %911 = vmatpush2.bf16.xpose.msra.mxu0 0
      %912 = vmatprep.subr.bf16.mxu0 0
      %913 = vmatpush2.bf16.xpose.msra.mxu0 0
      %914 = vmatprep.subr.bf16.mxu0 0
      %915 = vmatpush2.bf16.xpose.msra.mxu0 0
      %916 = vmatprep.subr.bf16.mxu0 0
      %917 = vmatpush2.bf16.xpose.msra.mxu0 0
      %918 = vmatprep.subr.bf16.mxu0 0
      %919 = vmatpush2.bf16.xpose.msra.mxu0 0
      %920 = vmatprep.subr.bf16.mxu0 0
      %921 = vmatpush2.bf16.xpose.msra.mxu0 0
      %922 = vmatprep.mubr.bf16.mxu0 0
      %923 = vmatmul.mubr.bf16.gmra.mxu0 %v885
      %v924 = vpop.f32.mrf.mxu0
      %v925 = vadd.f32 0.0, %v924
      %v926 = vpop.f32.mrf.mxu0
      %v927 = vpop.f32.mrf.mxu0
      %v928 = vadd.f32 0.0, %v927
      %v929 = vpop.f32.mrf.mxu0
      %930 = vdwg.mxu0
      %932 = vrot.lane.b32.xlu0 %v873, 96
      %v933 = vpop.permute.xlu0 %932
      %v935 = vsel %vm883, %v825, 0
      %v938 = vsel %vm883, %v933, 0
      %940 = vmatprep.subr.bf16.mxu0 0
      %941 = vmatpush1.bf16.xpose.msra.mxu0 0
      %942 = vmatprep.subr.bf16.mxu0 0
      %943 = vmatpush1.bf16.xpose.msra.mxu0 0
      %944 = vmatprep.subr.bf16.mxu0 0
      %945 = vmatpush1.bf16.xpose.msra.mxu0 0
      %946 = vmatprep.subr.bf16.mxu0 0
      %947 = vmatpush1.bf16.xpose.msra.mxu0 0
      %948 = vmatprep.subr.bf16.mxu0 0
      %949 = vmatpush1.bf16.xpose.msra.mxu0 0
      %950 = vmatprep.subr.bf16.mxu0 0
      %951 = vmatpush1.bf16.xpose.msra.mxu0 0
      %952 = vmatprep.subr.bf16.mxu0 0
      %953 = vmatpush1.bf16.xpose.msra.mxu0 0
      %954 = vmatprep.subr.bf16.mxu0 0
      %955 = vmatpush1.bf16.xpose.msra.mxu0 %v938
      %956 = vmatprep.subr.bf16.mxu0 0
      %957 = vmatpush2.bf16.xpose.msra.mxu0 0
      %958 = vmatprep.subr.bf16.mxu0 0
      %959 = vmatpush2.bf16.xpose.msra.mxu0 0
      %960 = vmatprep.subr.bf16.mxu0 0
      %961 = vmatpush2.bf16.xpose.msra.mxu0 0
      %962 = vmatprep.subr.bf16.mxu0 0
      %963 = vmatpush2.bf16.xpose.msra.mxu0 0
      %964 = vmatprep.subr.bf16.mxu0 0
      %965 = vmatpush2.bf16.xpose.msra.mxu0 0
      %966 = vmatprep.subr.bf16.mxu0 0
      %967 = vmatpush2.bf16.xpose.msra.mxu0 0
      %968 = vmatprep.subr.bf16.mxu0 0
      %969 = vmatpush2.bf16.xpose.msra.mxu0 0
      %970 = vmatprep.subr.bf16.mxu0 0
      %971 = vmatpush2.bf16.xpose.msra.mxu0 0
      %972 = vmatprep.mubr.bf16.mxu0 0
      %973 = vmatmul.mubr.bf16.gmra.mxu0 %v935
      %v974 = vpop.f32.mrf.mxu0
      %v975 = vadd.f32 0.0, %v974
      %v976 = vpop.f32.mrf.mxu0
      %v977 = vpop.f32.mrf.mxu0
      %v978 = vadd.f32 0.0, %v977
      %v979 = vpop.f32.mrf.mxu0
      %980 = vdwg.mxu0
      %982 = vrot.lane.b32.xlu0 %v874, 96
      %v983 = vpop.permute.xlu0 %982
      %v985 = vsel %vm883, %v826, 0
      %v988 = vsel %vm883, %v983, 0
      %990 = vmatprep.subr.bf16.mxu0 0
      %991 = vmatpush1.bf16.xpose.msra.mxu0 0
      %992 = vmatprep.subr.bf16.mxu0 0
      %993 = vmatpush1.bf16.xpose.msra.mxu0 0
      %994 = vmatprep.subr.bf16.mxu0 0
      %995 = vmatpush1.bf16.xpose.msra.mxu0 0
      %996 = vmatprep.subr.bf16.mxu0 0
      %997 = vmatpush1.bf16.xpose.msra.mxu0 0
      %998 = vmatprep.subr.bf16.mxu0 0
      %999 = vmatpush1.bf16.xpose.msra.mxu0 0
      %1000 = vmatprep.subr.bf16.mxu0 0
      %1001 = vmatpush1.bf16.xpose.msra.mxu0 0
      %1002 = vmatprep.subr.bf16.mxu0 0
      %1003 = vmatpush1.bf16.xpose.msra.mxu0 0
      %1004 = vmatprep.subr.bf16.mxu0 0
      %1005 = vmatpush1.bf16.xpose.msra.mxu0 %v988
      %1006 = vmatprep.subr.bf16.mxu0 0
      %1007 = vmatpush2.bf16.xpose.msra.mxu0 0
      %1008 = vmatprep.subr.bf16.mxu0 0
      %1009 = vmatpush2.bf16.xpose.msra.mxu0 0
      %1010 = vmatprep.subr.bf16.mxu0 0
      %1011 = vmatpush2.bf16.xpose.msra.mxu0 0
      %1012 = vmatprep.subr.bf16.mxu0 0
      %1013 = vmatpush2.bf16.xpose.msra.mxu0 0
      %1014 = vmatprep.subr.bf16.mxu0 0
      %1015 = vmatpush2.bf16.xpose.msra.mxu0 0
      %1016 = vmatprep.subr.bf16.mxu0 0
      %1017 = vmatpush2.bf16.xpose.msra.mxu0 0
      %1018 = vmatprep.subr.bf16.mxu0 0
      %1019 = vmatpush2.bf16.xpose.msra.mxu0 0
      %1020 = vmatprep.subr.bf16.mxu0 0
      %1021 = vmatpush2.bf16.xpose.msra.mxu0 0
      %1022 = vmatprep.mubr.bf16.mxu0 0
      %1023 = vmatmul.mubr.bf16.gmra.mxu0 %v985
      %v1024 = vpop.f32.mrf.mxu0
      %v1025 = vadd.f32 0.0, %v1024
      %v1026 = vpop.f32.mrf.mxu0
      %v1027 = vpop.f32.mrf.mxu0
      %v1028 = vadd.f32 0.0, %v1027
      %v1029 = vpop.f32.mrf.mxu0
      %1030 = vdwg.mxu0
      %1032 = vrot.lane.b32.xlu0 %v875, 96
      %v1033 = vpop.permute.xlu0 %1032
      %v1035 = vsel %vm883, %v827, 0
      %v1038 = vsel %vm883, %v1033, 0
      %1040 = vmatprep.subr.bf16.mxu0 0
      %1041 = vmatpush1.bf16.xpose.msra.mxu0 0
      %1042 = vmatprep.subr.bf16.mxu0 0
      %1043 = vmatpush1.bf16.xpose.msra.mxu0 0
      %1044 = vmatprep.subr.bf16.mxu0 0
      %1045 = vmatpush1.bf16.xpose.msra.mxu0 0
      %1046 = vmatprep.subr.bf16.mxu0 0
      %1047 = vmatpush1.bf16.xpose.msra.mxu0 0
      %1048 = vmatprep.subr.bf16.mxu0 0
      %1049 = vmatpush1.bf16.xpose.msra.mxu0 0
      %1050 = vmatprep.subr.bf16.mxu0 0
      %1051 = vmatpush1.bf16.xpose.msra.mxu0 0
      %1052 = vmatprep.subr.bf16.mxu0 0
      %1053 = vmatpush1.bf16.xpose.msra.mxu0 0
      %1054 = vmatprep.subr.bf16.mxu0 0
      %1055 = vmatpush1.bf16.xpose.msra.mxu0 %v1038
      %1056 = vmatprep.subr.bf16.mxu0 0
      %1057 = vmatpush2.bf16.xpose.msra.mxu0 0
      %1058 = vmatprep.subr.bf16.mxu0 0
      %1059 = vmatpush2.bf16.xpose.msra.mxu0 0
      %1060 = vmatprep.subr.bf16.mxu0 0
      %1061 = vmatpush2.bf16.xpose.msra.mxu0 0
      %1062 = vmatprep.subr.bf16.mxu0 0
      %1063 = vmatpush2.bf16.xpose.msra.mxu0 0
      %1064 = vmatprep.subr.bf16.mxu0 0
      %1065 = vmatpush2.bf16.xpose.msra.mxu0 0
      %1066 = vmatprep.subr.bf16.mxu0 0
      %1067 = vmatpush2.bf16.xpose.msra.mxu0 0
      %1068 = vmatprep.subr.bf16.mxu0 0
      %1069 = vmatpush2.bf16.xpose.msra.mxu0 0
      %1070 = vmatprep.subr.bf16.mxu0 0
      %1071 = vmatpush2.bf16.xpose.msra.mxu0 0
      %1072 = vmatprep.mubr.bf16.mxu0 0
      %1073 = vmatmul.mubr.bf16.gmra.mxu0 %v1035
      %v1074 = vpop.f32.mrf.mxu0
      %v1075 = vadd.f32 0.0, %v1074
      %v1076 = vpop.f32.mrf.mxu0
      %v1077 = vpop.f32.mrf.mxu0
      %v1078 = vadd.f32 0.0, %v1077
      %v1079 = vpop.f32.mrf.mxu0
      %1080 = vdwg.mxu0
      %1082 = vrot.lane.b32.xlu0 %v876, 96
      %v1083 = vpop.permute.xlu0 %1082
      %v1085 = vsel %vm883, %v828, 0
      %v1088 = vsel %vm883, %v1083, 0
      %1090 = vmatprep.subr.bf16.mxu0 0
      %1091 = vmatpush1.bf16.xpose.msra.mxu0 0
      %1092 = vmatprep.subr.bf16.mxu0 0
      %1093 = vmatpush1.bf16.xpose.msra.mxu0 0
      %1094 = vmatprep.subr.bf16.mxu0 0
      %1095 = vmatpush1.bf16.xpose.msra.mxu0 0
      %1096 = vmatprep.subr.bf16.mxu0 0
      %1097 = vmatpush1.bf16.xpose.msra.mxu0 0
      %1098 = vmatprep.subr.bf16.mxu0 0
      %1099 = vmatpush1.bf16.xpose.msra.mxu0 0
      %1100 = vmatprep.subr.bf16.mxu0 0
      %1101 = vmatpush1.bf16.xpose.msra.mxu0 0
      %1102 = vmatprep.subr.bf16.mxu0 0
      %1103 = vmatpush1.bf16.xpose.msra.mxu0 0
      %1104 = vmatprep.subr.bf16.mxu0 0
      %1105 = vmatpush1.bf16.xpose.msra.mxu0 %v1088
      %1106 = vmatprep.subr.bf16.mxu0 0
      %1107 = vmatpush2.bf16.xpose.msra.mxu0 0
      %1108 = vmatprep.subr.bf16.mxu0 0
      %1109 = vmatpush2.bf16.xpose.msra.mxu0 0
      %1110 = vmatprep.subr.bf16.mxu0 0
      %1111 = vmatpush2.bf16.xpose.msra.mxu0 0
      %1112 = vmatprep.subr.bf16.mxu0 0
      %1113 = vmatpush2.bf16.xpose.msra.mxu0 0
      %1114 = vmatprep.subr.bf16.mxu0 0
      %1115 = vmatpush2.bf16.xpose.msra.mxu0 0
      %1116 = vmatprep.subr.bf16.mxu0 0
      %1117 = vmatpush2.bf16.xpose.msra.mxu0 0
      %1118 = vmatprep.subr.bf16.mxu0 0
      %1119 = vmatpush2.bf16.xpose.msra.mxu0 0
      %1120 = vmatprep.subr.bf16.mxu0 0
      %1121 = vmatpush2.bf16.xpose.msra.mxu0 0
      %1122 = vmatprep.mubr.bf16.mxu0 0
      %1123 = vmatmul.mubr.bf16.gmra.mxu0 %v1085
      %v1124 = vpop.f32.mrf.mxu0
      %v1125 = vadd.f32 0.0, %v1124
      %v1126 = vpop.f32.mrf.mxu0
      %v1127 = vpop.f32.mrf.mxu0
      %v1128 = vadd.f32 0.0, %v1127
      %v1129 = vpop.f32.mrf.mxu0
      %1130 = vdwg.mxu0
      %1132 = vrot.lane.b32.xlu0 %v877, 96
      %v1133 = vpop.permute.xlu0 %1132
      %v1135 = vsel %vm883, %v829, 0
      %v1138 = vsel %vm883, %v1133, 0
      %1140 = vmatprep.subr.bf16.mxu0 0
      %1141 = vmatpush1.bf16.xpose.msra.mxu0 0
      %1142 = vmatprep.subr.bf16.mxu0 0
      %1143 = vmatpush1.bf16.xpose.msra.mxu0 0
      %1144 = vmatprep.subr.bf16.mxu0 0
      %1145 = vmatpush1.bf16.xpose.msra.mxu0 0
      %1146 = vmatprep.subr.bf16.mxu0 0
      %1147 = vmatpush1.bf16.xpose.msra.mxu0 0
      %1148 = vmatprep.subr.bf16.mxu0 0
      %1149 = vmatpush1.bf16.xpose.msra.mxu0 0
      %1150 = vmatprep.subr.bf16.mxu0 0
      %1151 = vmatpush1.bf16.xpose.msra.mxu0 0
      %1152 = vmatprep.subr.bf16.mxu0 0
      %1153 = vmatpush1.bf16.xpose.msra.mxu0 0
      %1154 = vmatprep.subr.bf16.mxu0 0
      %1155 = vmatpush1.bf16.xpose.msra.mxu0 %v1138
      %1156 = vmatprep.subr.bf16.mxu0 0
      %1157 = vmatpush2.bf16.xpose.msra.mxu0 0
      %1158 = vmatprep.subr.bf16.mxu0 0
      %1159 = vmatpush2.bf16.xpose.msra.mxu0 0
      %1160 = vmatprep.subr.bf16.mxu0 0
      %1161 = vmatpush2.bf16.xpose.msra.mxu0 0
      %1162 = vmatprep.subr.bf16.mxu0 0
      %1163 = vmatpush2.bf16.xpose.msra.mxu0 0
      %1164 = vmatprep.subr.bf16.mxu0 0
      %1165 = vmatpush2.bf16.xpose.msra.mxu0 0
      %1166 = vmatprep.subr.bf16.mxu0 0
      %1167 = vmatpush2.bf16.xpose.msra.mxu0 0
      %1168 = vmatprep.subr.bf16.mxu0 0
      %1169 = vmatpush2.bf16.xpose.msra.mxu0 0
      %1170 = vmatprep.subr.bf16.mxu0 0
      %1171 = vmatpush2.bf16.xpose.msra.mxu0 0
      %1172 = vmatprep.mubr.bf16.mxu0 0
      %1173 = vmatmul.mubr.bf16.gmra.mxu0 %v1135
      %v1174 = vpop.f32.mrf.mxu0
      %v1175 = vadd.f32 0.0, %v1174
      %v1176 = vpop.f32.mrf.mxu0
      %v1177 = vpop.f32.mrf.mxu0
      %v1178 = vadd.f32 0.0, %v1177
      %v1179 = vpop.f32.mrf.mxu0
      %1180 = vdwg.mxu0
      %1182 = vrot.lane.b32.xlu0 %v878, 96
      %v1183 = vpop.permute.xlu0 %1182
      %v1185 = vsel %vm883, %v830, 0
      %v1188 = vsel %vm883, %v1183, 0
      %1190 = vmatprep.subr.bf16.mxu0 0
      %1191 = vmatpush1.bf16.xpose.msra.mxu0 0
      %1192 = vmatprep.subr.bf16.mxu0 0
      %1193 = vmatpush1.bf16.xpose.msra.mxu0 0
      %1194 = vmatprep.subr.bf16.mxu0 0
      %1195 = vmatpush1.bf16.xpose.msra.mxu0 0
      %1196 = vmatprep.subr.bf16.mxu0 0
      %1197 = vmatpush1.bf16.xpose.msra.mxu0 0
      %1198 = vmatprep.subr.bf16.mxu0 0
      %1199 = vmatpush1.bf16.xpose.msra.mxu0 0
      %1200 = vmatprep.subr.bf16.mxu0 0
      %1201 = vmatpush1.bf16.xpose.msra.mxu0 0
      %1202 = vmatprep.subr.bf16.mxu0 0
      %1203 = vmatpush1.bf16.xpose.msra.mxu0 0
      %1204 = vmatprep.subr.bf16.mxu0 0
      %1205 = vmatpush1.bf16.xpose.msra.mxu0 %v1188
      %1206 = vmatprep.subr.bf16.mxu0 0
      %1207 = vmatpush2.bf16.xpose.msra.mxu0 0
      %1208 = vmatprep.subr.bf16.mxu0 0
      %1209 = vmatpush2.bf16.xpose.msra.mxu0 0
      %1210 = vmatprep.subr.bf16.mxu0 0
      %1211 = vmatpush2.bf16.xpose.msra.mxu0 0
      %1212 = vmatprep.subr.bf16.mxu0 0
      %1213 = vmatpush2.bf16.xpose.msra.mxu0 0
      %1214 = vmatprep.subr.bf16.mxu0 0
      %1215 = vmatpush2.bf16.xpose.msra.mxu0 0
      %1216 = vmatprep.subr.bf16.mxu0 0
      %1217 = vmatpush2.bf16.xpose.msra.mxu0 0
      %1218 = vmatprep.subr.bf16.mxu0 0
      %1219 = vmatpush2.bf16.xpose.msra.mxu0 0
      %1220 = vmatprep.subr.bf16.mxu0 0
      %1221 = vmatpush2.bf16.xpose.msra.mxu0 0
      %1222 = vmatprep.mubr.bf16.mxu0 0
      %1223 = vmatmul.mubr.bf16.gmra.mxu0 %v1185
      %v1224 = vpop.f32.mrf.mxu0
      %v1225 = vadd.f32 0.0, %v1224
      %v1226 = vpop.f32.mrf.mxu0
      %v1227 = vpop.f32.mrf.mxu0
      %v1228 = vadd.f32 0.0, %v1227
      %v1229 = vpop.f32.mrf.mxu0
      %1230 = vdwg.mxu0
      %1232 = vrot.lane.b32.xlu0 %v879, 96
      %v1233 = vpop.permute.xlu0 %1232
      %v1235 = vsel %vm883, %v831, 0
      %v1238 = vsel %vm883, %v1233, 0
      %1240 = vmatprep.subr.bf16.mxu0 0
      %1241 = vmatpush1.bf16.xpose.msra.mxu0 0
      %1242 = vmatprep.subr.bf16.mxu0 0
      %1243 = vmatpush1.bf16.xpose.msra.mxu0 0
      %1244 = vmatprep.subr.bf16.mxu0 0
      %1245 = vmatpush1.bf16.xpose.msra.mxu0 0
      %1246 = vmatprep.subr.bf16.mxu0 0
      %1247 = vmatpush1.bf16.xpose.msra.mxu0 0
      %1248 = vmatprep.subr.bf16.mxu0 0
      %1249 = vmatpush1.bf16.xpose.msra.mxu0 0
      %1250 = vmatprep.subr.bf16.mxu0 0
      %1251 = vmatpush1.bf16.xpose.msra.mxu0 0
      %1252 = vmatprep.subr.bf16.mxu0 0
      %1253 = vmatpush1.bf16.xpose.msra.mxu0 0
      %1254 = vmatprep.subr.bf16.mxu0 0
      %1255 = vmatpush1.bf16.xpose.msra.mxu0 %v1238
      %1256 = vmatprep.subr.bf16.mxu0 0
      %1257 = vmatpush2.bf16.xpose.msra.mxu0 0
      %1258 = vmatprep.subr.bf16.mxu0 0
      %1259 = vmatpush2.bf16.xpose.msra.mxu0 0
      %1260 = vmatprep.subr.bf16.mxu0 0
      %1261 = vmatpush2.bf16.xpose.msra.mxu0 0
      %1262 = vmatprep.subr.bf16.mxu0 0
      %1263 = vmatpush2.bf16.xpose.msra.mxu0 0
      %1264 = vmatprep.subr.bf16.mxu0 0
      %1265 = vmatpush2.bf16.xpose.msra.mxu0 0
      %1266 = vmatprep.subr.bf16.mxu0 0
      %1267 = vmatpush2.bf16.xpose.msra.mxu0 0
      %1268 = vmatprep.subr.bf16.mxu0 0
      %1269 = vmatpush2.bf16.xpose.msra.mxu0 0
      %1270 = vmatprep.subr.bf16.mxu0 0
      %1271 = vmatpush2.bf16.xpose.msra.mxu0 0
      %1272 = vmatprep.mubr.bf16.mxu0 0
      %1273 = vmatmul.mubr.bf16.gmra.mxu0 %v1235
      %v1274 = vpop.f32.mrf.mxu0
      %v1275 = vadd.f32 0.0, %v1274
      %v1276 = vpop.f32.mrf.mxu0
      %v1277 = vpop.f32.mrf.mxu0
      %v1278 = vadd.f32 0.0, %v1277
      %v1279 = vpop.f32.mrf.mxu0
      %1280 = vdwg.mxu0
      %v1281 = vld [vmem:[%s2] sm:$0xff]
      %v1282 = vld [vmem:[%s2 + $0x8] sm:$0xff]
      %v1283 = vld [vmem:[%s2 + $0x10] sm:$0xff]
      %v1284 = vld [vmem:[%s2 + $0x18] sm:$0xff]
      %v1285 = vld [vmem:[%s2 + $0x20] sm:$0xff]
      %v1286 = vld [vmem:[%s2 + $0x28] sm:$0xff]
      %v1287 = vld [vmem:[%s2 + $0x30] sm:$0xff]
      %v1288 = vld [vmem:[%s2 + $0x38] sm:$0xff]
      %v1289 = vadd.f32 %v925, %v1281
      %v1290 = vadd.f32 %v928, %v1282
      %v1291 = vadd.f32 %v975, %v1281
      %v1292 = vadd.f32 %v978, %v1282
      %v1293 = vadd.f32 %v1025, %v1283
      %v1294 = vadd.f32 %v1028, %v1284
      %v1295 = vadd.f32 %v1075, %v1283
      %v1296 = vadd.f32 %v1078, %v1284
      %v1297 = vadd.f32 %v1125, %v1285
      %v1298 = vadd.f32 %v1128, %v1286
      %v1299 = vadd.f32 %v1175, %v1285
      %v1300 = vadd.f32 %v1178, %v1286
      %v1301 = vadd.f32 %v1225, %v1287
      %v1302 = vadd.f32 %v1228, %v1288
      %v1303 = vadd.f32 %v1275, %v1287
      %v1304 = vadd.f32 %v1278, %v1288
      %v1305 = vld [vmem:[%s584] sm:$0xff]
      %v1306 = vld [vmem:[%s584 + $0x8] sm:$0xff]
      %v1307 = vld [vmem:[%s584 + $0x10] sm:$0xff]
      %v1308 = vld [vmem:[%s584 + $0x18] sm:$0xff]
      %v1309 = vadd.f32 %v1289, %v1305
      %v1310 = vadd.f32 %v1290, %v1306
      %v1311 = vadd.f32 %v1291, %v1307
      %v1312 = vadd.f32 %v1292, %v1308
      %v1313 = vadd.f32 %v1293, %v1305
      %v1314 = vadd.f32 %v1294, %v1306
      %v1315 = vadd.f32 %v1295, %v1307
      %v1316 = vadd.f32 %v1296, %v1308
      %v1317 = vadd.f32 %v1297, %v1305
      %v1318 = vadd.f32 %v1298, %v1306
      %v1319 = vadd.f32 %v1299, %v1307
      %v1320 = vadd.f32 %v1300, %v1308
      %v1321 = vadd.f32 %v1301, %v1305
      %v1322 = vadd.f32 %v1302, %v1306
      %v1323 = vadd.f32 %v1303, %v1307
      %v1324 = vadd.f32 %v1304, %v1308
      %vm1325 = vcmask 130048
      %v1326 = vsel %vm1325, %v1309, -inf
      %1327 = vmax.xlane.f32.xlu0 %v1326
      %v1328 = vpop.xlane.xlu0 %1327
      %v1329 = vsel %vm1325, %v1310, -inf
      %1330 = vmax.xlane.f32.xlu0 %v1329
      %v1331 = vpop.xlane.xlu0 %1330
      %v1332 = vsel %vm1325, %v1311, -inf
      %1333 = vmax.xlane.f32.xlu0 %v1332
      %v1334 = vpop.xlane.xlu0 %1333
      %v1335 = vsel %vm1325, %v1312, -inf
      %1336 = vmax.xlane.f32.xlu0 %v1335
      %v1337 = vpop.xlane.xlu0 %1336
      %v1338 = vsel %vm1325, %v1313, -inf
      %1339 = vmax.xlane.f32.xlu0 %v1338
      %v1340 = vpop.xlane.xlu0 %1339
      %v1341 = vsel %vm1325, %v1314, -inf
      %1342 = vmax.xlane.f32.xlu0 %v1341
      %v1343 = vpop.xlane.xlu0 %1342
      %v1344 = vsel %vm1325, %v1315, -inf
      %1345 = vmax.xlane.f32.xlu0 %v1344
      %v1346 = vpop.xlane.xlu0 %1345
      %v1347 = vsel %vm1325, %v1316, -inf
      %1348 = vmax.xlane.f32.xlu0 %v1347
      %v1349 = vpop.xlane.xlu0 %1348
      %v1350 = vsel %vm1325, %v1317, -inf
      %1351 = vmax.xlane.f32.xlu0 %v1350
      %v1352 = vpop.xlane.xlu0 %1351
      %v1353 = vsel %vm1325, %v1318, -inf
      %1354 = vmax.xlane.f32.xlu0 %v1353
      %v1355 = vpop.xlane.xlu0 %1354
      %v1356 = vsel %vm1325, %v1319, -inf
      %1357 = vmax.xlane.f32.xlu0 %v1356
      %v1358 = vpop.xlane.xlu0 %1357
      %v1359 = vsel %vm1325, %v1320, -inf
      %1360 = vmax.xlane.f32.xlu0 %v1359
      %v1361 = vpop.xlane.xlu0 %1360
      %v1362 = vsel %vm1325, %v1321, -inf
      %1363 = vmax.xlane.f32.xlu0 %v1362
      %v1364 = vpop.xlane.xlu0 %1363
      %v1365 = vsel %vm1325, %v1322, -inf
      %1366 = vmax.xlane.f32.xlu0 %v1365
      %v1367 = vpop.xlane.xlu0 %1366
      %v1368 = vsel %vm1325, %v1323, -inf
      %1369 = vmax.xlane.f32.xlu0 %v1368
      %v1370 = vpop.xlane.xlu0 %1369
      %v1371 = vsel %vm1325, %v1324, -inf
      %1372 = vmax.xlane.f32.xlu0 %v1371
      %v1373 = vpop.xlane.xlu0 %1372
      %v1374 = vsub.f32 %v1309, %v1328
      %v1375 = vsub.f32 %v1310, %v1331
      %v1376 = vsub.f32 %v1311, %v1334
      %v1377 = vsub.f32 %v1312, %v1337
      %v1378 = vsub.f32 %v1313, %v1340
      %v1379 = vsub.f32 %v1314, %v1343
      %v1380 = vsub.f32 %v1315, %v1346
      %v1381 = vsub.f32 %v1316, %v1349
      %v1382 = vsub.f32 %v1317, %v1352
      %v1383 = vsub.f32 %v1318, %v1355
      %v1384 = vsub.f32 %v1319, %v1358
      %v1385 = vsub.f32 %v1320, %v1361
      %v1386 = vsub.f32 %v1321, %v1364
      %v1387 = vsub.f32 %v1322, %v1367
      %v1388 = vsub.f32 %v1323, %v1370
      %v1389 = vsub.f32 %v1324, %v1373
      %v1390 = vmul.f32 %v1374, 1.442695
      %v1391 = vpow.pop %v1390
      %v1392 = vmul.f32 %v1375, 1.442695
      %v1393 = vpow.pop %v1392
      %v1394 = vmul.f32 %v1376, 1.442695
      %v1395 = vpow.pop %v1394
      %v1396 = vmul.f32 %v1377, 1.442695
      %v1397 = vpow.pop %v1396
      %v1398 = vmul.f32 %v1378, 1.442695
      %v1399 = vpow.pop %v1398
      %v1400 = vmul.f32 %v1379, 1.442695
      %v1401 = vpow.pop %v1400
      %v1402 = vmul.f32 %v1380, 1.442695
      %v1403 = vpow.pop %v1402
      %v1404 = vmul.f32 %v1381, 1.442695
      %v1405 = vpow.pop %v1404
      %v1406 = vmul.f32 %v1382, 1.442695
      %v1407 = vpow.pop %v1406
      %v1408 = vmul.f32 %v1383, 1.442695
      %v1409 = vpow.pop %v1408
      %v1410 = vmul.f32 %v1384, 1.442695
      %v1411 = vpow.pop %v1410
      %v1412 = vmul.f32 %v1385, 1.442695
      %v1413 = vpow.pop %v1412
      %v1414 = vmul.f32 %v1386, 1.442695
      %v1415 = vpow.pop %v1414
      %v1416 = vmul.f32 %v1387, 1.442695
      %v1417 = vpow.pop %v1416
      %v1418 = vmul.f32 %v1388, 1.442695
      %v1419 = vpow.pop %v1418
      %v1420 = vmul.f32 %v1389, 1.442695
      %v1421 = vpow.pop %v1420
      %v1422 = vsel %vm1325, %v1391, 0.0
      %1423 = vadd.xlane.f32.xlu0 %v1422
      %v1424 = vpop.xlane.xlu0 %1423
      %v1425 = vsel %vm1325, %v1393, 0.0
      %1426 = vadd.xlane.f32.xlu0 %v1425
      %v1427 = vpop.xlane.xlu0 %1426
      %v1428 = vsel %vm1325, %v1395, 0.0
      %1429 = vadd.xlane.f32.xlu0 %v1428
      %v1430 = vpop.xlane.xlu0 %1429
      %v1431 = vsel %vm1325, %v1397, 0.0
      %1432 = vadd.xlane.f32.xlu0 %v1431
      %v1433 = vpop.xlane.xlu0 %1432
      %v1434 = vsel %vm1325, %v1399, 0.0
      %1435 = vadd.xlane.f32.xlu0 %v1434
      %v1436 = vpop.xlane.xlu0 %1435
      %v1437 = vsel %vm1325, %v1401, 0.0
      %1438 = vadd.xlane.f32.xlu0 %v1437
      %v1439 = vpop.xlane.xlu0 %1438
      %v1440 = vsel %vm1325, %v1403, 0.0
      %1441 = vadd.xlane.f32.xlu0 %v1440
      %v1442 = vpop.xlane.xlu0 %1441
      %v1443 = vsel %vm1325, %v1405, 0.0
      %1444 = vadd.xlane.f32.xlu0 %v1443
      %v1445 = vpop.xlane.xlu0 %1444
      %v1446 = vsel %vm1325, %v1407, 0.0
      %1447 = vadd.xlane.f32.xlu0 %v1446
      %v1448 = vpop.xlane.xlu0 %1447
      %v1449 = vsel %vm1325, %v1409, 0.0
      %1450 = vadd.xlane.f32.xlu0 %v1449
      %v1451 = vpop.xlane.xlu0 %1450
      %v1452 = vsel %vm1325, %v1411, 0.0
      %1453 = vadd.xlane.f32.xlu0 %v1452
      %v1454 = vpop.xlane.xlu0 %1453
      %v1455 = vsel %vm1325, %v1413, 0.0
      %1456 = vadd.xlane.f32.xlu0 %v1455
      %v1457 = vpop.xlane.xlu0 %1456
      %v1458 = vsel %vm1325, %v1415, 0.0
      %1459 = vadd.xlane.f32.xlu0 %v1458
      %v1460 = vpop.xlane.xlu0 %1459
      %v1461 = vsel %vm1325, %v1417, 0.0
      %1462 = vadd.xlane.f32.xlu0 %v1461
      %v1463 = vpop.xlane.xlu0 %1462
      %v1464 = vsel %vm1325, %v1419, 0.0
      %1465 = vadd.xlane.f32.xlu0 %v1464
      %v1466 = vpop.xlane.xlu0 %1465
      %v1467 = vsel %vm1325, %v1421, 0.0
      %1468 = vadd.xlane.f32.xlu0 %v1467
      %v1469 = vpop.xlane.xlu0 %1468
      %v1470 = vrcp.pop %v1424
      %v1471 = vrcp.pop %v1427
      %v1472 = vrcp.pop %v1430
      %v1473 = vrcp.pop %v1433
      %v1474 = vrcp.pop %v1436
      %v1475 = vrcp.pop %v1439
      %v1476 = vrcp.pop %v1442
      %v1477 = vrcp.pop %v1445
      %v1478 = vrcp.pop %v1448
      %v1479 = vrcp.pop %v1451
      %v1480 = vrcp.pop %v1454
      %v1481 = vrcp.pop %v1457
      %v1482 = vrcp.pop %v1460
      %v1483 = vrcp.pop %v1463
      %v1484 = vrcp.pop %v1466
      %v1485 = vrcp.pop %v1469
      %v1486 = vmul.f32 %v1391, %v1470
      %v1487 = vmul.f32 %v1393, %v1471
      %v1488 = vmul.f32 %v1395, %v1472
      %v1489 = vmul.f32 %v1397, %v1473
      %v1490 = vmul.f32 %v1399, %v1474
      %v1491 = vmul.f32 %v1401, %v1475
      %v1492 = vmul.f32 %v1403, %v1476
      %v1493 = vmul.f32 %v1405, %v1477
      %v1494 = vmul.f32 %v1407, %v1478
      %v1495 = vmul.f32 %v1409, %v1479
      %v1496 = vmul.f32 %v1411, %v1480
      %v1497 = vmul.f32 %v1413, %v1481
      %v1498 = vmul.f32 %v1415, %v1482
      %v1499 = vmul.f32 %v1417, %v1483
      %v1500 = vmul.f32 %v1419, %v1484
      %v1501 = vmul.f32 %v1421, %v1485
      %v1502 = vpack.c.bf16 %v1487, %v1486
      %v1503 = vpack.c.bf16 %v1489, %v1488
      %v1504 = vpack.c.bf16 %v1491, %v1490
      %v1505 = vpack.c.bf16 %v1493, %v1492
      %v1506 = vpack.c.bf16 %v1495, %v1494
      %v1507 = vpack.c.bf16 %v1497, %v1496
      %v1508 = vpack.c.bf16 %v1499, %v1498
      %v1509 = vpack.c.bf16 %v1501, %v1500
      %1510 = vrot.lane.b32.xlu0 %v872, 64
      %v1511 = vpop.permute.xlu0 %1510
      %v1514 = vsel %vm1325, %v1502, 0
      %1516 = vmatprep.subr.bf16.mxu0 0
      %1517 = vmatpush1.bf16.msra.mxu0 0
      %1518 = vmatprep.subr.bf16.mxu0 0
      %1519 = vmatpush1.bf16.msra.mxu0 0
      %1520 = vmatprep.subr.bf16.mxu0 0
      %1521 = vmatpush1.bf16.msra.mxu0 0
      %1522 = vmatprep.subr.bf16.mxu0 0
      %1523 = vmatpush1.bf16.msra.mxu0 0
      %1524 = vmatprep.subr.bf16.mxu0 0
      %1525 = vmatpush1.bf16.msra.mxu0 0
      %1526 = vmatprep.subr.bf16.mxu0 0
      %1527 = vmatpush1.bf16.msra.mxu0 0
      %1528 = vmatprep.subr.bf16.mxu0 0
      %1529 = vmatpush1.bf16.msra.mxu0 0
      %1530 = vmatprep.subr.bf16.mxu0 0
      %1531 = vmatpush1.bf16.msra.mxu0 %v1511
      %1532 = vmatprep.subr.bf16.mxu0 0
      %1533 = vmatpush2.bf16.msra.mxu0 0
      %1534 = vmatprep.subr.bf16.mxu0 0
      %1535 = vmatpush2.bf16.msra.mxu0 0
      %1536 = vmatprep.subr.bf16.mxu0 0
      %1537 = vmatpush2.bf16.msra.mxu0 0
      %1538 = vmatprep.subr.bf16.mxu0 0
      %1539 = vmatpush2.bf16.msra.mxu0 0
      %1540 = vmatprep.subr.bf16.mxu0 0
      %1541 = vmatpush2.bf16.msra.mxu0 0
      %1542 = vmatprep.subr.bf16.mxu0 0
      %1543 = vmatpush2.bf16.msra.mxu0 0
      %1544 = vmatprep.subr.bf16.mxu0 0
      %1545 = vmatpush2.bf16.msra.mxu0 0
      %1546 = vmatprep.subr.bf16.mxu0 0
      %1547 = vmatpush2.bf16.msra.mxu0 0
      %1548 = vmatprep.mubr.bf16.mxu0 0
      %1549 = vmatmul.mubr.bf16.gmra.mxu0 %v1514
      %v1550 = vpop.f32.mrf.mxu0
      %v1551 = vadd.f32 0.0, %v1550
      %v1552 = vpop.f32.mrf.mxu0
      %v1553 = vpop.f32.mrf.mxu0
      %v1554 = vadd.f32 0.0, %v1553
      %v1555 = vpop.f32.mrf.mxu0
      %1556 = vdwg.mxu0
      %1557 = vrot.lane.b32.xlu0 %v873, 64
      %v1558 = vpop.permute.xlu0 %1557
      %v1561 = vsel %vm1325, %v1503, 0
      %1563 = vmatprep.subr.bf16.mxu0 0
      %1564 = vmatpush1.bf16.msra.mxu0 0
      %1565 = vmatprep.subr.bf16.mxu0 0
      %1566 = vmatpush1.bf16.msra.mxu0 0
      %1567 = vmatprep.subr.bf16.mxu0 0
      %1568 = vmatpush1.bf16.msra.mxu0 0
      %1569 = vmatprep.subr.bf16.mxu0 0
      %1570 = vmatpush1.bf16.msra.mxu0 0
      %1571 = vmatprep.subr.bf16.mxu0 0
      %1572 = vmatpush1.bf16.msra.mxu0 0
      %1573 = vmatprep.subr.bf16.mxu0 0
      %1574 = vmatpush1.bf16.msra.mxu0 0
      %1575 = vmatprep.subr.bf16.mxu0 0
      %1576 = vmatpush1.bf16.msra.mxu0 0
      %1577 = vmatprep.subr.bf16.mxu0 0
      %1578 = vmatpush1.bf16.msra.mxu0 %v1558
      %1579 = vmatprep.subr.bf16.mxu0 0
      %1580 = vmatpush2.bf16.msra.mxu0 0
      %1581 = vmatprep.subr.bf16.mxu0 0
      %1582 = vmatpush2.bf16.msra.mxu0 0
      %1583 = vmatprep.subr.bf16.mxu0 0
      %1584 = vmatpush2.bf16.msra.mxu0 0
      %1585 = vmatprep.subr.bf16.mxu0 0
      %1586 = vmatpush2.bf16.msra.mxu0 0
      %1587 = vmatprep.subr.bf16.mxu0 0
      %1588 = vmatpush2.bf16.msra.mxu0 0
      %1589 = vmatprep.subr.bf16.mxu0 0
      %1590 = vmatpush2.bf16.msra.mxu0 0
      %1591 = vmatprep.subr.bf16.mxu0 0
      %1592 = vmatpush2.bf16.msra.mxu0 0
      %1593 = vmatprep.subr.bf16.mxu0 0
      %1594 = vmatpush2.bf16.msra.mxu0 0
      %1595 = vmatprep.mubr.bf16.mxu0 0
      %1596 = vmatmul.mubr.bf16.gmra.mxu0 %v1561
      %v1597 = vpop.f32.mrf.mxu0
      %v1598 = vadd.f32 0.0, %v1597
      %v1599 = vpop.f32.mrf.mxu0
      %v1600 = vpop.f32.mrf.mxu0
      %v1601 = vadd.f32 0.0, %v1600
      %v1602 = vpop.f32.mrf.mxu0
      %1603 = vdwg.mxu0
      %1604 = vrot.lane.b32.xlu0 %v874, 64
      %v1605 = vpop.permute.xlu0 %1604
      %v1608 = vsel %vm1325, %v1504, 0
      %1610 = vmatprep.subr.bf16.mxu0 0
      %1611 = vmatpush1.bf16.msra.mxu0 0
      %1612 = vmatprep.subr.bf16.mxu0 0
      %1613 = vmatpush1.bf16.msra.mxu0 0
      %1614 = vmatprep.subr.bf16.mxu0 0
      %1615 = vmatpush1.bf16.msra.mxu0 0
      %1616 = vmatprep.subr.bf16.mxu0 0
      %1617 = vmatpush1.bf16.msra.mxu0 0
      %1618 = vmatprep.subr.bf16.mxu0 0
      %1619 = vmatpush1.bf16.msra.mxu0 0
      %1620 = vmatprep.subr.bf16.mxu0 0
      %1621 = vmatpush1.bf16.msra.mxu0 0
      %1622 = vmatprep.subr.bf16.mxu0 0
      %1623 = vmatpush1.bf16.msra.mxu0 0
      %1624 = vmatprep.subr.bf16.mxu0 0
      %1625 = vmatpush1.bf16.msra.mxu0 %v1605
      %1626 = vmatprep.subr.bf16.mxu0 0
      %1627 = vmatpush2.bf16.msra.mxu0 0
      %1628 = vmatprep.subr.bf16.mxu0 0
      %1629 = vmatpush2.bf16.msra.mxu0 0
      %1630 = vmatprep.subr.bf16.mxu0 0
      %1631 = vmatpush2.bf16.msra.mxu0 0
      %1632 = vmatprep.subr.bf16.mxu0 0
      %1633 = vmatpush2.bf16.msra.mxu0 0
      %1634 = vmatprep.subr.bf16.mxu0 0
      %1635 = vmatpush2.bf16.msra.mxu0 0
      %1636 = vmatprep.subr.bf16.mxu0 0
      %1637 = vmatpush2.bf16.msra.mxu0 0
      %1638 = vmatprep.subr.bf16.mxu0 0
      %1639 = vmatpush2.bf16.msra.mxu0 0
      %1640 = vmatprep.subr.bf16.mxu0 0
      %1641 = vmatpush2.bf16.msra.mxu0 0
      %1642 = vmatprep.mubr.bf16.mxu0 0
      %1643 = vmatmul.mubr.bf16.gmra.mxu0 %v1608
      %v1644 = vpop.f32.mrf.mxu0
      %v1645 = vadd.f32 0.0, %v1644
      %v1646 = vpop.f32.mrf.mxu0
      %v1647 = vpop.f32.mrf.mxu0
      %v1648 = vadd.f32 0.0, %v1647
      %v1649 = vpop.f32.mrf.mxu0
      %1650 = vdwg.mxu0
      %1651 = vrot.lane.b32.xlu0 %v875, 64
      %v1652 = vpop.permute.xlu0 %1651
      %v1655 = vsel %vm1325, %v1505, 0
      %1657 = vmatprep.subr.bf16.mxu0 0
      %1658 = vmatpush1.bf16.msra.mxu0 0
      %1659 = vmatprep.subr.bf16.mxu0 0
      %1660 = vmatpush1.bf16.msra.mxu0 0
      %1661 = vmatprep.subr.bf16.mxu0 0
      %1662 = vmatpush1.bf16.msra.mxu0 0
      %1663 = vmatprep.subr.bf16.mxu0 0
      %1664 = vmatpush1.bf16.msra.mxu0 0
      %1665 = vmatprep.subr.bf16.mxu0 0
      %1666 = vmatpush1.bf16.msra.mxu0 0
      %1667 = vmatprep.subr.bf16.mxu0 0
      %1668 = vmatpush1.bf16.msra.mxu0 0
      %1669 = vmatprep.subr.bf16.mxu0 0
      %1670 = vmatpush1.bf16.msra.mxu0 0
      %1671 = vmatprep.subr.bf16.mxu0 0
      %1672 = vmatpush1.bf16.msra.mxu0 %v1652
      %1673 = vmatprep.subr.bf16.mxu0 0
      %1674 = vmatpush2.bf16.msra.mxu0 0
      %1675 = vmatprep.subr.bf16.mxu0 0
      %1676 = vmatpush2.bf16.msra.mxu0 0
      %1677 = vmatprep.subr.bf16.mxu0 0
      %1678 = vmatpush2.bf16.msra.mxu0 0
      %1679 = vmatprep.subr.bf16.mxu0 0
      %1680 = vmatpush2.bf16.msra.mxu0 0
      %1681 = vmatprep.subr.bf16.mxu0 0
      %1682 = vmatpush2.bf16.msra.mxu0 0
      %1683 = vmatprep.subr.bf16.mxu0 0
      %1684 = vmatpush2.bf16.msra.mxu0 0
      %1685 = vmatprep.subr.bf16.mxu0 0
      %1686 = vmatpush2.bf16.msra.mxu0 0
      %1687 = vmatprep.subr.bf16.mxu0 0
      %1688 = vmatpush2.bf16.msra.mxu0 0
      %1689 = vmatprep.mubr.bf16.mxu0 0
      %1690 = vmatmul.mubr.bf16.gmra.mxu0 %v1655
      %v1691 = vpop.f32.mrf.mxu0
      %v1692 = vadd.f32 0.0, %v1691
      %v1693 = vpop.f32.mrf.mxu0
      %v1694 = vpop.f32.mrf.mxu0
      %v1695 = vadd.f32 0.0, %v1694
      %v1696 = vpop.f32.mrf.mxu0
      %1697 = vdwg.mxu0
      %1698 = vrot.lane.b32.xlu0 %v876, 64
      %v1699 = vpop.permute.xlu0 %1698
      %v1702 = vsel %vm1325, %v1506, 0
      %1704 = vmatprep.subr.bf16.mxu0 0
      %1705 = vmatpush1.bf16.msra.mxu0 0
      %1706 = vmatprep.subr.bf16.mxu0 0
      %1707 = vmatpush1.bf16.msra.mxu0 0
      %1708 = vmatprep.subr.bf16.mxu0 0
      %1709 = vmatpush1.bf16.msra.mxu0 0
      %1710 = vmatprep.subr.bf16.mxu0 0
      %1711 = vmatpush1.bf16.msra.mxu0 0
      %1712 = vmatprep.subr.bf16.mxu0 0
      %1713 = vmatpush1.bf16.msra.mxu0 0
      %1714 = vmatprep.subr.bf16.mxu0 0
      %1715 = vmatpush1.bf16.msra.mxu0 0
      %1716 = vmatprep.subr.bf16.mxu0 0
      %1717 = vmatpush1.bf16.msra.mxu0 0
      %1718 = vmatprep.subr.bf16.mxu0 0
      %1719 = vmatpush1.bf16.msra.mxu0 %v1699
      %1720 = vmatprep.subr.bf16.mxu0 0
      %1721 = vmatpush2.bf16.msra.mxu0 0
      %1722 = vmatprep.subr.bf16.mxu0 0
      %1723 = vmatpush2.bf16.msra.mxu0 0
      %1724 = vmatprep.subr.bf16.mxu0 0
      %1725 = vmatpush2.bf16.msra.mxu0 0
      %1726 = vmatprep.subr.bf16.mxu0 0
      %1727 = vmatpush2.bf16.msra.mxu0 0
      %1728 = vmatprep.subr.bf16.mxu0 0
      %1729 = vmatpush2.bf16.msra.mxu0 0
      %1730 = vmatprep.subr.bf16.mxu0 0
      %1731 = vmatpush2.bf16.msra.mxu0 0
      %1732 = vmatprep.subr.bf16.mxu0 0
      %1733 = vmatpush2.bf16.msra.mxu0 0
      %1734 = vmatprep.subr.bf16.mxu0 0
      %1735 = vmatpush2.bf16.msra.mxu0 0
      %1736 = vmatprep.mubr.bf16.mxu0 0
      %1737 = vmatmul.mubr.bf16.gmra.mxu0 %v1702
      %v1738 = vpop.f32.mrf.mxu0
      %v1739 = vadd.f32 0.0, %v1738
      %v1740 = vpop.f32.mrf.mxu0
      %v1741 = vpop.f32.mrf.mxu0
      %v1742 = vadd.f32 0.0, %v1741
      %v1743 = vpop.f32.mrf.mxu0
      %1744 = vdwg.mxu0
      %1745 = vrot.lane.b32.xlu0 %v877, 64
      %v1746 = vpop.permute.xlu0 %1745
      %v1749 = vsel %vm1325, %v1507, 0
      %1751 = vmatprep.subr.bf16.mxu0 0
      %1752 = vmatpush1.bf16.msra.mxu0 0
      %1753 = vmatprep.subr.bf16.mxu0 0
      %1754 = vmatpush1.bf16.msra.mxu0 0
      %1755 = vmatprep.subr.bf16.mxu0 0
      %1756 = vmatpush1.bf16.msra.mxu0 0
      %1757 = vmatprep.subr.bf16.mxu0 0
      %1758 = vmatpush1.bf16.msra.mxu0 0
      %1759 = vmatprep.subr.bf16.mxu0 0
      %1760 = vmatpush1.bf16.msra.mxu0 0
      %1761 = vmatprep.subr.bf16.mxu0 0
      %1762 = vmatpush1.bf16.msra.mxu0 0
      %1763 = vmatprep.subr.bf16.mxu0 0
      %1764 = vmatpush1.bf16.msra.mxu0 0
      %1765 = vmatprep.subr.bf16.mxu0 0
      %1766 = vmatpush1.bf16.msra.mxu0 %v1746
      %1767 = vmatprep.subr.bf16.mxu0 0
      %1768 = vmatpush2.bf16.msra.mxu0 0
      %1769 = vmatprep.subr.bf16.mxu0 0
      %1770 = vmatpush2.bf16.msra.mxu0 0
      %1771 = vmatprep.subr.bf16.mxu0 0
      %1772 = vmatpush2.bf16.msra.mxu0 0
      %1773 = vmatprep.subr.bf16.mxu0 0
      %1774 = vmatpush2.bf16.msra.mxu0 0
      %1775 = vmatprep.subr.bf16.mxu0 0
      %1776 = vmatpush2.bf16.msra.mxu0 0
      %1777 = vmatprep.subr.bf16.mxu0 0
      %1778 = vmatpush2.bf16.msra.mxu0 0
      %1779 = vmatprep.subr.bf16.mxu0 0
      %1780 = vmatpush2.bf16.msra.mxu0 0
      %1781 = vmatprep.subr.bf16.mxu0 0
      %1782 = vmatpush2.bf16.msra.mxu0 0
      %1783 = vmatprep.mubr.bf16.mxu0 0
      %1784 = vmatmul.mubr.bf16.gmra.mxu0 %v1749
      %v1785 = vpop.f32.mrf.mxu0
      %v1786 = vadd.f32 0.0, %v1785
      %v1787 = vpop.f32.mrf.mxu0
      %v1788 = vpop.f32.mrf.mxu0
      %v1789 = vadd.f32 0.0, %v1788
      %v1790 = vpop.f32.mrf.mxu0
      %1791 = vdwg.mxu0
      %1792 = vrot.lane.b32.xlu0 %v878, 64
      %v1793 = vpop.permute.xlu0 %1792
      %v1796 = vsel %vm1325, %v1508, 0
      %1798 = vmatprep.subr.bf16.mxu0 0
      %1799 = vmatpush1.bf16.msra.mxu0 0
      %1800 = vmatprep.subr.bf16.mxu0 0
      %1801 = vmatpush1.bf16.msra.mxu0 0
      %1802 = vmatprep.subr.bf16.mxu0 0
      %1803 = vmatpush1.bf16.msra.mxu0 0
      %1804 = vmatprep.subr.bf16.mxu0 0
      %1805 = vmatpush1.bf16.msra.mxu0 0
      %1806 = vmatprep.subr.bf16.mxu0 0
      %1807 = vmatpush1.bf16.msra.mxu0 0
      %1808 = vmatprep.subr.bf16.mxu0 0
      %1809 = vmatpush1.bf16.msra.mxu0 0
      %1810 = vmatprep.subr.bf16.mxu0 0
      %1811 = vmatpush1.bf16.msra.mxu0 0
      %1812 = vmatprep.subr.bf16.mxu0 0
      %1813 = vmatpush1.bf16.msra.mxu0 %v1793
      %1814 = vmatprep.subr.bf16.mxu0 0
      %1815 = vmatpush2.bf16.msra.mxu0 0
      %1816 = vmatprep.subr.bf16.mxu0 0
      %1817 = vmatpush2.bf16.msra.mxu0 0
      %1818 = vmatprep.subr.bf16.mxu0 0
      %1819 = vmatpush2.bf16.msra.mxu0 0
      %1820 = vmatprep.subr.bf16.mxu0 0
      %1821 = vmatpush2.bf16.msra.mxu0 0
      %1822 = vmatprep.subr.bf16.mxu0 0
      %1823 = vmatpush2.bf16.msra.mxu0 0
      %1824 = vmatprep.subr.bf16.mxu0 0
      %1825 = vmatpush2.bf16.msra.mxu0 0
      %1826 = vmatprep.subr.bf16.mxu0 0
      %1827 = vmatpush2.bf16.msra.mxu0 0
      %1828 = vmatprep.subr.bf16.mxu0 0
      %1829 = vmatpush2.bf16.msra.mxu0 0
      %1830 = vmatprep.mubr.bf16.mxu0 0
      %1831 = vmatmul.mubr.bf16.gmra.mxu0 %v1796
      %v1832 = vpop.f32.mrf.mxu0
      %v1833 = vadd.f32 0.0, %v1832
      %v1834 = vpop.f32.mrf.mxu0
      %v1835 = vpop.f32.mrf.mxu0
      %v1836 = vadd.f32 0.0, %v1835
      %v1837 = vpop.f32.mrf.mxu0
      %1838 = vdwg.mxu0
      %1839 = vrot.lane.b32.xlu0 %v879, 64
      %v1840 = vpop.permute.xlu0 %1839
      %v1843 = vsel %vm1325, %v1509, 0
      %1845 = vmatprep.subr.bf16.mxu0 0
      %1846 = vmatpush1.bf16.msra.mxu0 0
      %1847 = vmatprep.subr.bf16.mxu0 0
      %1848 = vmatpush1.bf16.msra.mxu0 0
      %1849 = vmatprep.subr.bf16.mxu0 0
      %1850 = vmatpush1.bf16.msra.mxu0 0
      %1851 = vmatprep.subr.bf16.mxu0 0
      %1852 = vmatpush1.bf16.msra.mxu0 0
      %1853 = vmatprep.subr.bf16.mxu0 0
      %1854 = vmatpush1.bf16.msra.mxu0 0
      %1855 = vmatprep.subr.bf16.mxu0 0
      %1856 = vmatpush1.bf16.msra.mxu0 0
      %1857 = vmatprep.subr.bf16.mxu0 0
      %1858 = vmatpush1.bf16.msra.mxu0 0
      %1859 = vmatprep.subr.bf16.mxu0 0
      %1860 = vmatpush1.bf16.msra.mxu0 %v1840
      %1861 = vmatprep.subr.bf16.mxu0 0
      %1862 = vmatpush2.bf16.msra.mxu0 0
      %1863 = vmatprep.subr.bf16.mxu0 0
      %1864 = vmatpush2.bf16.msra.mxu0 0
      %1865 = vmatprep.subr.bf16.mxu0 0
      %1866 = vmatpush2.bf16.msra.mxu0 0
      %1867 = vmatprep.subr.bf16.mxu0 0
      %1868 = vmatpush2.bf16.msra.mxu0 0
      %1869 = vmatprep.subr.bf16.mxu0 0
      %1870 = vmatpush2.bf16.msra.mxu0 0
      %1871 = vmatprep.subr.bf16.mxu0 0
      %1872 = vmatpush2.bf16.msra.mxu0 0
      %1873 = vmatprep.subr.bf16.mxu0 0
      %1874 = vmatpush2.bf16.msra.mxu0 0
      %1875 = vmatprep.subr.bf16.mxu0 0
      %1876 = vmatpush2.bf16.msra.mxu0 0
      %1877 = vmatprep.mubr.bf16.mxu0 0
      %1878 = vmatmul.mubr.bf16.gmra.mxu0 %v1843
      %v1879 = vpop.f32.mrf.mxu0
      %v1880 = vadd.f32 0.0, %v1879
      %v1881 = vpop.f32.mrf.mxu0
      %v1882 = vpop.f32.mrf.mxu0
      %v1883 = vadd.f32 0.0, %v1882
      %v1884 = vpop.f32.mrf.mxu0
      %1885 = vdwg.mxu0
      %1890 = vrot.lane.b32.xlu0 %v1645, 8
      %v1891 = vpop.permute.xlu0 %1890
      %1892 = vrot.lane.b32.xlu0 %v1648, 8
      %v1893 = vpop.permute.xlu0 %1892
      %1894 = vrot.lane.b32.xlu0 %v1692, 8
      %v1895 = vpop.permute.xlu0 %1894
      %1896 = vrot.lane.b32.xlu0 %v1695, 8
      %v1897 = vpop.permute.xlu0 %1896
      %1906 = vrot.lane.b32.xlu0 %v1739, 16
      %v1907 = vpop.permute.xlu0 %1906
      %1908 = vrot.lane.b32.xlu0 %v1742, 16
      %v1909 = vpop.permute.xlu0 %1908
      %1910 = vrot.lane.b32.xlu0 %v1786, 16
      %v1911 = vpop.permute.xlu0 %1910
      %1912 = vrot.lane.b32.xlu0 %v1789, 16
      %v1913 = vpop.permute.xlu0 %1912
      %1922 = vrot.lane.b32.xlu0 %v1833, 24
      %v1923 = vpop.permute.xlu0 %1922
      %1924 = vrot.lane.b32.xlu0 %v1836, 24
      %v1925 = vpop.permute.xlu0 %1924
      %1926 = vrot.lane.b32.xlu0 %v1880, 24
      %v1927 = vpop.permute.xlu0 %1926
      %1928 = vrot.lane.b32.xlu0 %v1883, 24
      %v1929 = vpop.permute.xlu0 %1928
      %v1934 = vsel %vm883, %v1551, %v1891
      %v1935 = vsel %vm883, %v1554, %v1893
      %v1936 = vsel %vm883, %v1598, %v1895
      %v1937 = vsel %vm883, %v1601, %v1897
      %v1938 = vsel %vm1325, %v1934, %v1907
      %v1939 = vsel %vm1325, %v1935, %v1909
      %v1940 = vsel %vm1325, %v1936, %v1911
      %v1941 = vsel %vm1325, %v1937, %v1913
      %vm1942 = vcmask 195584
      %v1943 = vsel %vm1942, %v1938, %v1923
      %v1944 = vsel %vm1942, %v1939, %v1925
      %v1945 = vsel %vm1942, %v1940, %v1927
      %v1946 = vsel %vm1942, %v1941, %v1929
      %v1947 = vpack.c.bf16 %v1944, %v1943
      %v1948 = vpack.c.bf16 %v1946, %v1945
      %v1949 = vld [vmem:[%s7] sm:$0xf]
      %v1950 = vld [vmem:[%s7 + $0x4] sm:$0xf]
      %v1951 = vld [vmem:[%s7 + $0x8] sm:$0xf]
      %v1952 = vld [vmem:[%s7 + $0xc] sm:$0xf]
      %v1953 = vld [vmem:[%s8] sm:$0x1]
      %v1955 = vlaneseq
      %v1956 = vshrl.u32 %v1955, 7
      %v1957 = vsub.s32 0, %v1956
      %v1958 = vrot.slane %v1953, %v1957
      %v1964 = vunpack.c.l.b16 %v1949
      %v1965 = vunpack.c.l.b16 %v1950
      %v1966 = vunpack.c.l.b16 %v1951
      %v1967 = vunpack.c.l.b16 %v1952
      %v1968 = vpack.c.b16 %v1965, %v1964
      %v1969 = vpack.c.b16 %v1967, %v1966
      %v1973 = vsel %vm624, %v1947, 0
      %v1976 = vsel %vm624, %v1948, 0
      %1978 = vmatprep.subr.bf16.mxu0 0
      %1979 = vmatpush1.bf16.msra.mxu0 0
      %1980 = vmatprep.subr.bf16.mxu0 0
      %1981 = vmatpush1.bf16.msra.mxu0 0
      %1982 = vmatprep.subr.bf16.mxu0 0
      %1983 = vmatpush1.bf16.msra.mxu0 0
      %1984 = vmatprep.subr.bf16.mxu0 0
      %1985 = vmatpush1.bf16.msra.mxu0 0
      %1986 = vmatprep.subr.bf16.mxu0 0
      %1987 = vmatpush1.bf16.msra.mxu0 0
      %1988 = vmatprep.subr.bf16.mxu0 0
      %1989 = vmatpush1.bf16.msra.mxu0 0
      %1990 = vmatprep.subr.bf16.mxu0 0
      %1991 = vmatpush1.bf16.msra.mxu0 %v1969
      %1992 = vmatprep.subr.bf16.mxu0 0
      %1993 = vmatpush1.bf16.msra.mxu0 %v1968
      %1994 = vmatprep.subr.bf16.mxu0 0
      %1995 = vmatpush2.bf16.msra.mxu0 0
      %1996 = vmatprep.subr.bf16.mxu0 0
      %1997 = vmatpush2.bf16.msra.mxu0 0
      %1998 = vmatprep.subr.bf16.mxu0 0
      %1999 = vmatpush2.bf16.msra.mxu0 0
      %2000 = vmatprep.subr.bf16.mxu0 0
      %2001 = vmatpush2.bf16.msra.mxu0 0
      %2002 = vmatprep.subr.bf16.mxu0 0
      %2003 = vmatpush2.bf16.msra.mxu0 0
      %2004 = vmatprep.subr.bf16.mxu0 0
      %2005 = vmatpush2.bf16.msra.mxu0 0
      %2006 = vmatprep.subr.bf16.mxu0 0
      %2007 = vmatpush2.bf16.msra.mxu0 0
      %2008 = vmatprep.subr.bf16.mxu0 0
      %2009 = vmatpush2.bf16.msra.mxu0 0
      %2010 = vmatprep.mubr.bf16.mxu0 0
      %2011 = vmatmul.mubr.bf16.gmra.mxu0 %v1973
      %v2012 = vpop.f32.mrf.mxu0
      %v2013 = vadd.f32 %v1958, %v2012
      %v2014 = vpop.f32.mrf.mxu0
      %v2015 = vpop.f32.mrf.mxu0
      %v2016 = vadd.f32 %v1958, %v2015
      %v2017 = vpop.f32.mrf.mxu0
      %2018 = vmatprep.mubr.bf16.mxu0 0
      %2019 = vmatmul.mubr.bf16.gmra.mxu0 %v1976
      %v2020 = vpop.f32.mrf.mxu0
      %v2021 = vadd.f32 %v1958, %v2020
      %v2022 = vpop.f32.mrf.mxu0
      %v2023 = vpop.f32.mrf.mxu0
      %v2024 = vadd.f32 %v1958, %v2023
      %v2025 = vpop.f32.mrf.mxu0
      %2026 = vdwg.mxu0
      %v2027 = vadd.f32 %v620, %v2013
      %v2028 = vadd.f32 %v621, %v2016
      %v2029 = vadd.f32 %v622, %v2021
      %v2030 = vadd.f32 %v623, %v2024
      %v2031 = vsel %vm624, %v2027, 0.0
      %2032 = vadd.xlane.f32.xlu0 %v2031
      %v2033 = vpop.xlane.xlu0 %2032
      %v2034 = vsel %vm624, %v2028, 0.0
      %2035 = vadd.xlane.f32.xlu0 %v2034
      %v2036 = vpop.xlane.xlu0 %2035
      %v2037 = vsel %vm624, %v2029, 0.0
      %2038 = vadd.xlane.f32.xlu0 %v2037
      %v2039 = vpop.xlane.xlu0 %2038
      %v2040 = vsel %vm624, %v2030, 0.0
      %2041 = vadd.xlane.f32.xlu0 %v2040
      %v2042 = vpop.xlane.xlu0 %2041
      %v2043 = vmul.f32 %v2033, %v637
      %v2044 = vmul.f32 %v2036, %v637
      %v2045 = vmul.f32 %v2039, %v637
      %v2046 = vmul.f32 %v2042, %v637
      %v2047 = vsub.f32 %v2027, %v2043
      %v2048 = vsub.f32 %v2028, %v2044
      %v2049 = vsub.f32 %v2029, %v2045
      %v2050 = vsub.f32 %v2030, %v2046
      %v2051 = vmul.f32 %v2047, %v2047
      %v2052 = vmul.f32 %v2048, %v2048
      %v2053 = vmul.f32 %v2049, %v2049
      %v2054 = vmul.f32 %v2050, %v2050
      %v2055 = vsel %vm624, %v2051, 0.0
      %2056 = vadd.xlane.f32.xlu0 %v2055
      %v2057 = vpop.xlane.xlu0 %2056
      %v2058 = vsel %vm624, %v2052, 0.0
      %2059 = vadd.xlane.f32.xlu0 %v2058
      %v2060 = vpop.xlane.xlu0 %2059
      %v2061 = vsel %vm624, %v2053, 0.0
      %2062 = vadd.xlane.f32.xlu0 %v2061
      %v2063 = vpop.xlane.xlu0 %2062
      %v2064 = vsel %vm624, %v2054, 0.0
      %2065 = vadd.xlane.f32.xlu0 %v2064
      %v2066 = vpop.xlane.xlu0 %2065
      %v2067 = vmul.f32 %v2057, %v637
      %v2068 = vmul.f32 %v2060, %v637
      %v2069 = vmul.f32 %v2063, %v637
      %v2070 = vmul.f32 %v2066, %v637
      %v2071 = vadd.f32 %v2067, 1e-05
      %v2072 = vadd.f32 %v2068, 1e-05
      %v2073 = vadd.f32 %v2069, 1e-05
      %v2074 = vadd.f32 %v2070, 1e-05
      %v2075 = vrsqrt.pop %v2071
      %v2076 = vrsqrt.pop %v2072
      %v2077 = vrsqrt.pop %v2073
      %v2078 = vrsqrt.pop %v2074
      %v2079 = vmul.f32 %v2047, %v2075
      %v2080 = vmul.f32 %v2048, %v2076
      %v2081 = vmul.f32 %v2049, %v2077
      %v2082 = vmul.f32 %v2050, %v2078
      %v2083 = vld [vmem:[%s9] sm:$0x1]
      %v2085 = vlaneseq
      %v2086 = vshrl.u32 %v2085, 7
      %v2087 = vsub.s32 0, %v2086
      %v2088 = vrot.slane %v2083, %v2087
      %v2090 = vmul.f32 %v2079, %v2088
      %v2091 = vmul.f32 %v2080, %v2088
      %v2092 = vmul.f32 %v2081, %v2088
      %v2093 = vmul.f32 %v2082, %v2088
      %v2094 = vld [vmem:[%s10] sm:$0x1]
      %v2096 = vlaneseq
      %v2097 = vshrl.u32 %v2096, 7
      %v2098 = vsub.s32 0, %v2097
      %v2099 = vrot.slane %v2094, %v2098
      %v2101 = vadd.f32 %v2090, %v2099
      %v2102 = vadd.f32 %v2091, %v2099
      %v2103 = vadd.f32 %v2092, %v2099
      %v2104 = vadd.f32 %v2093, %v2099
      %v2105 = vpack.c.bf16 %v2102, %v2101
      %v2106 = vpack.c.bf16 %v2104, %v2103
      %v2107 = vld [vmem:[%s11] sm:$0xf]
      %v2108 = vld [vmem:[%s11 + $0x4] sm:$0xf]
      %v2109 = vld [vmem:[%s11 + $0x8] sm:$0xf]
      %v2110 = vld [vmem:[%s11 + $0xc] sm:$0xf]
      %v2111 = vld [vmem:[%s12] sm:$0x1]
      %v2113 = vlaneseq
      %v2114 = vshrl.u32 %v2113, 7
      %v2115 = vsub.s32 0, %v2114
      %v2116 = vrot.slane %v2111, %v2115
      %v2122 = vunpack.c.l.b16 %v2107
      %v2123 = vunpack.c.l.b16 %v2108
      %v2124 = vunpack.c.l.b16 %v2109
      %v2125 = vunpack.c.l.b16 %v2110
      %v2126 = vpack.c.b16 %v2123, %v2122
      %v2127 = vpack.c.b16 %v2125, %v2124
      %v2131 = vsel %vm624, %v2105, 0
      %v2134 = vsel %vm624, %v2106, 0
      %2136 = vmatprep.subr.bf16.mxu0 0
      %2137 = vmatpush1.bf16.msra.mxu0 0
      %2138 = vmatprep.subr.bf16.mxu0 0
      %2139 = vmatpush1.bf16.msra.mxu0 0
      %2140 = vmatprep.subr.bf16.mxu0 0
      %2141 = vmatpush1.bf16.msra.mxu0 0
      %2142 = vmatprep.subr.bf16.mxu0 0
      %2143 = vmatpush1.bf16.msra.mxu0 0
      %2144 = vmatprep.subr.bf16.mxu0 0
      %2145 = vmatpush1.bf16.msra.mxu0 0
      %2146 = vmatprep.subr.bf16.mxu0 0
      %2147 = vmatpush1.bf16.msra.mxu0 0
      %2148 = vmatprep.subr.bf16.mxu0 0
      %2149 = vmatpush1.bf16.msra.mxu0 %v2127
      %2150 = vmatprep.subr.bf16.mxu0 0
      %2151 = vmatpush1.bf16.msra.mxu0 %v2126
      %2152 = vmatprep.subr.bf16.mxu0 0
      %2153 = vmatpush2.bf16.msra.mxu0 0
      %2154 = vmatprep.subr.bf16.mxu0 0
      %2155 = vmatpush2.bf16.msra.mxu0 0
      %2156 = vmatprep.subr.bf16.mxu0 0
      %2157 = vmatpush2.bf16.msra.mxu0 0
      %2158 = vmatprep.subr.bf16.mxu0 0
      %2159 = vmatpush2.bf16.msra.mxu0 0
      %2160 = vmatprep.subr.bf16.mxu0 0
      %2161 = vmatpush2.bf16.msra.mxu0 0
      %2162 = vmatprep.subr.bf16.mxu0 0
      %2163 = vmatpush2.bf16.msra.mxu0 0
      %2164 = vmatprep.subr.bf16.mxu0 0
      %2165 = vmatpush2.bf16.msra.mxu0 0
      %2166 = vmatprep.subr.bf16.mxu0 0
      %2167 = vmatpush2.bf16.msra.mxu0 0
      %2168 = vmatprep.mubr.bf16.mxu0 0
      %2169 = vmatmul.mubr.bf16.gmra.mxu0 %v2131
      %v2170 = vpop.f32.mrf.mxu0
      %v2171 = vadd.f32 %v2116, %v2170
      %v2172 = vpop.f32.mrf.mxu0
      %v2173 = vpop.f32.mrf.mxu0
      %v2174 = vadd.f32 %v2116, %v2173
      %v2175 = vpop.f32.mrf.mxu0
      %2176 = vmatprep.mubr.bf16.mxu0 0
      %2177 = vmatmul.mubr.bf16.gmra.mxu0 %v2134
      %v2178 = vpop.f32.mrf.mxu0
      %v2179 = vadd.f32 %v2116, %v2178
      %v2180 = vpop.f32.mrf.mxu0
      %v2181 = vpop.f32.mrf.mxu0
      %v2182 = vadd.f32 %v2116, %v2181
      %v2183 = vpop.f32.mrf.mxu0
      %2184 = vdwg.mxu0
      %v2185 = vmul.f32 %v2171, 0.5
      %v2186 = vmul.f32 %v2174, 0.5
      %v2187 = vmul.f32 %v2179, 0.5
      %v2188 = vmul.f32 %v2182, 0.5
      %v2189 = vmul.f32 %v2171, 0.70710677
      %v2190 = vmul.f32 %v2174, 0.70710677
      %v2191 = vmul.f32 %v2179, 0.70710677
      %v2192 = vmul.f32 %v2182, 0.70710677
      %v2193 = verf.f32.pop %v2189
      %v2194 = verf.f32.pop %v2190
      %v2195 = verf.f32.pop %v2191
      %v2196 = verf.f32.pop %v2192
      %v2197 = vadd.f32 %v2193, 1.0
      %v2198 = vadd.f32 %v2194, 1.0
      %v2199 = vadd.f32 %v2195, 1.0
      %v2200 = vadd.f32 %v2196, 1.0
      %v2201 = vmul.f32 %v2185, %v2197
      %v2202 = vmul.f32 %v2186, %v2198
      %v2203 = vmul.f32 %v2187, %v2199
      %v2204 = vmul.f32 %v2188, %v2200
      %v2205 = vpack.c.bf16 %v2202, %v2201
      %v2206 = vpack.c.bf16 %v2204, %v2203
      %v2207 = vld [vmem:[%s13] sm:$0xf]
      %v2208 = vld [vmem:[%s13 + $0x4] sm:$0xf]
      %v2209 = vld [vmem:[%s13 + $0x8] sm:$0xf]
      %v2210 = vld [vmem:[%s13 + $0xc] sm:$0xf]
      %v2211 = vld [vmem:[%s13 + $0x10] sm:$0xf]
      %v2212 = vld [vmem:[%s13 + $0x14] sm:$0xf]
      %v2213 = vld [vmem:[%s13 + $0x18] sm:$0xf]
      %v2214 = vld [vmem:[%s13 + $0x1c] sm:$0xf]
      %v2215 = vld [vmem:[%s13 + $0x20] sm:$0xf]
      %v2216 = vld [vmem:[%s13 + $0x24] sm:$0xf]
      %v2217 = vld [vmem:[%s13 + $0x28] sm:$0xf]
      %v2218 = vld [vmem:[%s13 + $0x2c] sm:$0xf]
      %v2219 = vld [vmem:[%s13 + $0x30] sm:$0xf]
      %v2220 = vld [vmem:[%s13 + $0x34] sm:$0xf]
      %v2221 = vld [vmem:[%s13 + $0x38] sm:$0xf]
      %v2222 = vld [vmem:[%s13 + $0x3c] sm:$0xf]
      %v2223 = vld [vmem:[%s14] sm:$0x1]
      %v2225 = vlaneseq
      %v2226 = vshrl.u32 %v2225, 7
      %v2227 = vsub.s32 0, %v2226
      %v2228 = vrot.slane %v2223, %v2227
      %v2246 = vunpack.c.l.b16 %v2207
      %v2247 = vunpack.c.l.b16 %v2208
      %v2248 = vunpack.c.l.b16 %v2209
      %v2249 = vunpack.c.l.b16 %v2210
      %v2250 = vunpack.c.l.b16 %v2211
      %v2251 = vunpack.c.l.b16 %v2212
      %v2252 = vunpack.c.l.b16 %v2213
      %v2253 = vunpack.c.l.b16 %v2214
      %v2254 = vunpack.c.l.b16 %v2215
      %v2255 = vunpack.c.l.b16 %v2216
      %v2256 = vunpack.c.l.b16 %v2217
      %v2257 = vunpack.c.l.b16 %v2218
      %v2258 = vunpack.c.l.b16 %v2219
      %v2259 = vunpack.c.l.b16 %v2220
      %v2260 = vunpack.c.l.b16 %v2221
      %v2261 = vunpack.c.l.b16 %v2222
      %v2262 = vpack.c.b16 %v2247, %v2246
      %v2263 = vpack.c.b16 %v2249, %v2248
      %v2264 = vpack.c.b16 %v2251, %v2250
      %v2265 = vpack.c.b16 %v2253, %v2252
      %v2266 = vpack.c.b16 %v2255, %v2254
      %v2267 = vpack.c.b16 %v2257, %v2256
      %v2268 = vpack.c.b16 %v2259, %v2258
      %v2269 = vpack.c.b16 %v2261, %v2260
      %2278 = vmatprep.subr.bf16.mxu0 0
      %2279 = vmatpush1.bf16.msra.mxu0 %v2269
      %2280 = vmatprep.subr.bf16.mxu0 0
      %2281 = vmatpush1.bf16.msra.mxu0 %v2268
      %2282 = vmatprep.subr.bf16.mxu0 0
      %2283 = vmatpush1.bf16.msra.mxu0 %v2267
      %2284 = vmatprep.subr.bf16.mxu0 0
      %2285 = vmatpush1.bf16.msra.mxu0 %v2266
      %2286 = vmatprep.subr.bf16.mxu0 0
      %2287 = vmatpush1.bf16.msra.mxu0 %v2265
      %2288 = vmatprep.subr.bf16.mxu0 0
      %2289 = vmatpush1.bf16.msra.mxu0 %v2264
      %2290 = vmatprep.subr.bf16.mxu0 0
      %2291 = vmatpush1.bf16.msra.mxu0 %v2263
      %2292 = vmatprep.subr.bf16.mxu0 0
      %2293 = vmatpush1.bf16.msra.mxu0 %v2262
      %2294 = vmatprep.subr.bf16.mxu0 0
      %2295 = vmatpush2.bf16.msra.mxu0 0
      %2296 = vmatprep.subr.bf16.mxu0 0
      %2297 = vmatpush2.bf16.msra.mxu0 0
      %2298 = vmatprep.subr.bf16.mxu0 0
      %2299 = vmatpush2.bf16.msra.mxu0 0
      %2300 = vmatprep.subr.bf16.mxu0 0
      %2301 = vmatpush2.bf16.msra.mxu0 0
      %2302 = vmatprep.subr.bf16.mxu0 0
      %2303 = vmatpush2.bf16.msra.mxu0 0
      %2304 = vmatprep.subr.bf16.mxu0 0
      %2305 = vmatpush2.bf16.msra.mxu0 0
      %2306 = vmatprep.subr.bf16.mxu0 0
      %2307 = vmatpush2.bf16.msra.mxu0 0
      %2308 = vmatprep.subr.bf16.mxu0 0
      %2309 = vmatpush2.bf16.msra.mxu0 0
      %2310 = vmatprep.mubr.bf16.mxu0 0
      %2311 = vmatmul.mubr.bf16.gmra.mxu0 %v2205
      %v2312 = vpop.f32.mrf.mxu0
      %v2313 = vadd.f32 %v2228, %v2312
      %v2314 = vpop.f32.mrf.mxu0
      %v2315 = vpop.f32.mrf.mxu0
      %v2316 = vadd.f32 %v2228, %v2315
      %v2317 = vpop.f32.mrf.mxu0
      %2318 = vmatprep.mubr.bf16.mxu0 0
      %2319 = vmatmul.mubr.bf16.gmra.mxu0 %v2206
      %v2320 = vpop.f32.mrf.mxu0
      %v2321 = vadd.f32 %v2228, %v2320
      %v2322 = vpop.f32.mrf.mxu0
      %v2323 = vpop.f32.mrf.mxu0
      %v2324 = vadd.f32 %v2228, %v2323
      %v2325 = vpop.f32.mrf.mxu0
      %2326 = vdwg.mxu0
      %v2327 = vadd.f32 %v2027, %v2313
      %v2328 = vadd.f32 %v2028, %v2316
      %v2329 = vadd.f32 %v2029, %v2321
      %v2330 = vadd.f32 %v2030, %v2324
      %2331 = vst.msk [vmem:[%s597] sm:$0xf] %vm601, %v2327
      %s2332 = scalar_lea.vmem %s597, 8
      %vm2333 = vcmask 261124
      %2334 = vst.msk [vmem:[%s2332 - $0x4] sm:$0xf0] %vm2333, %v2327
      %s2335 = scalar_lea.vmem %s597, 16
      %2336 = vst.msk [vmem:[%s2335] sm:$0xf] %vm601, %v2328
      %s2337 = scalar_lea.vmem %s597, 24
      %2338 = vst.msk [vmem:[%s2337 - $0x4] sm:$0xf0] %vm2333, %v2328
      %2339 = vst.msk [vmem:[%s597 + $0x4] sm:$0xf] %vm601, %v2329
      %2340 = vst.msk [vmem:[%s2332] sm:$0xf0] %vm2333, %v2329
      %2341 = vst.msk [vmem:[%s2335 + $0x4] sm:$0xf] %vm601, %v2330
      %2342 = vst.msk [vmem:[%s2337] sm:$0xf0] %vm2333, %v2330
      %s2343 = smul.u32 4, %s32
      %p2344 = scmp.lt.s32.totalorder %s31, 1
      %s2345 = scalar_select %p2344, %s31, 1
      %p2346 = scmp.lt.s32.totalorder %s2343, 7
      %s2347 = scalar_select %p2346, %s2343, 7
      %p2348 = scmp.lt.s32.totalorder %s33, 0
      %s2349 = scalar_select %p2348, %s33, 0
      %s2350 = sadd.s32 %s2349, %s2347
      %s2351 = smul.addr %s2345, 8
      %s2352 = sadd.s32 %s2350, %s2351
      %s2353 = smul.addr %s2352, 8
      %s2354 = scalar_lea.vmem %s15, %s2353
      // Predicated region
      $region81: #{_basic_layer_jit.3} parent=79 // pred_check
        %p2355 = pneg %p398
      $region82: #{_basic_layer_jit.3} parent=79 // pred_check_branch
        %2357 = sbr.rel (%p2355) target = $region84
      $region83: #{_basic_layer_jit.3} parent=79 // pred_region
        %s2358 = smul.u32 4, %s32
      $region84: #{_basic_layer_jit.3} parent=79 // pred_fallthru
        _
    $region80: #{_basic_layer_jit.3} parent=5 // pred_fallthru
      _
    %p2359 = scmp.le.s32.totalorder 2, %s21
    // Predicated region
    $region85: #{_basic_layer_jit.3} parent=5 // pred_check
      %p2360 = pneg %p2359
    $region86: #{_basic_layer_jit.3} parent=5 // pred_check_branch
      %2362 = sbr.rel (%p2360) target = $region88
    $region87: #{_basic_layer_jit.3} parent=5 // pred_region
      %s2363 = ssub.s32 %s21, 2
      // Predicated region
      $region89: #{_basic_layer_jit.3} parent=87 // pred_check
        %p2364 = pneg %p404
      $region90: #{_basic_layer_jit.3} parent=87 // pred_check_branch
        %2366 = sbr.rel (%p2364) target = $region92
      $region91: #{_basic_layer_jit.3} parent=87 // pred_region
        %s2367 = smul.u32 4, %s35
        %p2368 = scmp.lt.s32.totalorder %s34, 1
        %s2369 = scalar_select %p2368, %s34, 1
        %p2370 = scmp.lt.s32.totalorder %s2367, 7
        %s2371 = scalar_select %p2370, %s2367, 7
        %p2372 = scmp.lt.s32.totalorder %s36, 0
        %s2373 = scalar_select %p2372, %s36, 0
        %s2374 = sadd.s32 %s2373, %s2371
        %s2375 = smul.addr %s2369, 8
        %s2376 = sadd.s32 %s2374, %s2375
        %s2377 = smul.addr %s2376, 8
        %s2378 = scalar_lea.vmem %s15, %s2377
      $region92: #{_basic_layer_jit.3} parent=87 // pred_fallthru
        _
    $region88: #{_basic_layer_jit.3} parent=5 // pred_fallthru
      _
  $region6: #{_basic_layer_jit.3} parent=0 // loop_footer
    %s25 = sadd.s32 1, %s21
  $region7: #{_basic_layer_jit.3} parent=0 // loop_footer_branch
    %20 = sbr.rel target = $region3
  $region8: #{_basic_layer_jit.3} parent=0 // loop_exit
    _

</llo_original>
